<compile_context>
chip_gen: v7x
topology: tpu7x:2x2x1
jax: 0.10.0
libtpu: 0.0.40
codegen_flags: <defaults>
</compile_context>

<pallas_src>
import math

import jax
import jax.numpy as jnp
from jax import lax
from jax.experimental import pallas as pl
from jax.experimental.pallas import tpu as pltpu


# Set True on v6e/v7x to run the big hoisted projection on the bf16 MXU path
# (f32 accumulation kept via preferred_element_type). Default False = exact f32.
USE_BF16_MATMUL = False


def _mm(a, w):
    """Hoisted-projection matmul; bf16 operands iff the weight was pre-cast."""
    if w.dtype == jnp.bfloat16:
        a = a.astype(jnp.bfloat16)
    return jnp.dot(a, w, preferred_element_type=jnp.float32)


# ----------------------------------------------------------------------------
# Kernel building blocks (operate on Refs)
# ----------------------------------------------------------------------------
def _proj_from_x(x_ref, wi_ref, b_ref, gx_ref):
    """gx = x @ wi + b  for both directions in one big MXU matmul.

    x_ref: (T, B, Din), wi_ref: (Din, 8H), b_ref: (1, 8H), gx_ref: (T, B, 8H)."""
    T, B, Din = x_ref.shape
    G8 = gx_ref.shape[-1]
    x2d = x_ref[...].reshape(T * B, Din)
    gx = _mm(x2d, wi_ref[...]) + b_ref[...]
    gx_ref[...] = gx.reshape(T, B, G8)


def _proj_from_hidden(hf_ref, hb_ref, wi_ref, b_ref, gx_ref):
    """Hoisted projection from the previous layer's split hidden slabs.

    hf_ref/hb_ref: (T, B, H); wi_ref: (2H, 8H) row-split [fwd rows | bwd rows]."""
    T, B, H = hf_ref.shape
    G8 = gx_ref.shape[-1]
    hf2 = hf_ref[...].reshape(T * B, H)
    hb2 = hb_ref[...].reshape(T * B, H)
    gx = (_mm(hf2, wi_ref[pl.ds(0, H), :])
          + _mm(hb2, wi_ref[pl.ds(H, H), :])
          + b_ref[...])
    gx_ref[...] = gx.reshape(T, B, G8)


def _lstm_cell(gates, c_prev, H):
    """Gate column order [i, f, o | g]: one 3H sigmoid + one H tanh per cell."""
    sg = jax.nn.sigmoid(gates[:, :3 * H])
    g = jnp.tanh(gates[:, 3 * H:])
    i, f, o = sg[:, :H], sg[:, H:2 * H], sg[:, 2 * H:]
    c = f * c_prev + i * g
    h = o * jnp.tanh(c)
    return h, c


def _run_layer_full(gx_ref, wh_blk_ref, hf_ref, hb_ref):
    """Full bidirectional recurrence; writes time-major per-direction slabs.

    gx_ref: (T, B, 8H), wh_blk_ref: (2H, 8H) block-diagonal, hf/hb_ref: (T, B, H)."""
    T, B, _ = gx_ref.shape
    H = hf_ref.shape[-1]
    G = 4 * H
    wh_blk = wh_blk_ref[...]
    zeros = jnp.zeros((B, H), jnp.float32)

    def step(t, carry):
        h_f, c_f, h_b, c_b = carry
        tb = T - 1 - t
        gx_f = gx_ref[t]          # dense (B, 8H) row read
        gx_b = gx_ref[tb]
        # Single lane-dense recurrent matmul covering both directions.
        rec = jnp.dot(jnp.concatenate([h_f, h_b], axis=-1), wh_blk,
                      preferred_element_type=jnp.float32)         # (B, 8H)
        h_f, c_f = _lstm_cell(gx_f[:, :G] + rec[:, :G], c_f, H)
        h_b, c_b = _lstm_cell(gx_b[:, G:] + rec[:, G:], c_b, H)
        hf_ref[t] = h_f           # contiguous time-major row stores
        hb_ref[tb] = h_b
        return h_f, c_f, h_b, c_b

    lax.fori_loop(0, T, step, (zeros, zeros, zeros, zeros), unroll=min(T, 8))


def _run_layer_last(gx_ref, wh_f_ref):
    """Head-layer recurrence: forward for T steps (carry only) + ONE backward step.

    output[:, -1, H:] equals the backward cell after its first step (zero initial
    state), so its recurrent matmul contribution is exactly zero."""
    T, B, _ = gx_ref.shape
    H = wh_f_ref.shape[0]
    G = 4 * H
    wh_f = wh_f_ref[...]
    zeros = jnp.zeros((B, H), jnp.float32)

    def step(t, carry):
        h_f, c_f = carry
        gates = gx_ref[t][:, :G] + jnp.dot(h_f, wh_f,
                                           preferred_element_type=jnp.float32)
        return _lstm_cell(gates, c_f, H)

    h_f, _ = lax.fori_loop(0, T, step, (zeros, zeros), unroll=min(T, 8))
    h_b, _ = _lstm_cell(gx_ref[T - 1][:, G:], zeros, H)   # no matmul needed
    return jnp.concatenate([h_f, h_b], axis=-1)            # (B, 2H)


def _fc_ce(h_last, fc_w_ref, fc_b_ref, labels_ref, logits_ref, loss_ref,
           mean_over=None):
    """FC head + cross entropy. mean_over=None -> per-example losses (wrapper reduces)."""
    logits = (jnp.dot(h_last, fc_w_ref[...], preferred_element_type=jnp.float32)
              + fc_b_ref[...])
    logits_ref[...] = logits
    Bc, C = logits.shape
    m = jnp.max(logits, axis=-1, keepdims=True)
    lse = m + jnp.log(jnp.sum(jnp.exp(logits - m), axis=-1, keepdims=True))
    labels = labels_ref[...]
    col = lax.broadcasted_iota(jnp.int32, (Bc, C), 1)
    picked = jnp.sum(jnp.where(col == labels, logits, 0.0),
                     axis=-1, keepdims=True)
    per_ex = lse - picked                                   # (Bc, 1)
    if mean_over is None:
        loss_ref[...] = per_ex
    else:
        loss_ref[...] = jnp.sum(per_ex, axis=0, keepdims=True) / float(mean_over)


# ----------------------------------------------------------------------------
# Fully fused kernel (all LSTM layers + FC + CE in one pallas_call)
# ----------------------------------------------------------------------------
def _make_fused_kernel(num_layers):
    n_buf = min(2, num_layers - 1)

    def kernel(*refs):
        pos = 0
        x_ref = refs[pos]; pos += 1
        layer_refs = []
        for _ in range(num_layers):
            layer_refs.append(refs[pos:pos + 3]); pos += 3
        fc_w_ref, fc_b_ref, labels_ref = refs[pos:pos + 3]; pos += 3
        logits_ref, loss_ref = refs[pos:pos + 2]; pos += 2
        gx_ref = refs[pos]; pos += 1
        hid_bufs = refs[pos:]

        B = x_ref.shape[1]
        cur = (x_ref, None)
        for l in range(num_layers - 1):
            wi_ref, wh_blk_ref, b_ref = layer_refs[l]
            if cur[1] is None:
                _proj_from_x(cur[0], wi_ref, b_ref, gx_ref)
            else:
                _proj_from_hidden(cur[0], cur[1], wi_ref, b_ref, gx_ref)
            hf_ref = hid_bufs[2 * (l % n_buf)]
            hb_ref = hid_bufs[2 * (l % n_buf) + 1]
            _run_layer_full(gx_ref, wh_blk_ref, hf_ref, hb_ref)
            cur = (hf_ref, hb_ref)

        wi_ref, wh_f_ref, b_ref = layer_refs[-1]
        if cur[1] is None:
            _proj_from_x(cur[0], wi_ref, b_ref, gx_ref)
        else:
            _proj_from_hidden(cur[0], cur[1], wi_ref, b_ref, gx_ref)
        h_last = _run_layer_last(gx_ref, wh_f_ref)
        _fc_ce(h_last, fc_w_ref, fc_b_ref, labels_ref, logits_ref, loss_ref,
               mean_over=B)

    return kernel


def _full_spec(shape):
    return pl.BlockSpec(shape, lambda: (0,) * len(shape))


def _fused_forward(x, layers, fc_w, fc_b, labels2d):
    T, B, _ = x.shape
    H = layers[0]["wh_f"].shape[0]
    C = fc_w.shape[1]
    num_layers = len(layers)
    n_buf = min(2, num_layers - 1)

    args = [x]
    for lp in layers[:-1]:
        args += [lp["wi"], lp["wh_blk"], lp["b"]]
    args += [layers[-1]["wi"], layers[-1]["wh_f"], layers[-1]["b"]]
    args += [fc_w, fc_b, labels2d]

    scratch = [pltpu.VMEM((T, B, 8 * H), jnp.float32)]
    scratch += [pltpu.VMEM((T, B, H), jnp.float32) for _ in range(2 * n_buf)]

    logits, loss = pl.pallas_call(
        _make_fused_kernel(num_layers),
        out_shape=(jax.ShapeDtypeStruct((B, C), jnp.float32),
                   jax.ShapeDtypeStruct((1, 1), jnp.float32)),
        in_specs=[_full_spec(a.shape) for a in args],
        out_specs=(_full_spec((B, C)), _full_spec((1, 1))),
        scratch_shapes=scratch,
    )(*args)
    return logits, loss[0, 0]


def _fused_vmem_ok(T, B, E, H, num_layers, limit=16 << 20):
    f = 4
    n_buf = min(2, num_layers - 1)
    total = T * B * E * f + T * B * 8 * H * f + n_buf * 2 * T * B * H * f
    in_dim = E
    for _ in range(num_layers):
        total += (in_dim * 8 * H + 2 * H * 8 * H + 8 * H) * f
        in_dim = 2 * H
    return 2 * total <= limit      # 2x margin for (8,128) tile padding


# ----------------------------------------------------------------------------
# Layered fallback (batch-gridded, for shapes that do not fit fused in VMEM)
# ----------------------------------------------------------------------------
def _choose_block_b(B, per_item_bytes, budget):
    if B <= 8 or B % 8 != 0:
        return B
    divisors = [d for d in range(8, B + 1, 8) if B % d == 0]
    fitting = [d for d in divisors if d * per_item_bytes <= budget]
    if not fitting:
        return 8
    balanced = [d for d in fitting if B // d >= 2]   # >=2 blocks (v7x 2 TCs)
    return max(balanced) if balanced else max(fitting)


def _make_layer_kernel(from_pair):
    def kernel(*refs):
        if from_pair:
            (xf_ref, xb_ref, wi_ref, wh_blk_ref, b_ref,
             hf_ref, hb_ref, gx_ref) = refs
            _proj_from_hidden(xf_ref, xb_ref, wi_ref, b_ref, gx_ref)
        else:
            (x_ref, wi_ref, wh_blk_ref, b_ref,
             hf_ref, hb_ref, gx_ref) = refs
            _proj_from_x(x_ref, wi_ref, b_ref, gx_ref)
        _run_layer_full(gx_ref, wh_blk_ref, hf_ref, hb_ref)
    return kernel


def _make_head_kernel(from_pair):
    def kernel(*refs):
        if from_pair:
            (xf_ref, xb_ref, wi_ref, wh_f_ref, b_ref, fc_w_ref, fc_b_ref,
             labels_ref, logits_ref, loss_ref, gx_ref) = refs
            _proj_from_hidden(xf_ref, xb_ref, wi_ref, b_ref, gx_ref)
        else:
            (x_ref, wi_ref, wh_f_ref, b_ref, fc_w_ref, fc_b_ref,
             labels_ref, logits_ref, loss_ref, gx_ref) = refs
            _proj_from_x(x_ref, wi_ref, b_ref, gx_ref)
        h_last = _run_layer_last(gx_ref, wh_f_ref)
        _fc_ce(h_last, fc_w_ref, fc_b_ref, labels_ref, logits_ref, loss_ref,
               mean_over=None)
    return kernel


_LAYER_VMEM_BUDGET = 20 << 20
_VMEM_LIMIT_BYTES = 48 * 1024 * 1024   # < v7x's 64 MiB physical VMEM


def bilstm_layer(x_or_pair, lp):
    from_pair = isinstance(x_or_pair, tuple)
    if from_pair:
        hf, hb = x_or_pair
        T, B, Hin = hf.shape
        Din = 2 * Hin
        data_args = [hf, hb]
    else:
        x = x_or_pair
        T, B, Din = x.shape
        data_args = [x]
    H = lp["wh_f"].shape[0]
    per_item = 4 * T * (Din + 8 * H + 2 * H) * 3
    bb = _choose_block_b(B, per_item, _LAYER_VMEM_BUDGET)
    nb = B // bb
    if from_pair:
        data_specs = [pl.BlockSpec((T, bb, Hin), lambda i: (0, i, 0)),
                      pl.BlockSpec((T, bb, Hin), lambda i: (0, i, 0))]
    else:
        data_specs = [pl.BlockSpec((T, bb, Din), lambda i: (0, i, 0))]
    w_specs = [pl.BlockSpec(lp["wi"].shape, lambda i: (0, 0)),
               pl.BlockSpec(lp["wh_blk"].shape, lambda i: (0, 0)),
               pl.BlockSpec(lp["b"].shape, lambda i: (0, 0))]
    hf_out, hb_out = pl.pallas_call(
        _make_layer_kernel(from_pair),
        out_shape=(jax.ShapeDtypeStruct((T, B, H), jnp.float32),
                   jax.ShapeDtypeStruct((T, B, H), jnp.float32)),
        grid=(nb,),
        in_specs=data_specs + w_specs,
        out_specs=(pl.BlockSpec((T, bb, H), lambda i: (0, i, 0)),
                   pl.BlockSpec((T, bb, H), lambda i: (0, i, 0))),
        scratch_shapes=[pltpu.VMEM((T, bb, 8 * H), jnp.float32)],
        compiler_params=pltpu.CompilerParams(
            dimension_semantics=("parallel",),
            vmem_limit_bytes=_VMEM_LIMIT_BYTES),
    )(*data_args, lp["wi"], lp["wh_blk"], lp["b"])
    return hf_out, hb_out


def bilstm_head(x_or_pair, lp, fc_w, fc_b, labels2d):
    from_pair = isinstance(x_or_pair, tuple)
    if from_pair:
        hf, hb = x_or_pair
        T, B, Hin = hf.shape
        Din = 2 * Hin
        data_args = [hf, hb]
    else:
        x = x_or_pair
        T, B, Din = x.shape
        data_args = [x]
    H = lp["wh_f"].shape[0]
    C = fc_w.shape[1]
    per_item = 4 * T * (Din + 8 * H) * 3
    bb = _choose_block_b(B, per_item, _LAYER_VMEM_BUDGET)
    nb = B // bb
    if from_pair:
        data_specs = [pl.BlockSpec((T, bb, Hin), lambda i: (0, i, 0)),
                      pl.BlockSpec((T, bb, Hin), lambda i: (0, i, 0))]
    else:
        data_specs = [pl.BlockSpec((T, bb, Din), lambda i: (0, i, 0))]
    w_specs = [pl.BlockSpec(lp["wi"].shape, lambda i: (0, 0)),
               pl.BlockSpec(lp["wh_f"].shape, lambda i: (0, 0)),
               pl.BlockSpec(lp["b"].shape, lambda i: (0, 0)),
               pl.BlockSpec(fc_w.shape, lambda i: (0, 0)),
               pl.BlockSpec(fc_b.shape, lambda i: (0, 0)),
               pl.BlockSpec((bb, 1), lambda i: (i, 0))]
    logits, loss_per_ex = pl.pallas_call(
        _make_head_kernel(from_pair),
        out_shape=(jax.ShapeDtypeStruct((B, C), jnp.float32),
                   jax.ShapeDtypeStruct((B, 1), jnp.float32)),
        grid=(nb,),
        in_specs=data_specs + w_specs,
        out_specs=(pl.BlockSpec((bb, C), lambda i: (i, 0)),
                   pl.BlockSpec((bb, 1), lambda i: (i, 0))),
        scratch_shapes=[pltpu.VMEM((T, bb, 8 * H), jnp.float32)],
        compiler_params=pltpu.CompilerParams(
            dimension_semantics=("parallel",),
            vmem_limit_bytes=_VMEM_LIMIT_BYTES),
    )(*data_args, lp["wi"], lp["wh_f"], lp["b"], fc_w, fc_b, labels2d)
    return logits, jnp.sum(loss_per_ex) / B


# ----------------------------------------------------------------------------
# Full forward
# ----------------------------------------------------------------------------
def bilstm_forward(params, input_ids, attention_mask, label_ids, mode="eval"):
    del attention_mask  # the reference PyTorch forward never uses it
    # Embedding lookup (gather) is glue, done in plain XLA.
    # TODO(synk): nn.Dropout is identity at inference; stochastic training-time
    # dropout masking is not implemented here.
    emb = jnp.take(params["embedding"], input_ids, axis=0).astype(jnp.float32)  # (B,T,E)
    x = jnp.transpose(emb, (1, 0, 2))                                           # (T,B,E)

    layers = params["lstm_layers"]
    T, B, E = x.shape
    H = layers[0]["wh_f"].shape[0]
    labels2d = label_ids.reshape(B, 1).astype(jnp.int32)

    if _fused_vmem_ok(T, B, E, H, len(layers)):
        logits, loss = _fused_forward(x, layers, params["fc_w"], params["fc_b"],
                                      labels2d)
    else:
        cur = x
        for lp in layers[:-1]:
            cur = bilstm_layer(cur, lp)           # -> (hid_f, hid_b) pair
        logits, loss = bilstm_head(cur, layers[-1], params["fc_w"],
                                   params["fc_b"], labels2d)

    if mode == "train":
        return loss
    preds = jnp.argmax(logits, axis=-1)
    return loss, preds, label_ids


# ----------------------------------------------------------------------------
# Deterministic parameter init (shapes follow the PyTorch module)
# ----------------------------------------------------------------------------
def init_params(key, vocab_size, embedding_dim, hidden_size, num_layers, num_labels):
    H = hidden_size // 2
    k_emb, k_fc, *k_layers = jax.random.split(key, 2 + num_layers)

    params = {
        "embedding": 0.1 * jax.random.normal(k_emb, (vocab_size, embedding_dim),
                                             jnp.float32),
        "fc_w": 0.1 * jax.random.normal(k_fc, (hidden_size, num_labels), jnp.float32),
        "fc_b": jnp.zeros((1, num_labels), jnp.float32),
    }

    layers = []
    in_dim = embedding_dim
    for l in range(num_layers):
        ks = jax.random.split(k_layers[l], 8)
        scale = 1.0 / math.sqrt(H)

        def u(kk, shape):
            return jax.random.uniform(kk, shape, jnp.float32, -scale, scale)

        # Gate column order inside each 4H block is [i, f, o, g].
        wi_f = u(ks[0], (in_dim, 4 * H))
        wh_f = u(ks[1], (H, 4 * H))
        b_f = u(ks[2], (1, 4 * H)) + u(ks[3], (1, 4 * H))     # b_ih + b_hh
        wi_b = u(ks[4], (in_dim, 4 * H))
        wh_b = u(ks[5], (H, 4 * H))
        b_b = u(ks[6], (1, 4 * H)) + u(ks[7], (1, 4 * H))

        wi = jnp.concatenate([wi_f, wi_b], axis=1)            # (in_dim, 8H)
        if USE_BF16_MATMUL:
            wi = wi.astype(jnp.bfloat16)                      # pre-cast once (v6e/v7x)

        wh_blk = jnp.zeros((2 * H, 8 * H), jnp.float32)
        wh_blk = wh_blk.at[:H, :4 * H].set(wh_f)
        wh_blk = wh_blk.at[H:, 4 * H:].set(wh_b)              # block-diag [fwd|bwd]

        layers.append({
            "wi": wi,                                          # (in_dim, 8H)
            "b": jnp.concatenate([b_f, b_b], axis=1),          # (1, 8H)
            "wh_f": wh_f,                                      # (H, 4H) (head layer)
            "wh_blk": wh_blk,                                  # (2H, 8H)
        })
        in_dim = 2 * H
    params["lstm_layers"] = layers
    return params


# ----------------------------------------------------------------------------
# Main
# ----------------------------------------------------------------------------
if __name__ == "__main__":
    B, T = 2, 8
    vocab_size, embedding_dim = 100, 300   # embedding_dim fixed at 300 in the module
    hidden_size, num_layers, num_labels = 32, 2, 4

    key = jax.random.PRNGKey(0)
    k_param, k_ids, k_lbl = jax.random.split(key, 3)

    params = init_params(k_param, vocab_size, embedding_dim,
                         hidden_size, num_layers, num_labels)
    input_ids = jax.random.randint(k_ids, (B, T), 0, vocab_size, dtype=jnp.int32)
    attention_mask = jnp.ones((B, T), jnp.int32)
    label_ids = jax.random.randint(k_lbl, (B,), 0, num_labels, dtype=jnp.int32)

    loss, preds, labels = bilstm_forward(params, input_ids, attention_mask,
                                         label_ids, mode="eval")
    jax.block_until_ready((loss, preds, labels))
    print("KERNEL_OK")
</pallas_src>

<mosaic_0001>
module attributes {stable_mosaic.version = 11 : i64} {
  func.func @kernel(%arg0: memref<8x2x300xf32, #tpu.memory_space<vmem>>, %arg1: memref<300x128xf32, #tpu.memory_space<vmem>>, %arg2: memref<32x128xf32, #tpu.memory_space<vmem>>, %arg3: memref<1x128xf32, #tpu.memory_space<vmem>>, %arg4: memref<32x128xf32, #tpu.memory_space<vmem>>, %arg5: memref<16x64xf32, #tpu.memory_space<vmem>>, %arg6: memref<1x128xf32, #tpu.memory_space<vmem>>, %arg7: memref<32x4xf32, #tpu.memory_space<vmem>>, %arg8: memref<1x4xf32, #tpu.memory_space<vmem>>, %arg9: memref<2x1xi32, #tpu.memory_space<vmem>>, %arg10: memref<2x4xf32, #tpu.memory_space<vmem>>, %arg11: memref<1x1xf32, #tpu.memory_space<vmem>>, %arg12: memref<8x2x128xf32, #tpu.memory_space<vmem>>, %arg13: memref<8x2x16xf32, #tpu.memory_space<vmem>>, %arg14: memref<8x2x16xf32, #tpu.memory_space<vmem>>) attributes {dimension_semantics = [], scalar_prefetch = 0 : i64, scratch_operands = 3 : i64, tpu.core_type = #tpu.core_type<tc>} {
    %c0 = arith.constant 0 : index
    %c0_0 = arith.constant 0 : index
    %c0_1 = arith.constant 0 : index
    %0 = vector.load %arg0[%c0, %c0_0, %c0_1] : memref<8x2x300xf32, #tpu.memory_space<vmem>>, vector<8x2x300xf32>
    %1 = vector.shape_cast %0 : vector<8x2x300xf32> to vector<16x300xf32>
    %c0_2 = arith.constant 0 : index
    %c0_3 = arith.constant 0 : index
    %2 = vector.load %arg1[%c0_2, %c0_3] : memref<300x128xf32, #tpu.memory_space<vmem>>, vector<300x128xf32>
    %cst = arith.constant dense<0.000000e+00> : vector<16x128xf32>
    %3 = tpu.matmul %1, %2, %cst {dimension_numbers = #tpu.dot_dimension_numbers<[1], [0], [0], [1], [0, 0, 1, 1], [], []>} : vector<16x300xf32>, vector<300x128xf32>, vector<16x128xf32> -> vector<16x128xf32>
    %c0_4 = arith.constant 0 : index
    %c0_5 = arith.constant 0 : index
    %4 = vector.load %arg3[%c0_4, %c0_5] : memref<1x128xf32, #tpu.memory_space<vmem>>, vector<1x128xf32>
    %5 = vector.broadcast %4 : vector<1x128xf32> to vector<16x128xf32>
    %6 = arith.addf %3, %5 : vector<16x128xf32>
    %7 = vector.shape_cast %6 : vector<16x128xf32> to vector<8x2x128xf32>
    %c0_6 = arith.constant 0 : index
    %c0_7 = arith.constant 0 : index
    %c0_8 = arith.constant 0 : index
    %8 = vector.load %arg12[%c0_6, %c0_7, %c0_8] : memref<8x2x128xf32, #tpu.memory_space<vmem>>, vector<8x2x128xf32>
    tpu.vector_store %arg12[%c0_6, %c0_7, %c0_8], %7 {strides = array<i32>} : memref<8x2x128xf32, #tpu.memory_space<vmem>>, vector<8x2x128xf32>,
    %c0_9 = arith.constant 0 : index
    %c0_10 = arith.constant 0 : index
    %9 = vector.load %arg2[%c0_9, %c0_10] : memref<32x128xf32, #tpu.memory_space<vmem>>, vector<32x128xf32>
    %cst_11 = arith.constant 0.000000e+00 : f32
    %10 = vector.broadcast %cst_11 : f32 to vector<2x16xf32>
    %c0_i32 = arith.constant 0 : i32
    %c7_i32 = arith.constant 7 : i32
    %11 = arith.subi %c7_i32, %c0_i32 : i32
    %12 = arith.index_cast %c0_i32 : i32 to index
    %c0_12 = arith.constant 0 : index
    %c0_13 = arith.constant 0 : index
    %13 = vector.load %arg12[%12, %c0_12, %c0_13] : memref<8x2x128xf32, #tpu.memory_space<vmem>>, vector<1x2x128xf32>
    %14 = vector.shape_cast %13 : vector<1x2x128xf32> to vector<2x128xf32>
    %15 = arith.index_cast %11 : i32 to index
    %c0_14 = arith.constant 0 : index
    %c0_15 = arith.constant 0 : index
    %16 = vector.load %arg12[%15, %c0_14, %c0_15] : memref<8x2x128xf32, #tpu.memory_space<vmem>>, vector<1x2x128xf32>
    %17 = vector.shape_cast %16 : vector<1x2x128xf32> to vector<2x128xf32>
    %18 = tpu.concatenate %10, %10 in 1 : vector<2x16xf32>, vector<2x16xf32> -> vector<2x32xf32>
    %cst_16 = arith.constant dense<0.000000e+00> : vector<2x128xf32>
    %19 = tpu.matmul %18, %9, %cst_16 {dimension_numbers = #tpu.dot_dimension_numbers<[1], [0], [0], [1], [0, 0, 1, 1], [], []>} : vector<2x32xf32>, vector<32x128xf32>, vector<2x128xf32> -> vector<2x128xf32>
    %20 = vector.extract_strided_slice %14 {offsets = [0, 0], sizes = [2, 64], strides = [1, 1]} : vector<2x128xf32> to vector<2x64xf32>
    %21 = vector.extract_strided_slice %19 {offsets = [0, 0], sizes = [2, 64], strides = [1, 1]} : vector<2x128xf32> to vector<2x64xf32>
    %22 = arith.addf %20, %21 : vector<2x64xf32>
    %23 = vector.extract_strided_slice %22 {offsets = [0, 0], sizes = [2, 48], strides = [1, 1]} : vector<2x64xf32> to vector<2x48xf32>
    %24 = arith.negf %23 : vector<2x48xf32>
    %25 = math.exp %24 : vector<2x48xf32>
    %cst_17 = arith.constant 1.000000e+00 : f32
    %26 = vector.broadcast %cst_17 : f32 to vector<2x48xf32>
    %27 = arith.addf %26, %25 : vector<2x48xf32>
    %28 = arith.divf %26, %27 : vector<2x48xf32>
    %29 = vector.extract_strided_slice %22 {offsets = [0, 48], sizes = [2, 16], strides = [1, 1]} : vector<2x64xf32> to vector<2x16xf32>
    %30 = math.tanh %29 : vector<2x16xf32>
    %31 = vector.extract_strided_slice %28 {offsets = [0, 0], sizes = [2, 16], strides = [1, 1]} : vector<2x48xf32> to vector<2x16xf32>
    %32 = vector.extract_strided_slice %28 {offsets = [0, 16], sizes = [2, 16], strides = [1, 1]} : vector<2x48xf32> to vector<2x16xf32>
    %33 = vector.extract_strided_slice %28 {offsets = [0, 32], sizes = [2, 16], strides = [1, 1]} : vector<2x48xf32> to vector<2x16xf32>
    %34 = arith.mulf %32, %10 : vector<2x16xf32>
    %35 = arith.mulf %31, %30 : vector<2x16xf32>
    %36 = arith.addf %34, %35 : vector<2x16xf32>
    %37 = math.tanh %36 : vector<2x16xf32>
    %38 = arith.mulf %33, %37 : vector<2x16xf32>
    %39 = vector.extract_strided_slice %17 {offsets = [0, 64], sizes = [2, 64], strides = [1, 1]} : vector<2x128xf32> to vector<2x64xf32>
    %40 = vector.extract_strided_slice %19 {offsets = [0, 64], sizes = [2, 64], strides = [1, 1]} : vector<2x128xf32> to vector<2x64xf32>
    %41 = arith.addf %39, %40 : vector<2x64xf32>
    %42 = vector.extract_strided_slice %41 {offsets = [0, 0], sizes = [2, 48], strides = [1, 1]} : vector<2x64xf32> to vector<2x48xf32>
    %43 = arith.negf %42 : vector<2x48xf32>
    %44 = math.exp %43 : vector<2x48xf32>
    %cst_18 = arith.constant 1.000000e+00 : f32
    %45 = vector.broadcast %cst_18 : f32 to vector<2x48xf32>
    %46 = arith.addf %45, %44 : vector<2x48xf32>
    %47 = arith.divf %45, %46 : vector<2x48xf32>
    %48 = vector.extract_strided_slice %41 {offsets = [0, 48], sizes = [2, 16], strides = [1, 1]} : vector<2x64xf32> to vector<2x16xf32>
    %49 = math.tanh %48 : vector<2x16xf32>
    %50 = vector.extract_strided_slice %47 {offsets = [0, 0], sizes = [2, 16], strides = [1, 1]} : vector<2x48xf32> to vector<2x16xf32>
    %51 = vector.extract_strided_slice %47 {offsets = [0, 16], sizes = [2, 16], strides = [1, 1]} : vector<2x48xf32> to vector<2x16xf32>
    %52 = vector.extract_strided_slice %47 {offsets = [0, 32], sizes = [2, 16], strides = [1, 1]} : vector<2x48xf32> to vector<2x16xf32>
    %53 = arith.mulf %51, %10 : vector<2x16xf32>
    %54 = arith.mulf %50, %49 : vector<2x16xf32>
    %55 = arith.addf %53, %54 : vector<2x16xf32>
    %56 = math.tanh %55 : vector<2x16xf32>
    %57 = arith.mulf %52, %56 : vector<2x16xf32>
    %58 = arith.index_cast %c0_i32 : i32 to index
    %c0_19 = arith.constant 0 : index
    %c0_20 = arith.constant 0 : index
    %59 = vector.load %arg13[%58, %c0_19, %c0_20] : memref<8x2x16xf32, #tpu.memory_space<vmem>>, vector<1x2x16xf32>
    %60 = vector.shape_cast %59 : vector<1x2x16xf32> to vector<2x16xf32>
    %61 = vector.shape_cast %38 : vector<2x16xf32> to vector<1x2x16xf32>
    tpu.vector_store %arg13[%58, %c0_19, %c0_20], %61 {strides = array<i32>} : memref<8x2x16xf32, #tpu.memory_space<vmem>>, vector<1x2x16xf32>,
    %62 = arith.index_cast %11 : i32 to index
    %c0_21 = arith.constant 0 : index
    %c0_22 = arith.constant 0 : index
    %63 = vector.load %arg14[%62, %c0_21, %c0_22] : memref<8x2x16xf32, #tpu.memory_space<vmem>>, vector<1x2x16xf32>
    %64 = vector.shape_cast %63 : vector<1x2x16xf32> to vector<2x16xf32>
    %65 = vector.shape_cast %57 : vector<2x16xf32> to vector<1x2x16xf32>
    tpu.vector_store %arg14[%62, %c0_21, %c0_22], %65 {strides = array<i32>} : memref<8x2x16xf32, #tpu.memory_space<vmem>>, vector<1x2x16xf32>,
    %c1_i32 = arith.constant 1 : i32
    %c7_i32_23 = arith.constant 7 : i32
    %66 = arith.subi %c7_i32_23, %c1_i32 : i32
    %67 = arith.index_cast %c1_i32 : i32 to index
    %c0_24 = arith.constant 0 : index
    %c0_25 = arith.constant 0 : index
    %68 = vector.load %arg12[%67, %c0_24, %c0_25] : memref<8x2x128xf32, #tpu.memory_space<vmem>>, vector<1x2x128xf32>
    %69 = vector.shape_cast %68 : vector<1x2x128xf32> to vector<2x128xf32>
    %70 = arith.index_cast %66 : i32 to index
    %c0_26 = arith.constant 0 : index
    %c0_27 = arith.constant 0 : index
    %71 = vector.load %arg12[%70, %c0_26, %c0_27] : memref<8x2x128xf32, #tpu.memory_space<vmem>>, vector<1x2x128xf32>
    %72 = vector.shape_cast %71 : vector<1x2x128xf32> to vector<2x128xf32>
    %73 = tpu.concatenate %38, %57 in 1 : vector<2x16xf32>, vector<2x16xf32> -> vector<2x32xf32>
    %cst_28 = arith.constant dense<0.000000e+00> : vector<2x128xf32>
    %74 = tpu.matmul %73, %9, %cst_28 {dimension_numbers = #tpu.dot_dimension_numbers<[1], [0], [0], [1], [0, 0, 1, 1], [], []>} : vector<2x32xf32>, vector<32x128xf32>, vector<2x128xf32> -> vector<2x128xf32>
    %75 = vector.extract_strided_slice %69 {offsets = [0, 0], sizes = [2, 64], strides = [1, 1]} : vector<2x128xf32> to vector<2x64xf32>
    %76 = vector.extract_strided_slice %74 {offsets = [0, 0], sizes = [2, 64], strides = [1, 1]} : vector<2x128xf32> to vector<2x64xf32>
    %77 = arith.addf %75, %76 : vector<2x64xf32>
    %78 = vector.extract_strided_slice %77 {offsets = [0, 0], sizes = [2, 48], strides = [1, 1]} : vector<2x64xf32> to vector<2x48xf32>
    %79 = arith.negf %78 : vector<2x48xf32>
    %80 = math.exp %79 : vector<2x48xf32>
    %cst_29 = arith.constant 1.000000e+00 : f32
    %81 = vector.broadcast %cst_29 : f32 to vector<2x48xf32>
    %82 = arith.addf %81, %80 : vector<2x48xf32>
    %83 = arith.divf %81, %82 : vector<2x48xf32>
    %84 = vector.extract_strided_slice %77 {offsets = [0, 48], sizes = [2, 16], strides = [1, 1]} : vector<2x64xf32> to vector<2x16xf32>
    %85 = math.tanh %84 : vector<2x16xf32>
    %86 = vector.extract_strided_slice %83 {offsets = [0, 0], sizes = [2, 16], strides = [1, 1]} : vector<2x48xf32> to vector<2x16xf32>
    %87 = vector.extract_strided_slice %83 {offsets = [0, 16], sizes = [2, 16], strides = [1, 1]} : vector<2x48xf32> to vector<2x16xf32>
    %88 = vector.extract_strided_slice %83 {offsets = [0, 32], sizes = [2, 16], strides = [1, 1]} : vector<2x48xf32> to vector<2x16xf32>
    %89 = arith.mulf %87, %36 : vector<2x16xf32>
    %90 = arith.mulf %86, %85 : vector<2x16xf32>
    %91 = arith.addf %89, %90 : vector<2x16xf32>
    %92 = math.tanh %91 : vector<2x16xf32>
    %93 = arith.mulf %88, %92 : vector<2x16xf32>
    %94 = vector.extract_strided_slice %72 {offsets = [0, 64], sizes = [2, 64], strides = [1, 1]} : vector<2x128xf32> to vector<2x64xf32>
    %95 = vector.extract_strided_slice %74 {offsets = [0, 64], sizes = [2, 64], strides = [1, 1]} : vector<2x128xf32> to vector<2x64xf32>
    %96 = arith.addf %94, %95 : vector<2x64xf32>
    %97 = vector.extract_strided_slice %96 {offsets = [0, 0], sizes = [2, 48], strides = [1, 1]} : vector<2x64xf32> to vector<2x48xf32>
    %98 = arith.negf %97 : vector<2x48xf32>
    %99 = math.exp %98 : vector<2x48xf32>
    %cst_30 = arith.constant 1.000000e+00 : f32
    %100 = vector.broadcast %cst_30 : f32 to vector<2x48xf32>
    %101 = arith.addf %100, %99 : vector<2x48xf32>
    %102 = arith.divf %100, %101 : vector<2x48xf32>
    %103 = vector.extract_strided_slice %96 {offsets = [0, 48], sizes = [2, 16], strides = [1, 1]} : vector<2x64xf32> to vector<2x16xf32>
    %104 = math.tanh %103 : vector<2x16xf32>
    %105 = vector.extract_strided_slice %102 {offsets = [0, 0], sizes = [2, 16], strides = [1, 1]} : vector<2x48xf32> to vector<2x16xf32>
    %106 = vector.extract_strided_slice %102 {offsets = [0, 16], sizes = [2, 16], strides = [1, 1]} : vector<2x48xf32> to vector<2x16xf32>
    %107 = vector.extract_strided_slice %102 {offsets = [0, 32], sizes = [2, 16], strides = [1, 1]} : vector<2x48xf32> to vector<2x16xf32>
    %108 = arith.mulf %106, %55 : vector<2x16xf32>
    %109 = arith.mulf %105, %104 : vector<2x16xf32>
    %110 = arith.addf %108, %109 : vector<2x16xf32>
    %111 = math.tanh %110 : vector<2x16xf32>
    %112 = arith.mulf %107, %111 : vector<2x16xf32>
    %113 = arith.index_cast %c1_i32 : i32 to index
    %c0_31 = arith.constant 0 : index
    %c0_32 = arith.constant 0 : index
    %114 = vector.load %arg13[%113, %c0_31, %c0_32] : memref<8x2x16xf32, #tpu.memory_space<vmem>>, vector<1x2x16xf32>
    %115 = vector.shape_cast %114 : vector<1x2x16xf32> to vector<2x16xf32>
    %116 = vector.shape_cast %93 : vector<2x16xf32> to vector<1x2x16xf32>
    tpu.vector_store %arg13[%113, %c0_31, %c0_32], %116 {strides = array<i32>} : memref<8x2x16xf32, #tpu.memory_space<vmem>>, vector<1x2x16xf32>,
    %117 = arith.index_cast %66 : i32 to index
    %c0_33 = arith.constant 0 : index
    %c0_34 = arith.constant 0 : index
    %118 = vector.load %arg14[%117, %c0_33, %c0_34] : memref<8x2x16xf32, #tpu.memory_space<vmem>>, vector<1x2x16xf32>
    %119 = vector.shape_cast %118 : vector<1x2x16xf32> to vector<2x16xf32>
    %120 = vector.shape_cast %112 : vector<2x16xf32> to vector<1x2x16xf32>
    tpu.vector_store %arg14[%117, %c0_33, %c0_34], %120 {strides = array<i32>} : memref<8x2x16xf32, #tpu.memory_space<vmem>>, vector<1x2x16xf32>,
    %c2_i32 = arith.constant 2 : i32
    %c7_i32_35 = arith.constant 7 : i32
    %121 = arith.subi %c7_i32_35, %c2_i32 : i32
    %122 = arith.index_cast %c2_i32 : i32 to index
    %c0_36 = arith.constant 0 : index
    %c0_37 = arith.constant 0 : index
    %123 = vector.load %arg12[%122, %c0_36, %c0_37] : memref<8x2x128xf32, #tpu.memory_space<vmem>>, vector<1x2x128xf32>
    %124 = vector.shape_cast %123 : vector<1x2x128xf32> to vector<2x128xf32>
    %125 = arith.index_cast %121 : i32 to index
    %c0_38 = arith.constant 0 : index
    %c0_39 = arith.constant 0 : index
    %126 = vector.load %arg12[%125, %c0_38, %c0_39] : memref<8x2x128xf32, #tpu.memory_space<vmem>>, vector<1x2x128xf32>
    %127 = vector.shape_cast %126 : vector<1x2x128xf32> to vector<2x128xf32>
    %128 = tpu.concatenate %93, %112 in 1 : vector<2x16xf32>, vector<2x16xf32> -> vector<2x32xf32>
    %cst_40 = arith.constant dense<0.000000e+00> : vector<2x128xf32>
    %129 = tpu.matmul %128, %9, %cst_40 {dimension_numbers = #tpu.dot_dimension_numbers<[1], [0], [0], [1], [0, 0, 1, 1], [], []>} : vector<2x32xf32>, vector<32x128xf32>, vector<2x128xf32> -> vector<2x128xf32>
    %130 = vector.extract_strided_slice %124 {offsets = [0, 0], sizes = [2, 64], strides = [1, 1]} : vector<2x128xf32> to vector<2x64xf32>
    %131 = vector.extract_strided_slice %129 {offsets = [0, 0], sizes = [2, 64], strides = [1, 1]} : vector<2x128xf32> to vector<2x64xf32>
    %132 = arith.addf %130, %131 : vector<2x64xf32>
    %133 = vector.extract_strided_slice %132 {offsets = [0, 0], sizes = [2, 48], strides = [1, 1]} : vector<2x64xf32> to vector<2x48xf32>
    %134 = arith.negf %133 : vector<2x48xf32>
    %135 = math.exp %134 : vector<2x48xf32>
    %cst_41 = arith.constant 1.000000e+00 : f32
    %136 = vector.broadcast %cst_41 : f32 to vector<2x48xf32>
    %137 = arith.addf %136, %135 : vector<2x48xf32>
    %138 = arith.divf %136, %137 : vector<2x48xf32>
    %139 = vector.extract_strided_slice %132 {offsets = [0, 48], sizes = [2, 16], strides = [1, 1]} : vector<2x64xf32> to vector<2x16xf32>
    %140 = math.tanh %139 : vector<2x16xf32>
    %141 = vector.extract_strided_slice %138 {offsets = [0, 0], sizes = [2, 16], strides = [1, 1]} : vector<2x48xf32> to vector<2x16xf32>
    %142 = vector.extract_strided_slice %138 {offsets = [0, 16], sizes = [2, 16], strides = [1, 1]} : vector<2x48xf32> to vector<2x16xf32>
    %143 = vector.extract_strided_slice %138 {offsets = [0, 32], sizes = [2, 16], strides = [1, 1]} : vector<2x48xf32> to vector<2x16xf32>
    %144 = arith.mulf %142, %91 : vector<2x16xf32>
    %145 = arith.mulf %141, %140 : vector<2x16xf32>
    %146 = arith.addf %144, %145 : vector<2x16xf32>
    %147 = math.tanh %146 : vector<2x16xf32>
    %148 = arith.mulf %143, %147 : vector<2x16xf32>
    %149 = vector.extract_strided_slice %127 {offsets = [0, 64], sizes = [2, 64], strides = [1, 1]} : vector<2x128xf32> to vector<2x64xf32>
    %150 = vector.extract_strided_slice %129 {offsets = [0, 64], sizes = [2, 64], strides = [1, 1]} : vector<2x128xf32> to vector<2x64xf32>
    %151 = arith.addf %149, %150 : vector<2x64xf32>
    %152 = vector.extract_strided_slice %151 {offsets = [0, 0], sizes = [2, 48], strides = [1, 1]} : vector<2x64xf32> to vector<2x48xf32>
    %153 = arith.negf %152 : vector<2x48xf32>
    %154 = math.exp %153 : vector<2x48xf32>
    %cst_42 = arith.constant 1.000000e+00 : f32
    %155 = vector.broadcast %cst_42 : f32 to vector<2x48xf32>
    %156 = arith.addf %155, %154 : vector<2x48xf32>
    %157 = arith.divf %155, %156 : vector<2x48xf32>
    %158 = vector.extract_strided_slice %151 {offsets = [0, 48], sizes = [2, 16], strides = [1, 1]} : vector<2x64xf32> to vector<2x16xf32>
    %159 = math.tanh %158 : vector<2x16xf32>
    %160 = vector.extract_strided_slice %157 {offsets = [0, 0], sizes = [2, 16], strides = [1, 1]} : vector<2x48xf32> to vector<2x16xf32>
    %161 = vector.extract_strided_slice %157 {offsets = [0, 16], sizes = [2, 16], strides = [1, 1]} : vector<2x48xf32> to vector<2x16xf32>
    %162 = vector.extract_strided_slice %157 {offsets = [0, 32], sizes = [2, 16], strides = [1, 1]} : vector<2x48xf32> to vector<2x16xf32>
    %163 = arith.mulf %161, %110 : vector<2x16xf32>
    %164 = arith.mulf %160, %159 : vector<2x16xf32>
    %165 = arith.addf %163, %164 : vector<2x16xf32>
    %166 = math.tanh %165 : vector<2x16xf32>
    %167 = arith.mulf %162, %166 : vector<2x16xf32>
    %168 = arith.index_cast %c2_i32 : i32 to index
    %c0_43 = arith.constant 0 : index
    %c0_44 = arith.constant 0 : index
    %169 = vector.load %arg13[%168, %c0_43, %c0_44] : memref<8x2x16xf32, #tpu.memory_space<vmem>>, vector<1x2x16xf32>
    %170 = vector.shape_cast %169 : vector<1x2x16xf32> to vector<2x16xf32>
    %171 = vector.shape_cast %148 : vector<2x16xf32> to vector<1x2x16xf32>
    tpu.vector_store %arg13[%168, %c0_43, %c0_44], %171 {strides = array<i32>} : memref<8x2x16xf32, #tpu.memory_space<vmem>>, vector<1x2x16xf32>,
    %172 = arith.index_cast %121 : i32 to index
    %c0_45 = arith.constant 0 : index
    %c0_46 = arith.constant 0 : index
    %173 = vector.load %arg14[%172, %c0_45, %c0_46] : memref<8x2x16xf32, #tpu.memory_space<vmem>>, vector<1x2x16xf32>
    %174 = vector.shape_cast %173 : vector<1x2x16xf32> to vector<2x16xf32>
    %175 = vector.shape_cast %167 : vector<2x16xf32> to vector<1x2x16xf32>
    tpu.vector_store %arg14[%172, %c0_45, %c0_46], %175 {strides = array<i32>} : memref<8x2x16xf32, #tpu.memory_space<vmem>>, vector<1x2x16xf32>,
    %c3_i32 = arith.constant 3 : i32
    %c7_i32_47 = arith.constant 7 : i32
    %176 = arith.subi %c7_i32_47, %c3_i32 : i32
    %177 = arith.index_cast %c3_i32 : i32 to index
    %c0_48 = arith.constant 0 : index
    %c0_49 = arith.constant 0 : index
    %178 = vector.load %arg12[%177, %c0_48, %c0_49] : memref<8x2x128xf32, #tpu.memory_space<vmem>>, vector<1x2x128xf32>
    %179 = vector.shape_cast %178 : vector<1x2x128xf32> to vector<2x128xf32>
    %180 = arith.index_cast %176 : i32 to index
    %c0_50 = arith.constant 0 : index
    %c0_51 = arith.constant 0 : index
    %181 = vector.load %arg12[%180, %c0_50, %c0_51] : memref<8x2x128xf32, #tpu.memory_space<vmem>>, vector<1x2x128xf32>
    %182 = vector.shape_cast %181 : vector<1x2x128xf32> to vector<2x128xf32>
    %183 = tpu.concatenate %148, %167 in 1 : vector<2x16xf32>, vector<2x16xf32> -> vector<2x32xf32>
    %cst_52 = arith.constant dense<0.000000e+00> : vector<2x128xf32>
    %184 = tpu.matmul %183, %9, %cst_52 {dimension_numbers = #tpu.dot_dimension_numbers<[1], [0], [0], [1], [0, 0, 1, 1], [], []>} : vector<2x32xf32>, vector<32x128xf32>, vector<2x128xf32> -> vector<2x128xf32>
    %185 = vector.extract_strided_slice %179 {offsets = [0, 0], sizes = [2, 64], strides = [1, 1]} : vector<2x128xf32> to vector<2x64xf32>
    %186 = vector.extract_strided_slice %184 {offsets = [0, 0], sizes = [2, 64], strides = [1, 1]} : vector<2x128xf32> to vector<2x64xf32>
    %187 = arith.addf %185, %186 : vector<2x64xf32>
    %188 = vector.extract_strided_slice %187 {offsets = [0, 0], sizes = [2, 48], strides = [1, 1]} : vector<2x64xf32> to vector<2x48xf32>
    %189 = arith.negf %188 : vector<2x48xf32>
    %190 = math.exp %189 : vector<2x48xf32>
    %cst_53 = arith.constant 1.000000e+00 : f32
    %191 = vector.broadcast %cst_53 : f32 to vector<2x48xf32>
    %192 = arith.addf %191, %190 : vector<2x48xf32>
    %193 = arith.divf %191, %192 : vector<2x48xf32>
    %194 = vector.extract_strided_slice %187 {offsets = [0, 48], sizes = [2, 16], strides = [1, 1]} : vector<2x64xf32> to vector<2x16xf32>
    %195 = math.tanh %194 : vector<2x16xf32>
    %196 = vector.extract_strided_slice %193 {offsets = [0, 0], sizes = [2, 16], strides = [1, 1]} : vector<2x48xf32> to vector<2x16xf32>
    %197 = vector.extract_strided_slice %193 {offsets = [0, 16], sizes = [2, 16], strides = [1, 1]} : vector<2x48xf32> to vector<2x16xf32>
    %198 = vector.extract_strided_slice %193 {offsets = [0, 32], sizes = [2, 16], strides = [1, 1]} : vector<2x48xf32> to vector<2x16xf32>
    %199 = arith.mulf %197, %146 : vector<2x16xf32>
    %200 = arith.mulf %196, %195 : vector<2x16xf32>
    %201 = arith.addf %199, %200 : vector<2x16xf32>
    %202 = math.tanh %201 : vector<2x16xf32>
    %203 = arith.mulf %198, %202 : vector<2x16xf32>
    %204 = vector.extract_strided_slice %182 {offsets = [0, 64], sizes = [2, 64], strides = [1, 1]} : vector<2x128xf32> to vector<2x64xf32>
    %205 = vector.extract_strided_slice %184 {offsets = [0, 64], sizes = [2, 64], strides = [1, 1]} : vector<2x128xf32> to vector<2x64xf32>
    %206 = arith.addf %204, %205 : vector<2x64xf32>
    %207 = vector.extract_strided_slice %206 {offsets = [0, 0], sizes = [2, 48], strides = [1, 1]} : vector<2x64xf32> to vector<2x48xf32>
    %208 = arith.negf %207 : vector<2x48xf32>
    %209 = math.exp %208 : vector<2x48xf32>
    %cst_54 = arith.constant 1.000000e+00 : f32
    %210 = vector.broadcast %cst_54 : f32 to vector<2x48xf32>
    %211 = arith.addf %210, %209 : vector<2x48xf32>
    %212 = arith.divf %210, %211 : vector<2x48xf32>
    %213 = vector.extract_strided_slice %206 {offsets = [0, 48], sizes = [2, 16], strides = [1, 1]} : vector<2x64xf32> to vector<2x16xf32>
    %214 = math.tanh %213 : vector<2x16xf32>
    %215 = vector.extract_strided_slice %212 {offsets = [0, 0], sizes = [2, 16], strides = [1, 1]} : vector<2x48xf32> to vector<2x16xf32>
    %216 = vector.extract_strided_slice %212 {offsets = [0, 16], sizes = [2, 16], strides = [1, 1]} : vector<2x48xf32> to vector<2x16xf32>
    %217 = vector.extract_strided_slice %212 {offsets = [0, 32], sizes = [2, 16], strides = [1, 1]} : vector<2x48xf32> to vector<2x16xf32>
    %218 = arith.mulf %216, %165 : vector<2x16xf32>
    %219 = arith.mulf %215, %214 : vector<2x16xf32>
    %220 = arith.addf %218, %219 : vector<2x16xf32>
    %221 = math.tanh %220 : vector<2x16xf32>
    %222 = arith.mulf %217, %221 : vector<2x16xf32>
    %223 = arith.index_cast %c3_i32 : i32 to index
    %c0_55 = arith.constant 0 : index
    %c0_56 = arith.constant 0 : index
    %224 = vector.load %arg13[%223, %c0_55, %c0_56] : memref<8x2x16xf32, #tpu.memory_space<vmem>>, vector<1x2x16xf32>
    %225 = vector.shape_cast %224 : vector<1x2x16xf32> to vector<2x16xf32>
    %226 = vector.shape_cast %203 : vector<2x16xf32> to vector<1x2x16xf32>
    tpu.vector_store %arg13[%223, %c0_55, %c0_56], %226 {strides = array<i32>} : memref<8x2x16xf32, #tpu.memory_space<vmem>>, vector<1x2x16xf32>,
    %227 = arith.index_cast %176 : i32 to index
    %c0_57 = arith.constant 0 : index
    %c0_58 = arith.constant 0 : index
    %228 = vector.load %arg14[%227, %c0_57, %c0_58] : memref<8x2x16xf32, #tpu.memory_space<vmem>>, vector<1x2x16xf32>
    %229 = vector.shape_cast %228 : vector<1x2x16xf32> to vector<2x16xf32>
    %230 = vector.shape_cast %222 : vector<2x16xf32> to vector<1x2x16xf32>
    tpu.vector_store %arg14[%227, %c0_57, %c0_58], %230 {strides = array<i32>} : memref<8x2x16xf32, #tpu.memory_space<vmem>>, vector<1x2x16xf32>,
    %c4_i32 = arith.constant 4 : i32
    %c7_i32_59 = arith.constant 7 : i32
    %231 = arith.subi %c7_i32_59, %c4_i32 : i32
    %232 = arith.index_cast %c4_i32 : i32 to index
    %c0_60 = arith.constant 0 : index
    %c0_61 = arith.constant 0 : index
    %233 = vector.load %arg12[%232, %c0_60, %c0_61] : memref<8x2x128xf32, #tpu.memory_space<vmem>>, vector<1x2x128xf32>
    %234 = vector.shape_cast %233 : vector<1x2x128xf32> to vector<2x128xf32>
    %235 = arith.index_cast %231 : i32 to index
    %c0_62 = arith.constant 0 : index
    %c0_63 = arith.constant 0 : index
    %236 = vector.load %arg12[%235, %c0_62, %c0_63] : memref<8x2x128xf32, #tpu.memory_space<vmem>>, vector<1x2x128xf32>
    %237 = vector.shape_cast %236 : vector<1x2x128xf32> to vector<2x128xf32>
    %238 = tpu.concatenate %203, %222 in 1 : vector<2x16xf32>, vector<2x16xf32> -> vector<2x32xf32>
    %cst_64 = arith.constant dense<0.000000e+00> : vector<2x128xf32>
    %239 = tpu.matmul %238, %9, %cst_64 {dimension_numbers = #tpu.dot_dimension_numbers<[1], [0], [0], [1], [0, 0, 1, 1], [], []>} : vector<2x32xf32>, vector<32x128xf32>, vector<2x128xf32> -> vector<2x128xf32>
    %240 = vector.extract_strided_slice %234 {offsets = [0, 0], sizes = [2, 64], strides = [1, 1]} : vector<2x128xf32> to vector<2x64xf32>
    %241 = vector.extract_strided_slice %239 {offsets = [0, 0], sizes = [2, 64], strides = [1, 1]} : vector<2x128xf32> to vector<2x64xf32>
    %242 = arith.addf %240, %241 : vector<2x64xf32>
    %243 = vector.extract_strided_slice %242 {offsets = [0, 0], sizes = [2, 48], strides = [1, 1]} : vector<2x64xf32> to vector<2x48xf32>
    %244 = arith.negf %243 : vector<2x48xf32>
    %245 = math.exp %244 : vector<2x48xf32>
    %cst_65 = arith.constant 1.000000e+00 : f32
    %246 = vector.broadcast %cst_65 : f32 to vector<2x48xf32>
    %247 = arith.addf %246, %245 : vector<2x48xf32>
    %248 = arith.divf %246, %247 : vector<2x48xf32>
    %249 = vector.extract_strided_slice %242 {offsets = [0, 48], sizes = [2, 16], strides = [1, 1]} : vector<2x64xf32> to vector<2x16xf32>
    %250 = math.tanh %249 : vector<2x16xf32>
    %251 = vector.extract_strided_slice %248 {offsets = [0, 0], sizes = [2, 16], strides = [1, 1]} : vector<2x48xf32> to vector<2x16xf32>
    %252 = vector.extract_strided_slice %248 {offsets = [0, 16], sizes = [2, 16], strides = [1, 1]} : vector<2x48xf32> to vector<2x16xf32>
    %253 = vector.extract_strided_slice %248 {offsets = [0, 32], sizes = [2, 16], strides = [1, 1]} : vector<2x48xf32> to vector<2x16xf32>
    %254 = arith.mulf %252, %201 : vector<2x16xf32>
    %255 = arith.mulf %251, %250 : vector<2x16xf32>
    %256 = arith.addf %254, %255 : vector<2x16xf32>
    %257 = math.tanh %256 : vector<2x16xf32>
    %258 = arith.mulf %253, %257 : vector<2x16xf32>
    %259 = vector.extract_strided_slice %237 {offsets = [0, 64], sizes = [2, 64], strides = [1, 1]} : vector<2x128xf32> to vector<2x64xf32>
    %260 = vector.extract_strided_slice %239 {offsets = [0, 64], sizes = [2, 64], strides = [1, 1]} : vector<2x128xf32> to vector<2x64xf32>
    %261 = arith.addf %259, %260 : vector<2x64xf32>
    %262 = vector.extract_strided_slice %261 {offsets = [0, 0], sizes = [2, 48], strides = [1, 1]} : vector<2x64xf32> to vector<2x48xf32>
    %263 = arith.negf %262 : vector<2x48xf32>
    %264 = math.exp %263 : vector<2x48xf32>
    %cst_66 = arith.constant 1.000000e+00 : f32
    %265 = vector.broadcast %cst_66 : f32 to vector<2x48xf32>
    %266 = arith.addf %265, %264 : vector<2x48xf32>
    %267 = arith.divf %265, %266 : vector<2x48xf32>
    %268 = vector.extract_strided_slice %261 {offsets = [0, 48], sizes = [2, 16], strides = [1, 1]} : vector<2x64xf32> to vector<2x16xf32>
    %269 = math.tanh %268 : vector<2x16xf32>
    %270 = vector.extract_strided_slice %267 {offsets = [0, 0], sizes = [2, 16], strides = [1, 1]} : vector<2x48xf32> to vector<2x16xf32>
    %271 = vector.extract_strided_slice %267 {offsets = [0, 16], sizes = [2, 16], strides = [1, 1]} : vector<2x48xf32> to vector<2x16xf32>
    %272 = vector.extract_strided_slice %267 {offsets = [0, 32], sizes = [2, 16], strides = [1, 1]} : vector<2x48xf32> to vector<2x16xf32>
    %273 = arith.mulf %271, %220 : vector<2x16xf32>
    %274 = arith.mulf %270, %269 : vector<2x16xf32>
    %275 = arith.addf %273, %274 : vector<2x16xf32>
    %276 = math.tanh %275 : vector<2x16xf32>
    %277 = arith.mulf %272, %276 : vector<2x16xf32>
    %278 = arith.index_cast %c4_i32 : i32 to index
    %c0_67 = arith.constant 0 : index
    %c0_68 = arith.constant 0 : index
    %279 = vector.load %arg13[%278, %c0_67, %c0_68] : memref<8x2x16xf32, #tpu.memory_space<vmem>>, vector<1x2x16xf32>
    %280 = vector.shape_cast %279 : vector<1x2x16xf32> to vector<2x16xf32>
    %281 = vector.shape_cast %258 : vector<2x16xf32> to vector<1x2x16xf32>
    tpu.vector_store %arg13[%278, %c0_67, %c0_68], %281 {strides = array<i32>} : memref<8x2x16xf32, #tpu.memory_space<vmem>>, vector<1x2x16xf32>,
    %282 = arith.index_cast %231 : i32 to index
    %c0_69 = arith.constant 0 : index
    %c0_70 = arith.constant 0 : index
    %283 = vector.load %arg14[%282, %c0_69, %c0_70] : memref<8x2x16xf32, #tpu.memory_space<vmem>>, vector<1x2x16xf32>
    %284 = vector.shape_cast %283 : vector<1x2x16xf32> to vector<2x16xf32>
    %285 = vector.shape_cast %277 : vector<2x16xf32> to vector<1x2x16xf32>
    tpu.vector_store %arg14[%282, %c0_69, %c0_70], %285 {strides = array<i32>} : memref<8x2x16xf32, #tpu.memory_space<vmem>>, vector<1x2x16xf32>,
    %c5_i32 = arith.constant 5 : i32
    %c7_i32_71 = arith.constant 7 : i32
    %286 = arith.subi %c7_i32_71, %c5_i32 : i32
    %287 = arith.index_cast %c5_i32 : i32 to index
    %c0_72 = arith.constant 0 : index
    %c0_73 = arith.constant 0 : index
    %288 = vector.load %arg12[%287, %c0_72, %c0_73] : memref<8x2x128xf32, #tpu.memory_space<vmem>>, vector<1x2x128xf32>
    %289 = vector.shape_cast %288 : vector<1x2x128xf32> to vector<2x128xf32>
    %290 = arith.index_cast %286 : i32 to index
    %c0_74 = arith.constant 0 : index
    %c0_75 = arith.constant 0 : index
    %291 = vector.load %arg12[%290, %c0_74, %c0_75] : memref<8x2x128xf32, #tpu.memory_space<vmem>>, vector<1x2x128xf32>
    %292 = vector.shape_cast %291 : vector<1x2x128xf32> to vector<2x128xf32>
    %293 = tpu.concatenate %258, %277 in 1 : vector<2x16xf32>, vector<2x16xf32> -> vector<2x32xf32>
    %cst_76 = arith.constant dense<0.000000e+00> : vector<2x128xf32>
    %294 = tpu.matmul %293, %9, %cst_76 {dimension_numbers = #tpu.dot_dimension_numbers<[1], [0], [0], [1], [0, 0, 1, 1], [], []>} : vector<2x32xf32>, vector<32x128xf32>, vector<2x128xf32> -> vector<2x128xf32>
    %295 = vector.extract_strided_slice %289 {offsets = [0, 0], sizes = [2, 64], strides = [1, 1]} : vector<2x128xf32> to vector<2x64xf32>
    %296 = vector.extract_strided_slice %294 {offsets = [0, 0], sizes = [2, 64], strides = [1, 1]} : vector<2x128xf32> to vector<2x64xf32>
    %297 = arith.addf %295, %296 : vector<2x64xf32>
    %298 = vector.extract_strided_slice %297 {offsets = [0, 0], sizes = [2, 48], strides = [1, 1]} : vector<2x64xf32> to vector<2x48xf32>
    %299 = arith.negf %298 : vector<2x48xf32>
    %300 = math.exp %299 : vector<2x48xf32>
    %cst_77 = arith.constant 1.000000e+00 : f32
    %301 = vector.broadcast %cst_77 : f32 to vector<2x48xf32>
    %302 = arith.addf %301, %300 : vector<2x48xf32>
    %303 = arith.divf %301, %302 : vector<2x48xf32>
    %304 = vector.extract_strided_slice %297 {offsets = [0, 48], sizes = [2, 16], strides = [1, 1]} : vector<2x64xf32> to vector<2x16xf32>
    %305 = math.tanh %304 : vector<2x16xf32>
    %306 = vector.extract_strided_slice %303 {offsets = [0, 0], sizes = [2, 16], strides = [1, 1]} : vector<2x48xf32> to vector<2x16xf32>
    %307 = vector.extract_strided_slice %303 {offsets = [0, 16], sizes = [2, 16], strides = [1, 1]} : vector<2x48xf32> to vector<2x16xf32>
    %308 = vector.extract_strided_slice %303 {offsets = [0, 32], sizes = [2, 16], strides = [1, 1]} : vector<2x48xf32> to vector<2x16xf32>
    %309 = arith.mulf %307, %256 : vector<2x16xf32>
    %310 = arith.mulf %306, %305 : vector<2x16xf32>
    %311 = arith.addf %309, %310 : vector<2x16xf32>
    %312 = math.tanh %311 : vector<2x16xf32>
    %313 = arith.mulf %308, %312 : vector<2x16xf32>
    %314 = vector.extract_strided_slice %292 {offsets = [0, 64], sizes = [2, 64], strides = [1, 1]} : vector<2x128xf32> to vector<2x64xf32>
    %315 = vector.extract_strided_slice %294 {offsets = [0, 64], sizes = [2, 64], strides = [1, 1]} : vector<2x128xf32> to vector<2x64xf32>
    %316 = arith.addf %314, %315 : vector<2x64xf32>
    %317 = vector.extract_strided_slice %316 {offsets = [0, 0], sizes = [2, 48], strides = [1, 1]} : vector<2x64xf32> to vector<2x48xf32>
    %318 = arith.negf %317 : vector<2x48xf32>
    %319 = math.exp %318 : vector<2x48xf32>
    %cst_78 = arith.constant 1.000000e+00 : f32
    %320 = vector.broadcast %cst_78 : f32 to vector<2x48xf32>
    %321 = arith.addf %320, %319 : vector<2x48xf32>
    %322 = arith.divf %320, %321 : vector<2x48xf32>
    %323 = vector.extract_strided_slice %316 {offsets = [0, 48], sizes = [2, 16], strides = [1, 1]} : vector<2x64xf32> to vector<2x16xf32>
    %324 = math.tanh %323 : vector<2x16xf32>
    %325 = vector.extract_strided_slice %322 {offsets = [0, 0], sizes = [2, 16], strides = [1, 1]} : vector<2x48xf32> to vector<2x16xf32>
    %326 = vector.extract_strided_slice %322 {offsets = [0, 16], sizes = [2, 16], strides = [1, 1]} : vector<2x48xf32> to vector<2x16xf32>
    %327 = vector.extract_strided_slice %322 {offsets = [0, 32], sizes = [2, 16], strides = [1, 1]} : vector<2x48xf32> to vector<2x16xf32>
    %328 = arith.mulf %326, %275 : vector<2x16xf32>
    %329 = arith.mulf %325, %324 : vector<2x16xf32>
    %330 = arith.addf %328, %329 : vector<2x16xf32>
    %331 = math.tanh %330 : vector<2x16xf32>
    %332 = arith.mulf %327, %331 : vector<2x16xf32>
    %333 = arith.index_cast %c5_i32 : i32 to index
    %c0_79 = arith.constant 0 : index
    %c0_80 = arith.constant 0 : index
    %334 = vector.load %arg13[%333, %c0_79, %c0_80] : memref<8x2x16xf32, #tpu.memory_space<vmem>>, vector<1x2x16xf32>
    %335 = vector.shape_cast %334 : vector<1x2x16xf32> to vector<2x16xf32>
    %336 = vector.shape_cast %313 : vector<2x16xf32> to vector<1x2x16xf32>
    tpu.vector_store %arg13[%333, %c0_79, %c0_80], %336 {strides = array<i32>} : memref<8x2x16xf32, #tpu.memory_space<vmem>>, vector<1x2x16xf32>,
    %337 = arith.index_cast %286 : i32 to index
    %c0_81 = arith.constant 0 : index
    %c0_82 = arith.constant 0 : index
    %338 = vector.load %arg14[%337, %c0_81, %c0_82] : memref<8x2x16xf32, #tpu.memory_space<vmem>>, vector<1x2x16xf32>
    %339 = vector.shape_cast %338 : vector<1x2x16xf32> to vector<2x16xf32>
    %340 = vector.shape_cast %332 : vector<2x16xf32> to vector<1x2x16xf32>
    tpu.vector_store %arg14[%337, %c0_81, %c0_82], %340 {strides = array<i32>} : memref<8x2x16xf32, #tpu.memory_space<vmem>>, vector<1x2x16xf32>,
    %c6_i32 = arith.constant 6 : i32
    %c7_i32_83 = arith.constant 7 : i32
    %341 = arith.subi %c7_i32_83, %c6_i32 : i32
    %342 = arith.index_cast %c6_i32 : i32 to index
    %c0_84 = arith.constant 0 : index
    %c0_85 = arith.constant 0 : index
    %343 = vector.load %arg12[%342, %c0_84, %c0_85] : memref<8x2x128xf32, #tpu.memory_space<vmem>>, vector<1x2x128xf32>
    %344 = vector.shape_cast %343 : vector<1x2x128xf32> to vector<2x128xf32>
    %345 = arith.index_cast %341 : i32 to index
    %c0_86 = arith.constant 0 : index
    %c0_87 = arith.constant 0 : index
    %346 = vector.load %arg12[%345, %c0_86, %c0_87] : memref<8x2x128xf32, #tpu.memory_space<vmem>>, vector<1x2x128xf32>
    %347 = vector.shape_cast %346 : vector<1x2x128xf32> to vector<2x128xf32>
    %348 = tpu.concatenate %313, %332 in 1 : vector<2x16xf32>, vector<2x16xf32> -> vector<2x32xf32>
    %cst_88 = arith.constant dense<0.000000e+00> : vector<2x128xf32>
    %349 = tpu.matmul %348, %9, %cst_88 {dimension_numbers = #tpu.dot_dimension_numbers<[1], [0], [0], [1], [0, 0, 1, 1], [], []>} : vector<2x32xf32>, vector<32x128xf32>, vector<2x128xf32> -> vector<2x128xf32>
    %350 = vector.extract_strided_slice %344 {offsets = [0, 0], sizes = [2, 64], strides = [1, 1]} : vector<2x128xf32> to vector<2x64xf32>
    %351 = vector.extract_strided_slice %349 {offsets = [0, 0], sizes = [2, 64], strides = [1, 1]} : vector<2x128xf32> to vector<2x64xf32>
    %352 = arith.addf %350, %351 : vector<2x64xf32>
    %353 = vector.extract_strided_slice %352 {offsets = [0, 0], sizes = [2, 48], strides = [1, 1]} : vector<2x64xf32> to vector<2x48xf32>
    %354 = arith.negf %353 : vector<2x48xf32>
    %355 = math.exp %354 : vector<2x48xf32>
    %cst_89 = arith.constant 1.000000e+00 : f32
    %356 = vector.broadcast %cst_89 : f32 to vector<2x48xf32>
    %357 = arith.addf %356, %355 : vector<2x48xf32>
    %358 = arith.divf %356, %357 : vector<2x48xf32>
    %359 = vector.extract_strided_slice %352 {offsets = [0, 48], sizes = [2, 16], strides = [1, 1]} : vector<2x64xf32> to vector<2x16xf32>
    %360 = math.tanh %359 : vector<2x16xf32>
    %361 = vector.extract_strided_slice %358 {offsets = [0, 0], sizes = [2, 16], strides = [1, 1]} : vector<2x48xf32> to vector<2x16xf32>
    %362 = vector.extract_strided_slice %358 {offsets = [0, 16], sizes = [2, 16], strides = [1, 1]} : vector<2x48xf32> to vector<2x16xf32>
    %363 = vector.extract_strided_slice %358 {offsets = [0, 32], sizes = [2, 16], strides = [1, 1]} : vector<2x48xf32> to vector<2x16xf32>
    %364 = arith.mulf %362, %311 : vector<2x16xf32>
    %365 = arith.mulf %361, %360 : vector<2x16xf32>
    %366 = arith.addf %364, %365 : vector<2x16xf32>
    %367 = math.tanh %366 : vector<2x16xf32>
    %368 = arith.mulf %363, %367 : vector<2x16xf32>
    %369 = vector.extract_strided_slice %347 {offsets = [0, 64], sizes = [2, 64], strides = [1, 1]} : vector<2x128xf32> to vector<2x64xf32>
    %370 = vector.extract_strided_slice %349 {offsets = [0, 64], sizes = [2, 64], strides = [1, 1]} : vector<2x128xf32> to vector<2x64xf32>
    %371 = arith.addf %369, %370 : vector<2x64xf32>
    %372 = vector.extract_strided_slice %371 {offsets = [0, 0], sizes = [2, 48], strides = [1, 1]} : vector<2x64xf32> to vector<2x48xf32>
    %373 = arith.negf %372 : vector<2x48xf32>
    %374 = math.exp %373 : vector<2x48xf32>
    %cst_90 = arith.constant 1.000000e+00 : f32
    %375 = vector.broadcast %cst_90 : f32 to vector<2x48xf32>
    %376 = arith.addf %375, %374 : vector<2x48xf32>
    %377 = arith.divf %375, %376 : vector<2x48xf32>
    %378 = vector.extract_strided_slice %371 {offsets = [0, 48], sizes = [2, 16], strides = [1, 1]} : vector<2x64xf32> to vector<2x16xf32>
    %379 = math.tanh %378 : vector<2x16xf32>
    %380 = vector.extract_strided_slice %377 {offsets = [0, 0], sizes = [2, 16], strides = [1, 1]} : vector<2x48xf32> to vector<2x16xf32>
    %381 = vector.extract_strided_slice %377 {offsets = [0, 16], sizes = [2, 16], strides = [1, 1]} : vector<2x48xf32> to vector<2x16xf32>
    %382 = vector.extract_strided_slice %377 {offsets = [0, 32], sizes = [2, 16], strides = [1, 1]} : vector<2x48xf32> to vector<2x16xf32>
    %383 = arith.mulf %381, %330 : vector<2x16xf32>
    %384 = arith.mulf %380, %379 : vector<2x16xf32>
    %385 = arith.addf %383, %384 : vector<2x16xf32>
    %386 = math.tanh %385 : vector<2x16xf32>
    %387 = arith.mulf %382, %386 : vector<2x16xf32>
    %388 = arith.index_cast %c6_i32 : i32 to index
    %c0_91 = arith.constant 0 : index
    %c0_92 = arith.constant 0 : index
    %389 = vector.load %arg13[%388, %c0_91, %c0_92] : memref<8x2x16xf32, #tpu.memory_space<vmem>>, vector<1x2x16xf32>
    %390 = vector.shape_cast %389 : vector<1x2x16xf32> to vector<2x16xf32>
    %391 = vector.shape_cast %368 : vector<2x16xf32> to vector<1x2x16xf32>
    tpu.vector_store %arg13[%388, %c0_91, %c0_92], %391 {strides = array<i32>} : memref<8x2x16xf32, #tpu.memory_space<vmem>>, vector<1x2x16xf32>,
    %392 = arith.index_cast %341 : i32 to index
    %c0_93 = arith.constant 0 : index
    %c0_94 = arith.constant 0 : index
    %393 = vector.load %arg14[%392, %c0_93, %c0_94] : memref<8x2x16xf32, #tpu.memory_space<vmem>>, vector<1x2x16xf32>
    %394 = vector.shape_cast %393 : vector<1x2x16xf32> to vector<2x16xf32>
    %395 = vector.shape_cast %387 : vector<2x16xf32> to vector<1x2x16xf32>
    tpu.vector_store %arg14[%392, %c0_93, %c0_94], %395 {strides = array<i32>} : memref<8x2x16xf32, #tpu.memory_space<vmem>>, vector<1x2x16xf32>,
    %c7_i32_95 = arith.constant 7 : i32
    %c7_i32_96 = arith.constant 7 : i32
    %396 = arith.subi %c7_i32_96, %c7_i32_95 : i32
    %397 = arith.index_cast %c7_i32_95 : i32 to index
    %c0_97 = arith.constant 0 : index
    %c0_98 = arith.constant 0 : index
    %398 = vector.load %arg12[%397, %c0_97, %c0_98] : memref<8x2x128xf32, #tpu.memory_space<vmem>>, vector<1x2x128xf32>
    %399 = vector.shape_cast %398 : vector<1x2x128xf32> to vector<2x128xf32>
    %400 = arith.index_cast %396 : i32 to index
    %c0_99 = arith.constant 0 : index
    %c0_100 = arith.constant 0 : index
    %401 = vector.load %arg12[%400, %c0_99, %c0_100] : memref<8x2x128xf32, #tpu.memory_space<vmem>>, vector<1x2x128xf32>
    %402 = vector.shape_cast %401 : vector<1x2x128xf32> to vector<2x128xf32>
    %403 = tpu.concatenate %368, %387 in 1 : vector<2x16xf32>, vector<2x16xf32> -> vector<2x32xf32>
    %cst_101 = arith.constant dense<0.000000e+00> : vector<2x128xf32>
    %404 = tpu.matmul %403, %9, %cst_101 {dimension_numbers = #tpu.dot_dimension_numbers<[1], [0], [0], [1], [0, 0, 1, 1], [], []>} : vector<2x32xf32>, vector<32x128xf32>, vector<2x128xf32> -> vector<2x128xf32>
    %405 = vector.extract_strided_slice %399 {offsets = [0, 0], sizes = [2, 64], strides = [1, 1]} : vector<2x128xf32> to vector<2x64xf32>
    %406 = vector.extract_strided_slice %404 {offsets = [0, 0], sizes = [2, 64], strides = [1, 1]} : vector<2x128xf32> to vector<2x64xf32>
    %407 = arith.addf %405, %406 : vector<2x64xf32>
    %408 = vector.extract_strided_slice %407 {offsets = [0, 0], sizes = [2, 48], strides = [1, 1]} : vector<2x64xf32> to vector<2x48xf32>
    %409 = arith.negf %408 : vector<2x48xf32>
    %410 = math.exp %409 : vector<2x48xf32>
    %cst_102 = arith.constant 1.000000e+00 : f32
    %411 = vector.broadcast %cst_102 : f32 to vector<2x48xf32>
    %412 = arith.addf %411, %410 : vector<2x48xf32>
    %413 = arith.divf %411, %412 : vector<2x48xf32>
    %414 = vector.extract_strided_slice %407 {offsets = [0, 48], sizes = [2, 16], strides = [1, 1]} : vector<2x64xf32> to vector<2x16xf32>
    %415 = math.tanh %414 : vector<2x16xf32>
    %416 = vector.extract_strided_slice %413 {offsets = [0, 0], sizes = [2, 16], strides = [1, 1]} : vector<2x48xf32> to vector<2x16xf32>
    %417 = vector.extract_strided_slice %413 {offsets = [0, 16], sizes = [2, 16], strides = [1, 1]} : vector<2x48xf32> to vector<2x16xf32>
    %418 = vector.extract_strided_slice %413 {offsets = [0, 32], sizes = [2, 16], strides = [1, 1]} : vector<2x48xf32> to vector<2x16xf32>
    %419 = arith.mulf %417, %366 : vector<2x16xf32>
    %420 = arith.mulf %416, %415 : vector<2x16xf32>
    %421 = arith.addf %419, %420 : vector<2x16xf32>
    %422 = math.tanh %421 : vector<2x16xf32>
    %423 = arith.mulf %418, %422 : vector<2x16xf32>
    %424 = vector.extract_strided_slice %402 {offsets = [0, 64], sizes = [2, 64], strides = [1, 1]} : vector<2x128xf32> to vector<2x64xf32>
    %425 = vector.extract_strided_slice %404 {offsets = [0, 64], sizes = [2, 64], strides = [1, 1]} : vector<2x128xf32> to vector<2x64xf32>
    %426 = arith.addf %424, %425 : vector<2x64xf32>
    %427 = vector.extract_strided_slice %426 {offsets = [0, 0], sizes = [2, 48], strides = [1, 1]} : vector<2x64xf32> to vector<2x48xf32>
    %428 = arith.negf %427 : vector<2x48xf32>
    %429 = math.exp %428 : vector<2x48xf32>
    %cst_103 = arith.constant 1.000000e+00 : f32
    %430 = vector.broadcast %cst_103 : f32 to vector<2x48xf32>
    %431 = arith.addf %430, %429 : vector<2x48xf32>
    %432 = arith.divf %430, %431 : vector<2x48xf32>
    %433 = vector.extract_strided_slice %426 {offsets = [0, 48], sizes = [2, 16], strides = [1, 1]} : vector<2x64xf32> to vector<2x16xf32>
    %434 = math.tanh %433 : vector<2x16xf32>
    %435 = vector.extract_strided_slice %432 {offsets = [0, 0], sizes = [2, 16], strides = [1, 1]} : vector<2x48xf32> to vector<2x16xf32>
    %436 = vector.extract_strided_slice %432 {offsets = [0, 16], sizes = [2, 16], strides = [1, 1]} : vector<2x48xf32> to vector<2x16xf32>
    %437 = vector.extract_strided_slice %432 {offsets = [0, 32], sizes = [2, 16], strides = [1, 1]} : vector<2x48xf32> to vector<2x16xf32>
    %438 = arith.mulf %436, %385 : vector<2x16xf32>
    %439 = arith.mulf %435, %434 : vector<2x16xf32>
    %440 = arith.addf %438, %439 : vector<2x16xf32>
    %441 = math.tanh %440 : vector<2x16xf32>
    %442 = arith.mulf %437, %441 : vector<2x16xf32>
    %443 = arith.index_cast %c7_i32_95 : i32 to index
    %c0_104 = arith.constant 0 : index
    %c0_105 = arith.constant 0 : index
    %444 = vector.load %arg13[%443, %c0_104, %c0_105] : memref<8x2x16xf32, #tpu.memory_space<vmem>>, vector<1x2x16xf32>
    %445 = vector.shape_cast %444 : vector<1x2x16xf32> to vector<2x16xf32>
    %446 = vector.shape_cast %423 : vector<2x16xf32> to vector<1x2x16xf32>
    tpu.vector_store %arg13[%443, %c0_104, %c0_105], %446 {strides = array<i32>} : memref<8x2x16xf32, #tpu.memory_space<vmem>>, vector<1x2x16xf32>,
    %447 = arith.index_cast %396 : i32 to index
    %c0_106 = arith.constant 0 : index
    %c0_107 = arith.constant 0 : index
    %448 = vector.load %arg14[%447, %c0_106, %c0_107] : memref<8x2x16xf32, #tpu.memory_space<vmem>>, vector<1x2x16xf32>
    %449 = vector.shape_cast %448 : vector<1x2x16xf32> to vector<2x16xf32>
    %450 = vector.shape_cast %442 : vector<2x16xf32> to vector<1x2x16xf32>
    tpu.vector_store %arg14[%447, %c0_106, %c0_107], %450 {strides = array<i32>} : memref<8x2x16xf32, #tpu.memory_space<vmem>>, vector<1x2x16xf32>,
    %c8_i32 = arith.constant 8 : i32
    %c0_108 = arith.constant 0 : index
    %c0_109 = arith.constant 0 : index
    %c0_110 = arith.constant 0 : index
    %451 = vector.load %arg13[%c0_108, %c0_109, %c0_110] : memref<8x2x16xf32, #tpu.memory_space<vmem>>, vector<8x2x16xf32>
    %452 = vector.shape_cast %451 : vector<8x2x16xf32> to vector<16x16xf32>
    %c0_111 = arith.constant 0 : index
    %c0_112 = arith.constant 0 : index
    %c0_113 = arith.constant 0 : index
    %453 = vector.load %arg14[%c0_111, %c0_112, %c0_113] : memref<8x2x16xf32, #tpu.memory_space<vmem>>, vector<8x2x16xf32>
    %454 = vector.shape_cast %453 : vector<8x2x16xf32> to vector<16x16xf32>
    %c0_114 = arith.constant 0 : index
    %c0_115 = arith.constant 0 : index
    %455 = vector.load %arg4[%c0_114, %c0_115] : memref<32x128xf32, #tpu.memory_space<vmem>>, vector<16x128xf32>
    %cst_116 = arith.constant dense<0.000000e+00> : vector<16x128xf32>
    %456 = tpu.matmul %452, %455, %cst_116 {dimension_numbers = #tpu.dot_dimension_numbers<[1], [0], [0], [1], [0, 0, 1, 1], [], []>} : vector<16x16xf32>, vector<16x128xf32>, vector<16x128xf32> -> vector<16x128xf32>
    %c16 = arith.constant 16 : index
    %c0_117 = arith.constant 0 : index
    %457 = vector.load %arg4[%c16, %c0_117] : memref<32x128xf32, #tpu.memory_space<vmem>>, vector<16x128xf32>
    %cst_118 = arith.constant dense<0.000000e+00> : vector<16x128xf32>
    %458 = tpu.matmul %454, %457, %cst_118 {dimension_numbers = #tpu.dot_dimension_numbers<[1], [0], [0], [1], [0, 0, 1, 1], [], []>} : vector<16x16xf32>, vector<16x128xf32>, vector<16x128xf32> -> vector<16x128xf32>
    %459 = arith.addf %456, %458 : vector<16x128xf32>
    %c0_119 = arith.constant 0 : index
    %c0_120 = arith.constant 0 : index
    %460 = vector.load %arg6[%c0_119, %c0_120] : memref<1x128xf32, #tpu.memory_space<vmem>>, vector<1x128xf32>
    %461 = vector.broadcast %460 : vector<1x128xf32> to vector<16x128xf32>
    %462 = arith.addf %459, %461 : vector<16x128xf32>
    %463 = vector.shape_cast %462 : vector<16x128xf32> to vector<8x2x128xf32>
    %c0_121 = arith.constant 0 : index
    %c0_122 = arith.constant 0 : index
    %c0_123 = arith.constant 0 : index
    %464 = vector.load %arg12[%c0_121, %c0_122, %c0_123] : memref<8x2x128xf32, #tpu.memory_space<vmem>>, vector<8x2x128xf32>
    tpu.vector_store %arg12[%c0_121, %c0_122, %c0_123], %463 {strides = array<i32>} : memref<8x2x128xf32, #tpu.memory_space<vmem>>, vector<8x2x128xf32>,
    %c0_124 = arith.constant 0 : index
    %c0_125 = arith.constant 0 : index
    %465 = vector.load %arg5[%c0_124, %c0_125] : memref<16x64xf32, #tpu.memory_space<vmem>>, vector<16x64xf32>
    %cst_126 = arith.constant 0.000000e+00 : f32
    %466 = vector.broadcast %cst_126 : f32 to vector<2x16xf32>
    %c0_i32_127 = arith.constant 0 : i32
    %467 = arith.index_cast %c0_i32_127 : i32 to index
    %c0_128 = arith.constant 0 : index
    %c0_129 = arith.constant 0 : index
    %468 = vector.load %arg12[%467, %c0_128, %c0_129] : memref<8x2x128xf32, #tpu.memory_space<vmem>>, vector<1x2x128xf32>
    %469 = vector.shape_cast %468 : vector<1x2x128xf32> to vector<2x128xf32>
    %470 = vector.extract_strided_slice %469 {offsets = [0, 0], sizes = [2, 64], strides = [1, 1]} : vector<2x128xf32> to vector<2x64xf32>
    %cst_130 = arith.constant dense<0.000000e+00> : vector<2x64xf32>
    %471 = tpu.matmul %466, %465, %cst_130 {dimension_numbers = #tpu.dot_dimension_numbers<[1], [0], [0], [1], [0, 0, 1, 1], [], []>} : vector<2x16xf32>, vector<16x64xf32>, vector<2x64xf32> -> vector<2x64xf32>
    %472 = arith.addf %470, %471 : vector<2x64xf32>
    %473 = vector.extract_strided_slice %472 {offsets = [0, 0], sizes = [2, 48], strides = [1, 1]} : vector<2x64xf32> to vector<2x48xf32>
    %474 = arith.negf %473 : vector<2x48xf32>
    %475 = math.exp %474 : vector<2x48xf32>
    %cst_131 = arith.constant 1.000000e+00 : f32
    %476 = vector.broadcast %cst_131 : f32 to vector<2x48xf32>
    %477 = arith.addf %476, %475 : vector<2x48xf32>
    %478 = arith.divf %476, %477 : vector<2x48xf32>
    %479 = vector.extract_strided_slice %472 {offsets = [0, 48], sizes = [2, 16], strides = [1, 1]} : vector<2x64xf32> to vector<2x16xf32>
    %480 = math.tanh %479 : vector<2x16xf32>
    %481 = vector.extract_strided_slice %478 {offsets = [0, 0], sizes = [2, 16], strides = [1, 1]} : vector<2x48xf32> to vector<2x16xf32>
    %482 = vector.extract_strided_slice %478 {offsets = [0, 16], sizes = [2, 16], strides = [1, 1]} : vector<2x48xf32> to vector<2x16xf32>
    %483 = vector.extract_strided_slice %478 {offsets = [0, 32], sizes = [2, 16], strides = [1, 1]} : vector<2x48xf32> to vector<2x16xf32>
    %484 = arith.mulf %482, %466 : vector<2x16xf32>
    %485 = arith.mulf %481, %480 : vector<2x16xf32>
    %486 = arith.addf %484, %485 : vector<2x16xf32>
    %487 = math.tanh %486 : vector<2x16xf32>
    %488 = arith.mulf %483, %487 : vector<2x16xf32>
    %c1_i32_132 = arith.constant 1 : i32
    %489 = arith.index_cast %c1_i32_132 : i32 to index
    %c0_133 = arith.constant 0 : index
    %c0_134 = arith.constant 0 : index
    %490 = vector.load %arg12[%489, %c0_133, %c0_134] : memref<8x2x128xf32, #tpu.memory_space<vmem>>, vector<1x2x128xf32>
    %491 = vector.shape_cast %490 : vector<1x2x128xf32> to vector<2x128xf32>
    %492 = vector.extract_strided_slice %491 {offsets = [0, 0], sizes = [2, 64], strides = [1, 1]} : vector<2x128xf32> to vector<2x64xf32>
    %cst_135 = arith.constant dense<0.000000e+00> : vector<2x64xf32>
    %493 = tpu.matmul %488, %465, %cst_135 {dimension_numbers = #tpu.dot_dimension_numbers<[1], [0], [0], [1], [0, 0, 1, 1], [], []>} : vector<2x16xf32>, vector<16x64xf32>, vector<2x64xf32> -> vector<2x64xf32>
    %494 = arith.addf %492, %493 : vector<2x64xf32>
    %495 = vector.extract_strided_slice %494 {offsets = [0, 0], sizes = [2, 48], strides = [1, 1]} : vector<2x64xf32> to vector<2x48xf32>
    %496 = arith.negf %495 : vector<2x48xf32>
    %497 = math.exp %496 : vector<2x48xf32>
    %cst_136 = arith.constant 1.000000e+00 : f32
    %498 = vector.broadcast %cst_136 : f32 to vector<2x48xf32>
    %499 = arith.addf %498, %497 : vector<2x48xf32>
    %500 = arith.divf %498, %499 : vector<2x48xf32>
    %501 = vector.extract_strided_slice %494 {offsets = [0, 48], sizes = [2, 16], strides = [1, 1]} : vector<2x64xf32> to vector<2x16xf32>
    %502 = math.tanh %501 : vector<2x16xf32>
    %503 = vector.extract_strided_slice %500 {offsets = [0, 0], sizes = [2, 16], strides = [1, 1]} : vector<2x48xf32> to vector<2x16xf32>
    %504 = vector.extract_strided_slice %500 {offsets = [0, 16], sizes = [2, 16], strides = [1, 1]} : vector<2x48xf32> to vector<2x16xf32>
    %505 = vector.extract_strided_slice %500 {offsets = [0, 32], sizes = [2, 16], strides = [1, 1]} : vector<2x48xf32> to vector<2x16xf32>
    %506 = arith.mulf %504, %486 : vector<2x16xf32>
    %507 = arith.mulf %503, %502 : vector<2x16xf32>
    %508 = arith.addf %506, %507 : vector<2x16xf32>
    %509 = math.tanh %508 : vector<2x16xf32>
    %510 = arith.mulf %505, %509 : vector<2x16xf32>
    %c2_i32_137 = arith.constant 2 : i32
    %511 = arith.index_cast %c2_i32_137 : i32 to index
    %c0_138 = arith.constant 0 : index
    %c0_139 = arith.constant 0 : index
    %512 = vector.load %arg12[%511, %c0_138, %c0_139] : memref<8x2x128xf32, #tpu.memory_space<vmem>>, vector<1x2x128xf32>
    %513 = vector.shape_cast %512 : vector<1x2x128xf32> to vector<2x128xf32>
    %514 = vector.extract_strided_slice %513 {offsets = [0, 0], sizes = [2, 64], strides = [1, 1]} : vector<2x128xf32> to vector<2x64xf32>
    %cst_140 = arith.constant dense<0.000000e+00> : vector<2x64xf32>
    %515 = tpu.matmul %510, %465, %cst_140 {dimension_numbers = #tpu.dot_dimension_numbers<[1], [0], [0], [1], [0, 0, 1, 1], [], []>} : vector<2x16xf32>, vector<16x64xf32>, vector<2x64xf32> -> vector<2x64xf32>
    %516 = arith.addf %514, %515 : vector<2x64xf32>
    %517 = vector.extract_strided_slice %516 {offsets = [0, 0], sizes = [2, 48], strides = [1, 1]} : vector<2x64xf32> to vector<2x48xf32>
    %518 = arith.negf %517 : vector<2x48xf32>
    %519 = math.exp %518 : vector<2x48xf32>
    %cst_141 = arith.constant 1.000000e+00 : f32
    %520 = vector.broadcast %cst_141 : f32 to vector<2x48xf32>
    %521 = arith.addf %520, %519 : vector<2x48xf32>
    %522 = arith.divf %520, %521 : vector<2x48xf32>
    %523 = vector.extract_strided_slice %516 {offsets = [0, 48], sizes = [2, 16], strides = [1, 1]} : vector<2x64xf32> to vector<2x16xf32>
    %524 = math.tanh %523 : vector<2x16xf32>
    %525 = vector.extract_strided_slice %522 {offsets = [0, 0], sizes = [2, 16], strides = [1, 1]} : vector<2x48xf32> to vector<2x16xf32>
    %526 = vector.extract_strided_slice %522 {offsets = [0, 16], sizes = [2, 16], strides = [1, 1]} : vector<2x48xf32> to vector<2x16xf32>
    %527 = vector.extract_strided_slice %522 {offsets = [0, 32], sizes = [2, 16], strides = [1, 1]} : vector<2x48xf32> to vector<2x16xf32>
    %528 = arith.mulf %526, %508 : vector<2x16xf32>
    %529 = arith.mulf %525, %524 : vector<2x16xf32>
    %530 = arith.addf %528, %529 : vector<2x16xf32>
    %531 = math.tanh %530 : vector<2x16xf32>
    %532 = arith.mulf %527, %531 : vector<2x16xf32>
    %c3_i32_142 = arith.constant 3 : i32
    %533 = arith.index_cast %c3_i32_142 : i32 to index
    %c0_143 = arith.constant 0 : index
    %c0_144 = arith.constant 0 : index
    %534 = vector.load %arg12[%533, %c0_143, %c0_144] : memref<8x2x128xf32, #tpu.memory_space<vmem>>, vector<1x2x128xf32>
    %535 = vector.shape_cast %534 : vector<1x2x128xf32> to vector<2x128xf32>
    %536 = vector.extract_strided_slice %535 {offsets = [0, 0], sizes = [2, 64], strides = [1, 1]} : vector<2x128xf32> to vector<2x64xf32>
    %cst_145 = arith.constant dense<0.000000e+00> : vector<2x64xf32>
    %537 = tpu.matmul %532, %465, %cst_145 {dimension_numbers = #tpu.dot_dimension_numbers<[1], [0], [0], [1], [0, 0, 1, 1], [], []>} : vector<2x16xf32>, vector<16x64xf32>, vector<2x64xf32> -> vector<2x64xf32>
    %538 = arith.addf %536, %537 : vector<2x64xf32>
    %539 = vector.extract_strided_slice %538 {offsets = [0, 0], sizes = [2, 48], strides = [1, 1]} : vector<2x64xf32> to vector<2x48xf32>
    %540 = arith.negf %539 : vector<2x48xf32>
    %541 = math.exp %540 : vector<2x48xf32>
    %cst_146 = arith.constant 1.000000e+00 : f32
    %542 = vector.broadcast %cst_146 : f32 to vector<2x48xf32>
    %543 = arith.addf %542, %541 : vector<2x48xf32>
    %544 = arith.divf %542, %543 : vector<2x48xf32>
    %545 = vector.extract_strided_slice %538 {offsets = [0, 48], sizes = [2, 16], strides = [1, 1]} : vector<2x64xf32> to vector<2x16xf32>
    %546 = math.tanh %545 : vector<2x16xf32>
    %547 = vector.extract_strided_slice %544 {offsets = [0, 0], sizes = [2, 16], strides = [1, 1]} : vector<2x48xf32> to vector<2x16xf32>
    %548 = vector.extract_strided_slice %544 {offsets = [0, 16], sizes = [2, 16], strides = [1, 1]} : vector<2x48xf32> to vector<2x16xf32>
    %549 = vector.extract_strided_slice %544 {offsets = [0, 32], sizes = [2, 16], strides = [1, 1]} : vector<2x48xf32> to vector<2x16xf32>
    %550 = arith.mulf %548, %530 : vector<2x16xf32>
    %551 = arith.mulf %547, %546 : vector<2x16xf32>
    %552 = arith.addf %550, %551 : vector<2x16xf32>
    %553 = math.tanh %552 : vector<2x16xf32>
    %554 = arith.mulf %549, %553 : vector<2x16xf32>
    %c4_i32_147 = arith.constant 4 : i32
    %555 = arith.index_cast %c4_i32_147 : i32 to index
    %c0_148 = arith.constant 0 : index
    %c0_149 = arith.constant 0 : index
    %556 = vector.load %arg12[%555, %c0_148, %c0_149] : memref<8x2x128xf32, #tpu.memory_space<vmem>>, vector<1x2x128xf32>
    %557 = vector.shape_cast %556 : vector<1x2x128xf32> to vector<2x128xf32>
    %558 = vector.extract_strided_slice %557 {offsets = [0, 0], sizes = [2, 64], strides = [1, 1]} : vector<2x128xf32> to vector<2x64xf32>
    %cst_150 = arith.constant dense<0.000000e+00> : vector<2x64xf32>
    %559 = tpu.matmul %554, %465, %cst_150 {dimension_numbers = #tpu.dot_dimension_numbers<[1], [0], [0], [1], [0, 0, 1, 1], [], []>} : vector<2x16xf32>, vector<16x64xf32>, vector<2x64xf32> -> vector<2x64xf32>
    %560 = arith.addf %558, %559 : vector<2x64xf32>
    %561 = vector.extract_strided_slice %560 {offsets = [0, 0], sizes = [2, 48], strides = [1, 1]} : vector<2x64xf32> to vector<2x48xf32>
    %562 = arith.negf %561 : vector<2x48xf32>
    %563 = math.exp %562 : vector<2x48xf32>
    %cst_151 = arith.constant 1.000000e+00 : f32
    %564 = vector.broadcast %cst_151 : f32 to vector<2x48xf32>
    %565 = arith.addf %564, %563 : vector<2x48xf32>
    %566 = arith.divf %564, %565 : vector<2x48xf32>
    %567 = vector.extract_strided_slice %560 {offsets = [0, 48], sizes = [2, 16], strides = [1, 1]} : vector<2x64xf32> to vector<2x16xf32>
    %568 = math.tanh %567 : vector<2x16xf32>
    %569 = vector.extract_strided_slice %566 {offsets = [0, 0], sizes = [2, 16], strides = [1, 1]} : vector<2x48xf32> to vector<2x16xf32>
    %570 = vector.extract_strided_slice %566 {offsets = [0, 16], sizes = [2, 16], strides = [1, 1]} : vector<2x48xf32> to vector<2x16xf32>
    %571 = vector.extract_strided_slice %566 {offsets = [0, 32], sizes = [2, 16], strides = [1, 1]} : vector<2x48xf32> to vector<2x16xf32>
    %572 = arith.mulf %570, %552 : vector<2x16xf32>
    %573 = arith.mulf %569, %568 : vector<2x16xf32>
    %574 = arith.addf %572, %573 : vector<2x16xf32>
    %575 = math.tanh %574 : vector<2x16xf32>
    %576 = arith.mulf %571, %575 : vector<2x16xf32>
    %c5_i32_152 = arith.constant 5 : i32
    %577 = arith.index_cast %c5_i32_152 : i32 to index
    %c0_153 = arith.constant 0 : index
    %c0_154 = arith.constant 0 : index
    %578 = vector.load %arg12[%577, %c0_153, %c0_154] : memref<8x2x128xf32, #tpu.memory_space<vmem>>, vector<1x2x128xf32>
    %579 = vector.shape_cast %578 : vector<1x2x128xf32> to vector<2x128xf32>
    %580 = vector.extract_strided_slice %579 {offsets = [0, 0], sizes = [2, 64], strides = [1, 1]} : vector<2x128xf32> to vector<2x64xf32>
    %cst_155 = arith.constant dense<0.000000e+00> : vector<2x64xf32>
    %581 = tpu.matmul %576, %465, %cst_155 {dimension_numbers = #tpu.dot_dimension_numbers<[1], [0], [0], [1], [0, 0, 1, 1], [], []>} : vector<2x16xf32>, vector<16x64xf32>, vector<2x64xf32> -> vector<2x64xf32>
    %582 = arith.addf %580, %581 : vector<2x64xf32>
    %583 = vector.extract_strided_slice %582 {offsets = [0, 0], sizes = [2, 48], strides = [1, 1]} : vector<2x64xf32> to vector<2x48xf32>
    %584 = arith.negf %583 : vector<2x48xf32>
    %585 = math.exp %584 : vector<2x48xf32>
    %cst_156 = arith.constant 1.000000e+00 : f32
    %586 = vector.broadcast %cst_156 : f32 to vector<2x48xf32>
    %587 = arith.addf %586, %585 : vector<2x48xf32>
    %588 = arith.divf %586, %587 : vector<2x48xf32>
    %589 = vector.extract_strided_slice %582 {offsets = [0, 48], sizes = [2, 16], strides = [1, 1]} : vector<2x64xf32> to vector<2x16xf32>
    %590 = math.tanh %589 : vector<2x16xf32>
    %591 = vector.extract_strided_slice %588 {offsets = [0, 0], sizes = [2, 16], strides = [1, 1]} : vector<2x48xf32> to vector<2x16xf32>
    %592 = vector.extract_strided_slice %588 {offsets = [0, 16], sizes = [2, 16], strides = [1, 1]} : vector<2x48xf32> to vector<2x16xf32>
    %593 = vector.extract_strided_slice %588 {offsets = [0, 32], sizes = [2, 16], strides = [1, 1]} : vector<2x48xf32> to vector<2x16xf32>
    %594 = arith.mulf %592, %574 : vector<2x16xf32>
    %595 = arith.mulf %591, %590 : vector<2x16xf32>
    %596 = arith.addf %594, %595 : vector<2x16xf32>
    %597 = math.tanh %596 : vector<2x16xf32>
    %598 = arith.mulf %593, %597 : vector<2x16xf32>
    %c6_i32_157 = arith.constant 6 : i32
    %599 = arith.index_cast %c6_i32_157 : i32 to index
    %c0_158 = arith.constant 0 : index
    %c0_159 = arith.constant 0 : index
    %600 = vector.load %arg12[%599, %c0_158, %c0_159] : memref<8x2x128xf32, #tpu.memory_space<vmem>>, vector<1x2x128xf32>
    %601 = vector.shape_cast %600 : vector<1x2x128xf32> to vector<2x128xf32>
    %602 = vector.extract_strided_slice %601 {offsets = [0, 0], sizes = [2, 64], strides = [1, 1]} : vector<2x128xf32> to vector<2x64xf32>
    %cst_160 = arith.constant dense<0.000000e+00> : vector<2x64xf32>
    %603 = tpu.matmul %598, %465, %cst_160 {dimension_numbers = #tpu.dot_dimension_numbers<[1], [0], [0], [1], [0, 0, 1, 1], [], []>} : vector<2x16xf32>, vector<16x64xf32>, vector<2x64xf32> -> vector<2x64xf32>
    %604 = arith.addf %602, %603 : vector<2x64xf32>
    %605 = vector.extract_strided_slice %604 {offsets = [0, 0], sizes = [2, 48], strides = [1, 1]} : vector<2x64xf32> to vector<2x48xf32>
    %606 = arith.negf %605 : vector<2x48xf32>
    %607 = math.exp %606 : vector<2x48xf32>
    %cst_161 = arith.constant 1.000000e+00 : f32
    %608 = vector.broadcast %cst_161 : f32 to vector<2x48xf32>
    %609 = arith.addf %608, %607 : vector<2x48xf32>
    %610 = arith.divf %608, %609 : vector<2x48xf32>
    %611 = vector.extract_strided_slice %604 {offsets = [0, 48], sizes = [2, 16], strides = [1, 1]} : vector<2x64xf32> to vector<2x16xf32>
    %612 = math.tanh %611 : vector<2x16xf32>
    %613 = vector.extract_strided_slice %610 {offsets = [0, 0], sizes = [2, 16], strides = [1, 1]} : vector<2x48xf32> to vector<2x16xf32>
    %614 = vector.extract_strided_slice %610 {offsets = [0, 16], sizes = [2, 16], strides = [1, 1]} : vector<2x48xf32> to vector<2x16xf32>
    %615 = vector.extract_strided_slice %610 {offsets = [0, 32], sizes = [2, 16], strides = [1, 1]} : vector<2x48xf32> to vector<2x16xf32>
    %616 = arith.mulf %614, %596 : vector<2x16xf32>
    %617 = arith.mulf %613, %612 : vector<2x16xf32>
    %618 = arith.addf %616, %617 : vector<2x16xf32>
    %619 = math.tanh %618 : vector<2x16xf32>
    %620 = arith.mulf %615, %619 : vector<2x16xf32>
    %c7_i32_162 = arith.constant 7 : i32
    %621 = arith.index_cast %c7_i32_162 : i32 to index
    %c0_163 = arith.constant 0 : index
    %c0_164 = arith.constant 0 : index
    %622 = vector.load %arg12[%621, %c0_163, %c0_164] : memref<8x2x128xf32, #tpu.memory_space<vmem>>, vector<1x2x128xf32>
    %623 = vector.shape_cast %622 : vector<1x2x128xf32> to vector<2x128xf32>
    %624 = vector.extract_strided_slice %623 {offsets = [0, 0], sizes = [2, 64], strides = [1, 1]} : vector<2x128xf32> to vector<2x64xf32>
    %cst_165 = arith.constant dense<0.000000e+00> : vector<2x64xf32>
    %625 = tpu.matmul %620, %465, %cst_165 {dimension_numbers = #tpu.dot_dimension_numbers<[1], [0], [0], [1], [0, 0, 1, 1], [], []>} : vector<2x16xf32>, vector<16x64xf32>, vector<2x64xf32> -> vector<2x64xf32>
    %626 = arith.addf %624, %625 : vector<2x64xf32>
    %627 = vector.extract_strided_slice %626 {offsets = [0, 0], sizes = [2, 48], strides = [1, 1]} : vector<2x64xf32> to vector<2x48xf32>
    %628 = arith.negf %627 : vector<2x48xf32>
    %629 = math.exp %628 : vector<2x48xf32>
    %cst_166 = arith.constant 1.000000e+00 : f32
    %630 = vector.broadcast %cst_166 : f32 to vector<2x48xf32>
    %631 = arith.addf %630, %629 : vector<2x48xf32>
    %632 = arith.divf %630, %631 : vector<2x48xf32>
    %633 = vector.extract_strided_slice %626 {offsets = [0, 48], sizes = [2, 16], strides = [1, 1]} : vector<2x64xf32> to vector<2x16xf32>
    %634 = math.tanh %633 : vector<2x16xf32>
    %635 = vector.extract_strided_slice %632 {offsets = [0, 0], sizes = [2, 16], strides = [1, 1]} : vector<2x48xf32> to vector<2x16xf32>
    %636 = vector.extract_strided_slice %632 {offsets = [0, 16], sizes = [2, 16], strides = [1, 1]} : vector<2x48xf32> to vector<2x16xf32>
    %637 = vector.extract_strided_slice %632 {offsets = [0, 32], sizes = [2, 16], strides = [1, 1]} : vector<2x48xf32> to vector<2x16xf32>
    %638 = arith.mulf %636, %618 : vector<2x16xf32>
    %639 = arith.mulf %635, %634 : vector<2x16xf32>
    %640 = arith.addf %638, %639 : vector<2x16xf32>
    %641 = math.tanh %640 : vector<2x16xf32>
    %642 = arith.mulf %637, %641 : vector<2x16xf32>
    %c8_i32_167 = arith.constant 8 : i32
    %c7 = arith.constant 7 : index
    %c0_168 = arith.constant 0 : index
    %c0_169 = arith.constant 0 : index
    %643 = vector.load %arg12[%c7, %c0_168, %c0_169] : memref<8x2x128xf32, #tpu.memory_space<vmem>>, vector<1x2x128xf32>
    %644 = vector.shape_cast %643 : vector<1x2x128xf32> to vector<2x128xf32>
    %645 = vector.extract_strided_slice %644 {offsets = [0, 64], sizes = [2, 64], strides = [1, 1]} : vector<2x128xf32> to vector<2x64xf32>
    %646 = vector.extract_strided_slice %645 {offsets = [0, 0], sizes = [2, 48], strides = [1, 1]} : vector<2x64xf32> to vector<2x48xf32>
    %647 = arith.negf %646 : vector<2x48xf32>
    %648 = math.exp %647 : vector<2x48xf32>
    %cst_170 = arith.constant 1.000000e+00 : f32
    %649 = vector.broadcast %cst_170 : f32 to vector<2x48xf32>
    %650 = arith.addf %649, %648 : vector<2x48xf32>
    %651 = arith.divf %649, %650 : vector<2x48xf32>
    %652 = vector.extract_strided_slice %645 {offsets = [0, 48], sizes = [2, 16], strides = [1, 1]} : vector<2x64xf32> to vector<2x16xf32>
    %653 = math.tanh %652 : vector<2x16xf32>
    %654 = vector.extract_strided_slice %651 {offsets = [0, 0], sizes = [2, 16], strides = [1, 1]} : vector<2x48xf32> to vector<2x16xf32>
    %655 = vector.extract_strided_slice %651 {offsets = [0, 16], sizes = [2, 16], strides = [1, 1]} : vector<2x48xf32> to vector<2x16xf32>
    %656 = vector.extract_strided_slice %651 {offsets = [0, 32], sizes = [2, 16], strides = [1, 1]} : vector<2x48xf32> to vector<2x16xf32>
    %657 = arith.mulf %655, %466 : vector<2x16xf32>
    %658 = arith.mulf %654, %653 : vector<2x16xf32>
    %659 = arith.addf %657, %658 : vector<2x16xf32>
    %660 = math.tanh %659 : vector<2x16xf32>
    %661 = arith.mulf %656, %660 : vector<2x16xf32>
    %662 = tpu.concatenate %642, %661 in 1 : vector<2x16xf32>, vector<2x16xf32> -> vector<2x32xf32>
    %c0_171 = arith.constant 0 : index
    %c0_172 = arith.constant 0 : index
    %663 = vector.load %arg7[%c0_171, %c0_172] : memref<32x4xf32, #tpu.memory_space<vmem>>, vector<32x4xf32>
    %cst_173 = arith.constant dense<0.000000e+00> : vector<2x4xf32>
    %664 = tpu.matmul %662, %663, %cst_173 {dimension_numbers = #tpu.dot_dimension_numbers<[1], [0], [0], [1], [0, 0, 1, 1], [], []>} : vector<2x32xf32>, vector<32x4xf32>, vector<2x4xf32> -> vector<2x4xf32>
    %c0_174 = arith.constant 0 : index
    %c0_175 = arith.constant 0 : index
    %665 = vector.load %arg8[%c0_174, %c0_175] : memref<1x4xf32, #tpu.memory_space<vmem>>, vector<1x4xf32>
    %666 = vector.broadcast %665 : vector<1x4xf32> to vector<2x4xf32>
    %667 = arith.addf %664, %666 : vector<2x4xf32>
    %c0_176 = arith.constant 0 : index
    %c0_177 = arith.constant 0 : index
    %668 = vector.load %arg10[%c0_176, %c0_177] : memref<2x4xf32, #tpu.memory_space<vmem>>, vector<2x4xf32>
    tpu.vector_store %arg10[%c0_176, %c0_177], %667 {strides = array<i32>} : memref<2x4xf32, #tpu.memory_space<vmem>>, vector<2x4xf32>,
    %cst_178 = arith.constant dense<0xFF800000> : vector<2xf32>
    %669 = vector.multi_reduction <maximumf>, %667, %cst_178 [1] : vector<2x4xf32> to vector<2xf32>
    %670 = vector.shape_cast %669 : vector<2xf32> to vector<2x1xf32>
    %671 = vector.broadcast %670 : vector<2x1xf32> to vector<2x4xf32>
    %672 = arith.subf %667, %671 : vector<2x4xf32>
    %673 = math.exp %672 : vector<2x4xf32>
    %cst_179 = arith.constant dense<0.000000e+00> : vector<2xf32>
    %674 = vector.multi_reduction <add>, %673, %cst_179 [1] : vector<2x4xf32> to vector<2xf32>
    %675 = vector.shape_cast %674 : vector<2xf32> to vector<2x1xf32>
    %676 = math.log %675 : vector<2x1xf32>
    %677 = arith.addf %670, %676 : vector<2x1xf32>
    %c0_180 = arith.constant 0 : index
    %c0_181 = arith.constant 0 : index
    %678 = vector.load %arg9[%c0_180, %c0_181] : memref<2x1xi32, #tpu.memory_space<vmem>>, vector<2x1xi32>
    %679 = tpu.iota {dimensions = array<i32: 1>} : vector<2x4xi32>
    %680 = vector.broadcast %678 : vector<2x1xi32> to vector<2x4xi32>
    %681 = arith.cmpi eq, %679, %680 : vector<2x4xi32>
    %cst_182 = arith.constant 0.000000e+00 : f32
    %682 = vector.broadcast %cst_182 : f32 to vector<2x4xf32>
    %683 = arith.select %681, %667, %682 : vector<2x4xi1>, vector<2x4xf32>
    %cst_183 = arith.constant dense<0.000000e+00> : vector<2xf32>
    %684 = vector.multi_reduction <add>, %683, %cst_183 [1] : vector<2x4xf32> to vector<2xf32>
    %685 = vector.shape_cast %684 : vector<2xf32> to vector<2x1xf32>
    %686 = arith.subf %677, %685 : vector<2x1xf32>
    %cst_184 = arith.constant dense<0.000000e+00> : vector<1xf32>
    %687 = vector.multi_reduction <add>, %686, %cst_184 [0] : vector<2x1xf32> to vector<1xf32>
    %688 = vector.shape_cast %687 : vector<1xf32> to vector<1x1xf32>
    %cst_185 = arith.constant 2.000000e+00 : f32
    %689 = vector.broadcast %cst_185 : f32 to vector<1x1xf32>
    %690 = arith.divf %688, %689 : vector<1x1xf32>
    %c0_186 = arith.constant 0 : index
    %c0_187 = arith.constant 0 : index
    %691 = vector.load %arg11[%c0_186, %c0_187] : memref<1x1xf32, #tpu.memory_space<vmem>>, vector<1x1xf32>
    tpu.vector_store %arg11[%c0_186, %c0_187], %690 {strides = array<i32>} : memref<1x1xf32, #tpu.memory_space<vmem>>, vector<1x1xf32>,
    return
  }
}

</mosaic_0001>

<llo_original>
// kernel: tpu_custom_call.1
$region0: #{tpu_custom_call.1}
  #allocation0 [shape = 'u32[]', space=smem, size = 0x4, offset = 0x4, fixed_abs, tag = 'smem constant byte address 0x4 - core index']
  #allocation1 [shape = 'u32[144,128]{1,0:T(1,128)}', space=vmem, size = 0x12000, scoped, tag = 'internal scratch']
  #allocation2 [shape = 'f32[8,2,128]{2,1,0:T(2,128)}', space=vmem, size = 0x2000, scoped, tag = 'scratch operand']
  #allocation3 [shape = 'f32[8,2,16]{2,1,0:T(2,128)}', space=vmem, size = 0x2000, scoped, tag = 'scratch operand']
  #allocation4 [shape = 'f32[8,2,16]{2,1,0:T(2,128)}', space=vmem, size = 0x2000, scoped, tag = 'scratch operand']
  %s0 = inlined_call_operand.hbm [shape: f32[8,2,300], index: 0, kind: input, shape index: {}]
  %s1 = inlined_call_operand.hbm [shape: f32[300,128], index: 1, kind: input, shape index: {}]
  %s2 = inlined_call_operand.vmem [shape: f32[32,128], index: 2, kind: input, shape index: {}]
  %s3 = inlined_call_operand.vmem [shape: f32[1,128], index: 3, kind: input, shape index: {}]
  %s4 = inlined_call_operand.hbm [shape: f32[32,128], index: 4, kind: input, shape index: {}]
  %s5 = inlined_call_operand.vmem [shape: f32[16,64], index: 5, kind: input, shape index: {}]
  %s6 = inlined_call_operand.vmem [shape: f32[1,128], index: 6, kind: input, shape index: {}]
  %s7 = inlined_call_operand.vmem [shape: f32[32,4], index: 7, kind: input, shape index: {}]
  %s8 = inlined_call_operand.vmem [shape: f32[1,4], index: 8, kind: input, shape index: {}]
  %s9 = inlined_call_operand.vmem [shape: s32[2,1], index: 9, kind: input, shape index: {}]
  %s10 = inlined_call_operand.hbm [shape: f32[2,4], index: 10, kind: output, shape index: {0}]
  %s11 = inlined_call_operand.hbm [shape: f32[1,1], index: 11, kind: output, shape index: {1}]
  %12 = xla_tuple %s10, %s11
  %s13 = sld [smem:[#allocation0]]
  $region70: #{tpu_custom_call.1} parent=0
    _
  %s15 = ssub.s32 1, %s13
  %s16 = scalar_select 0, %s15, %s13
  $region1: #{tpu_custom_call.1} parent=0
    #allocation5 [shape = 'u8[24576]{0}', space=vmem, size = 0x6000, scoped, tag = 'input window, operand 0, single buffered']
    #allocation6 [shape = 's32[1]{0}', space=sflag, size = 0x4, scoped, tag = 'scoped memory for tpu_custom_call.1']
    #allocation7 [shape = 's32[1]{0}', space=sflag, size = 0x4, scoped, tag = 'scoped memory for tpu_custom_call.1']
    #allocation8 [shape = 'u8[155648]{0}', space=vmem, size = 0x26000, scoped, tag = 'input window, operand 1, single buffered']
    #allocation9 [shape = 's32[1]{0}', space=sflag, size = 0x4, scoped, tag = 'scoped memory for tpu_custom_call.1']
    #allocation10 [shape = 'u8[16384]{0}', space=vmem, size = 0x4000, scoped, tag = 'input window, operand 4, single buffered']
    #allocation11 [shape = 'u8[1024]{0}', space=vmem, size = 0x400, scoped, tag = 'output window, operand 0, single buffered']
    #allocation12 [shape = 'u8[512]{0}', space=vmem, size = 0x400, scoped, tag = 'output window, operand 1, single buffered']
    #allocation13 [shape = 's32[1]{0}', space=sflag, size = 0x4, scoped, tag = 'scoped memory for tpu_custom_call.1']
    %17 = vsyncpa [#allocation6], 0
    %18 = vsyncpa [#allocation9], 0
    %19 = vsyncpa [#allocation7], 0
    %20 = vsyncpa [#allocation13], 0
    // Predicated region
    $region2: #{tpu_custom_call.1} parent=1 // pred_check
      _
    $region3: #{tpu_custom_call.1} parent=1 // pred_check_branch
      %22 = sbr.rel (0) target = $region5
    $region4: #{tpu_custom_call.1} parent=1 // pred_region
      %s24 = ssub.s32 768, 768
      %25 = vsyncadd [#allocation6], %s24
      %s26 = sshll.u32 [#allocation5], 4
      %s27 = int_to_ptr.vmem [resolvable:$true] %s26
      %32 = dma.hbm_to_vmem [thread:$0]  %s0, 768, %s27, [#allocation6], 96, 96, 6
    $region5: #{tpu_custom_call.1} parent=1 // pred_fallthru
      _
    // Predicated region
    $region6: #{tpu_custom_call.1} parent=1 // pred_check
      _
    $region7: #{tpu_custom_call.1} parent=1 // pred_check_branch
      %34 = sbr.rel (0) target = $region9
    $region8: #{tpu_custom_call.1} parent=1 // pred_region
      %s36 = ssub.s32 4864, 4864
      %37 = vsyncadd [#allocation9], %s36
      %s38 = sshll.u32 [#allocation8], 4
      %s39 = int_to_ptr.vmem [resolvable:$true] %s38
      %44 = dma.hbm_to_vmem [thread:$0]  %s1, 4864, %s39, [#allocation9], 128, 128, 8
    $region9: #{tpu_custom_call.1} parent=1 // pred_fallthru
      _
    // Predicated region
    $region10: #{tpu_custom_call.1} parent=1 // pred_check
      _
    $region11: #{tpu_custom_call.1} parent=1 // pred_check_branch
      %46 = sbr.rel (0) target = $region13
    $region12: #{tpu_custom_call.1} parent=1 // pred_region
      _
    $region13: #{tpu_custom_call.1} parent=1 // pred_fallthru
      _
    // Predicated region
    $region14: #{tpu_custom_call.1} parent=1 // pred_check
      _
    $region15: #{tpu_custom_call.1} parent=1 // pred_check_branch
      %48 = sbr.rel (0) target = $region17
    $region16: #{tpu_custom_call.1} parent=1 // pred_region
      _
    $region17: #{tpu_custom_call.1} parent=1 // pred_fallthru
      _
    // Predicated region
    $region18: #{tpu_custom_call.1} parent=1 // pred_check
      _
    $region19: #{tpu_custom_call.1} parent=1 // pred_check_branch
      %50 = sbr.rel (0) target = $region21
    $region20: #{tpu_custom_call.1} parent=1 // pred_region
      %s52 = ssub.s32 512, 512
      %53 = vsyncadd [#allocation9], %s52
      %s54 = sshll.u32 [#allocation10], 4
      %s55 = int_to_ptr.vmem [resolvable:$true] %s54
      %60 = dma.hbm_to_vmem [thread:$0]  %s4, 512, %s55, [#allocation9], 128, 128, 8
    $region21: #{tpu_custom_call.1} parent=1 // pred_fallthru
      _
    // Predicated region
    $region22: #{tpu_custom_call.1} parent=1 // pred_check
      _
    $region23: #{tpu_custom_call.1} parent=1 // pred_check_branch
      %62 = sbr.rel (0) target = $region25
    $region24: #{tpu_custom_call.1} parent=1 // pred_region
      _
    $region25: #{tpu_custom_call.1} parent=1 // pred_fallthru
      _
    // Predicated region
    $region26: #{tpu_custom_call.1} parent=1 // pred_check
      _
    $region27: #{tpu_custom_call.1} parent=1 // pred_check_branch
      %64 = sbr.rel (0) target = $region29
    $region28: #{tpu_custom_call.1} parent=1 // pred_region
      _
    $region29: #{tpu_custom_call.1} parent=1 // pred_fallthru
      _
    // Predicated region
    $region30: #{tpu_custom_call.1} parent=1 // pred_check
      _
    $region31: #{tpu_custom_call.1} parent=1 // pred_check_branch
      %66 = sbr.rel (0) target = $region33
    $region32: #{tpu_custom_call.1} parent=1 // pred_region
      _
    $region33: #{tpu_custom_call.1} parent=1 // pred_fallthru
      _
    // Predicated region
    $region34: #{tpu_custom_call.1} parent=1 // pred_check
      _
    $region35: #{tpu_custom_call.1} parent=1 // pred_check_branch
      %68 = sbr.rel (0) target = $region37
    $region36: #{tpu_custom_call.1} parent=1 // pred_region
      _
    $region37: #{tpu_custom_call.1} parent=1 // pred_fallthru
      _
    // Predicated region
    $region38: #{tpu_custom_call.1} parent=1 // pred_check
      _
    $region39: #{tpu_custom_call.1} parent=1 // pred_check_branch
      %70 = sbr.rel (0) target = $region41
    $region40: #{tpu_custom_call.1} parent=1 // pred_region
      _
    $region41: #{tpu_custom_call.1} parent=1 // pred_fallthru
      _
    // Predicated region
    $region42: #{tpu_custom_call.1} parent=1 // pred_check
      _
    $region43: #{tpu_custom_call.1} parent=1 // pred_check_branch
      %72 = sbr.rel (0) target = $region45
    $region44: #{tpu_custom_call.1} parent=1 // pred_region
      %73 = dma.done [#allocation6], 768
    $region45: #{tpu_custom_call.1} parent=1 // pred_fallthru
      _
    // Predicated region
    $region46: #{tpu_custom_call.1} parent=1 // pred_check
      _
    $region47: #{tpu_custom_call.1} parent=1 // pred_check_branch
      %75 = sbr.rel (0) target = $region49
    $region48: #{tpu_custom_call.1} parent=1 // pred_region
      %76 = dma.done [#allocation9], 4864
    $region49: #{tpu_custom_call.1} parent=1 // pred_fallthru
      _
    // Predicated region
    $region50: #{tpu_custom_call.1} parent=1 // pred_check
      _
    $region51: #{tpu_custom_call.1} parent=1 // pred_check_branch
      %78 = sbr.rel (0) target = $region53
    $region52: #{tpu_custom_call.1} parent=1 // pred_region
      %79 = dma.done [#allocation9], 512
    $region53: #{tpu_custom_call.1} parent=1 // pred_fallthru
      _
    %v80 = vld [vmem:[#allocation5] sm:$0x3f]
    %v81 = vld [vmem:[#allocation5 + $0x6] sm:$0x3f]
    %v82 = vld [vmem:[#allocation5 + $0xc] sm:$0x3f]
    %v83 = vld [vmem:[#allocation5 + $0x12] sm:$0x3f]
    %v84 = vld [vmem:[#allocation5 + $0x18] sm:$0x3f]
    %v85 = vld [vmem:[#allocation5 + $0x1e] sm:$0x3f]
    %v86 = vld [vmem:[#allocation5 + $0x24] sm:$0x3f]
    %v87 = vld [vmem:[#allocation5 + $0x2a] sm:$0x3f]
    %v88 = vld [vmem:[#allocation8] sm:$0xff]
    %v89 = vld [vmem:[#allocation8 + $0x8] sm:$0xff]
    %v90 = vld [vmem:[#allocation8 + $0x10] sm:$0xff]
    %v91 = vld [vmem:[#allocation8 + $0x18] sm:$0xff]
    %v92 = vld [vmem:[#allocation8 + $0x20] sm:$0xff]
    %v93 = vld [vmem:[#allocation8 + $0x28] sm:$0xff]
    %v94 = vld [vmem:[#allocation8 + $0x30] sm:$0xff]
    %v95 = vld [vmem:[#allocation8 + $0x38] sm:$0xff]
    %v96 = vld [vmem:[#allocation8 + $0x40] sm:$0xff]
    %v97 = vld [vmem:[#allocation8 + $0x48] sm:$0xff]
    %v98 = vld [vmem:[#allocation8 + $0x50] sm:$0xff]
    %v99 = vld [vmem:[#allocation8 + $0x58] sm:$0xff]
    %v100 = vld [vmem:[#allocation8 + $0x60] sm:$0xff]
    %v101 = vld [vmem:[#allocation8 + $0x68] sm:$0xff]
    %v102 = vld [vmem:[#allocation8 + $0x70] sm:$0xff]
    %v103 = vld [vmem:[#allocation8 + $0x78] sm:$0xff]
    %v104 = vld [vmem:[#allocation8 + $0x80] sm:$0xff]
    %v105 = vld [vmem:[#allocation8 + $0x88] sm:$0xff]
    %v106 = vld [vmem:[#allocation8 + $0x90] sm:$0xff]
    %v107 = vld [vmem:[#allocation8 + $0x98] sm:$0xff]
    %v108 = vld [vmem:[#allocation8 + $0xa0] sm:$0xff]
    %v109 = vld [vmem:[#allocation8 + $0xa8] sm:$0xff]
    %v110 = vld [vmem:[#allocation8 + $0xb0] sm:$0xff]
    %v111 = vld [vmem:[#allocation8 + $0xb8] sm:$0xff]
    %v112 = vld [vmem:[#allocation8 + $0xc0] sm:$0xff]
    %v113 = vld [vmem:[#allocation8 + $0xc8] sm:$0xff]
    %v114 = vld [vmem:[#allocation8 + $0xd0] sm:$0xff]
    %v115 = vld [vmem:[#allocation8 + $0xd8] sm:$0xff]
    %v116 = vld [vmem:[#allocation8 + $0xe0] sm:$0xff]
    %v117 = vld [vmem:[#allocation8 + $0xe8] sm:$0xff]
    %v118 = vld [vmem:[#allocation8 + $0xf0] sm:$0xff]
    %v119 = vld [vmem:[#allocation8 + $0xf8] sm:$0xff]
    %v120 = vld [vmem:[#allocation8 + $0x100] sm:$0xff]
    %v121 = vld [vmem:[#allocation8 + $0x108] sm:$0xff]
    %v122 = vld [vmem:[#allocation8 + $0x110] sm:$0xff]
    %v123 = vld [vmem:[#allocation8 + $0x118] sm:$0xff]
    %v124 = vld [vmem:[#allocation8 + $0x120] sm:$0xff]
    %v125 = vld [vmem:[#allocation8 + $0x128] sm:$0xf]
    %v126 = vld [vmem:[%s3] sm:$0x1]
    %v128 = vlaneseq
    %v129 = vshrl.u32 %v128, 7
    %v130 = vsub.s32 0, %v129
    %v131 = vrot.slane %v126, %v130
    %v141 = vcombine.low %v80, %v81
    %v142 = vcombine.high %v80, %v81
    %v143 = vcombine.low %v82, %v83
    %v144 = vcombine.high %v82, %v83
    %v146 = vunpack.c.l.s4 1983009808
    %v147 = vunpack.c.0.s8 %v146
    %v148 = vlaneseq
    %v149 = vshrl.u32 %v148, 7
    %v150 = vsub.s32 %v147, %v149
    %v151 = vrot.slane %v141, %v150
    %v153 = vunpack.c.l.s4 1983009808
    %v154 = vunpack.c.0.s8 %v153
    %v155 = vlaneseq
    %v156 = vshrl.u32 %v155, 7
    %v157 = vsub.s32 %v154, %v156
    %v158 = vrot.slane %v142, %v157
    %v160 = vunpack.c.l.s4 1983009808
    %v161 = vunpack.c.0.s8 %v160
    %v162 = vlaneseq
    %v163 = vshrl.u32 %v162, 7
    %v164 = vsub.s32 %v161, %v163
    %v165 = vrot.slane %v143, %v164
    %v167 = vunpack.c.l.s4 1983009808
    %v168 = vunpack.c.0.s8 %v167
    %v169 = vlaneseq
    %v170 = vshrl.u32 %v169, 7
    %v171 = vsub.s32 %v168, %v170
    %v172 = vrot.slane %v144, %v171
    %v173 = vcombine.low %v151, %v165
    %v174 = vcombine.high %v151, %v165
    %v175 = vcombine.low %v158, %v172
    %v176 = vcombine.low %v84, %v85
    %v177 = vcombine.high %v84, %v85
    %v178 = vcombine.low %v86, %v87
    %v179 = vcombine.high %v86, %v87
    %v181 = vunpack.c.l.s4 1983009808
    %v182 = vunpack.c.0.s8 %v181
    %v183 = vlaneseq
    %v184 = vshrl.u32 %v183, 7
    %v185 = vsub.s32 %v182, %v184
    %v186 = vrot.slane %v176, %v185
    %v188 = vunpack.c.l.s4 1983009808
    %v189 = vunpack.c.0.s8 %v188
    %v190 = vlaneseq
    %v191 = vshrl.u32 %v190, 7
    %v192 = vsub.s32 %v189, %v191
    %v193 = vrot.slane %v177, %v192
    %v195 = vunpack.c.l.s4 1983009808
    %v196 = vunpack.c.0.s8 %v195
    %v197 = vlaneseq
    %v198 = vshrl.u32 %v197, 7
    %v199 = vsub.s32 %v196, %v198
    %v200 = vrot.slane %v178, %v199
    %v202 = vunpack.c.l.s4 1983009808
    %v203 = vunpack.c.0.s8 %v202
    %v204 = vlaneseq
    %v205 = vshrl.u32 %v204, 7
    %v206 = vsub.s32 %v203, %v205
    %v207 = vrot.slane %v179, %v206
    %v208 = vcombine.low %v186, %v200
    %v209 = vcombine.high %v186, %v200
    %v210 = vcombine.low %v193, %v207
    %vm215 = vcmask 359424
    %v216 = vsel %vm215, %v175, 0
    %v218 = vsel %vm215, %v210, 0
    %vm220 = vcmask 1043456
    %v222 = vsel %vm220, %v125, 0
    %224 = vmatprep.subr.mxu0 0.0
    %225 = vmatpush1.msra.mxu0 %v88
    %226 = vmatprep.subr.mxu0 0.0
    %227 = vmatpush1.msra.mxu0 %v89
    %228 = vmatprep.subr.mxu0 0.0
    %229 = vmatpush1.msra.mxu0 %v90
    %230 = vmatprep.subr.mxu0 0.0
    %231 = vmatpush1.msra.mxu0 %v91
    %232 = vmatprep.subr.mxu0 0.0
    %233 = vmatpush1.msra.mxu0 %v92
    %234 = vmatprep.subr.mxu0 0.0
    %235 = vmatpush1.msra.mxu0 %v93
    %236 = vmatprep.subr.mxu0 0.0
    %237 = vmatpush1.msra.mxu0 %v94
    %238 = vmatprep.subr.mxu0 0.0
    %239 = vmatpush1.msra.mxu0 %v95
    %240 = vmatprep.subr.mxu0 0.0
    %241 = vmatpush1.msra.mxu0 %v96
    %242 = vmatprep.subr.mxu0 0.0
    %243 = vmatpush1.msra.mxu0 %v97
    %244 = vmatprep.subr.mxu0 0.0
    %245 = vmatpush1.msra.mxu0 %v98
    %246 = vmatprep.subr.mxu0 0.0
    %247 = vmatpush1.msra.mxu0 %v99
    %248 = vmatprep.subr.mxu0 0.0
    %249 = vmatpush1.msra.mxu0 %v100
    %250 = vmatprep.subr.mxu0 0.0
    %251 = vmatpush1.msra.mxu0 %v101
    %252 = vmatprep.subr.mxu0 0.0
    %253 = vmatpush1.msra.mxu0 %v102
    %254 = vmatprep.subr.mxu0 0.0
    %255 = vmatpush1.msra.mxu0 %v103
    %256 = vmatprep.subr.mxu0 0.0
    %257 = vmatpush1.msra.mxu0 %v104
    %258 = vmatprep.subr.mxu0 0.0
    %259 = vmatpush1.msra.mxu0 %v105
    %260 = vmatprep.subr.mxu0 0.0
    %261 = vmatpush1.msra.mxu0 %v106
    %262 = vmatprep.subr.mxu0 0.0
    %263 = vmatpush1.msra.mxu0 %v107
    %264 = vmatprep.subr.mxu0 0.0
    %265 = vmatpush1.msra.mxu0 %v108
    %266 = vmatprep.subr.mxu0 0.0
    %267 = vmatpush1.msra.mxu0 %v109
    %268 = vmatprep.subr.mxu0 0.0
    %269 = vmatpush1.msra.mxu0 %v110
    %270 = vmatprep.subr.mxu0 0.0
    %271 = vmatpush1.msra.mxu0 %v111
    %272 = vmatprep.subr.mxu0 0.0
    %273 = vmatpush1.msra.mxu0 %v112
    %274 = vmatprep.subr.mxu0 0.0
    %275 = vmatpush1.msra.mxu0 %v113
    %276 = vmatprep.subr.mxu0 0.0
    %277 = vmatpush1.msra.mxu0 %v114
    %278 = vmatprep.subr.mxu0 0.0
    %279 = vmatpush1.msra.mxu0 %v115
    %280 = vmatprep.subr.mxu0 0.0
    %281 = vmatpush1.msra.mxu0 %v116
    %282 = vmatprep.subr.mxu0 0.0
    %283 = vmatpush1.msra.mxu0 %v117
    %284 = vmatprep.subr.mxu0 0.0
    %285 = vmatpush1.msra.mxu0 %v118
    %286 = vmatprep.subr.mxu0 0.0
    %287 = vmatpush1.msra.mxu0 %v119
    %288 = vmatprep.mubr.f32.mxu0 %v174
    %289 = vmatmul.mubr.f32.gmra.mrb[0].mxu0 %v173
    %v290 = vpop.f32.mrb[0].mxu0
    %v291 = vadd.f32 %v131, %v290
    %v292 = vpop.f32.mrb[0].mxu0
    %293 = vmatprep.mubr.f32.mxu0 %v209
    %294 = vmatmul.mubr.f32.gmra.mrb[0].mxu0 %v208
    %v295 = vpop.f32.mrb[0].mxu0
    %v296 = vadd.f32 %v131, %v295
    %v297 = vpop.f32.mrb[0].mxu0
    %298 = vdwg.mxu0
    %299 = vmatprep.subr.mxu0 0.0
    %300 = vmatpush1.msra.mxu0 %v120
    %301 = vmatprep.subr.mxu0 0.0
    %302 = vmatpush1.msra.mxu0 %v121
    %303 = vmatprep.subr.mxu0 0.0
    %304 = vmatpush1.msra.mxu0 %v122
    %305 = vmatprep.subr.mxu0 0.0
    %306 = vmatpush1.msra.mxu0 %v123
    %307 = vmatprep.subr.mxu0 0.0
    %308 = vmatpush1.msra.mxu0 %v124
    %309 = vmatprep.subr.mxu0 0.0
    %310 = vmatpush1.msra.mxu0 %v222
    %311 = vmatprep.subr.mxu0 0.0
    %312 = vmatpush1.msra.mxu0 0.0
    %313 = vmatprep.subr.mxu0 0.0
    %314 = vmatpush1.msra.mxu0 0.0
    %315 = vmatprep.subr.mxu0 0.0
    %316 = vmatpush1.msra.mxu0 0.0
    %317 = vmatprep.subr.mxu0 0.0
    %318 = vmatpush1.msra.mxu0 0.0
    %319 = vmatprep.subr.mxu0 0.0
    %320 = vmatpush1.msra.mxu0 0.0
    %321 = vmatprep.subr.mxu0 0.0
    %322 = vmatpush1.msra.mxu0 0.0
    %323 = vmatprep.subr.mxu0 0.0
    %324 = vmatpush1.msra.mxu0 0.0
    %325 = vmatprep.subr.mxu0 0.0
    %326 = vmatpush1.msra.mxu0 0.0
    %327 = vmatprep.subr.mxu0 0.0
    %328 = vmatpush1.msra.mxu0 0.0
    %329 = vmatprep.subr.mxu0 0.0
    %330 = vmatpush1.msra.mxu0 0.0
    %331 = vmatprep.subr.mxu0 0.0
    %332 = vmatpush1.msra.mxu0 0.0
    %333 = vmatprep.subr.mxu0 0.0
    %334 = vmatpush1.msra.mxu0 0.0
    %335 = vmatprep.subr.mxu0 0.0
    %336 = vmatpush1.msra.mxu0 0.0
    %337 = vmatprep.subr.mxu0 0.0
    %338 = vmatpush1.msra.mxu0 0.0
    %339 = vmatprep.subr.mxu0 0.0
    %340 = vmatpush1.msra.mxu0 0.0
    %341 = vmatprep.subr.mxu0 0.0
    %342 = vmatpush1.msra.mxu0 0.0
    %343 = vmatprep.subr.mxu0 0.0
    %344 = vmatpush1.msra.mxu0 0.0
    %345 = vmatprep.subr.mxu0 0.0
    %346 = vmatpush1.msra.mxu0 0.0
    %347 = vmatprep.subr.mxu0 0.0
    %348 = vmatpush1.msra.mxu0 0.0
    %349 = vmatprep.subr.mxu0 0.0
    %350 = vmatpush1.msra.mxu0 0.0
    %351 = vmatprep.subr.mxu0 0.0
    %352 = vmatpush1.msra.mxu0 0.0
    %353 = vmatprep.subr.mxu0 0.0
    %354 = vmatpush1.msra.mxu0 0.0
    %355 = vmatprep.subr.mxu0 0.0
    %356 = vmatpush1.msra.mxu0 0.0
    %357 = vmatprep.subr.mxu0 0.0
    %358 = vmatpush1.msra.mxu0 0.0
    %359 = vmatprep.subr.mxu0 0.0
    %360 = vmatpush1.msra.mxu0 0.0
    %361 = vmatprep.subr.mxu0 0.0
    %362 = vmatpush1.msra.mxu0 0.0
    %363 = vmatprep.mubr.f32.mxu0 0.0
    %364 = vmatmul.mubr.f32.gmra.mrb[0].mxu0 %v216
    %v365 = vpop.f32.mrb[0].mxu0
    %v366 = vadd.f32 %v291, %v365
    %v367 = vpop.f32.mrb[0].mxu0
    %368 = vmatprep.mubr.f32.mxu0 0.0
    %369 = vmatmul.mubr.f32.gmra.mrb[0].mxu0 %v218
    %v370 = vpop.f32.mrb[0].mxu0
    %v371 = vadd.f32 %v296, %v370
    %v372 = vpop.f32.mrb[0].mxu0
    %373 = vdwg.mxu0
    %v376 = vcombine.high %v366, %v366
    %v378 = vunpack.c.l.s4 1983009808
    %v379 = vunpack.c.0.s8 %v378
    %v380 = vlaneseq
    %v381 = vshrl.u32 %v380, 7
    %v382 = vsub.s32 %v379, %v381
    %v383 = vrot.slane %v366, %v382
    %v385 = vunpack.c.l.s4 1983009808
    %v386 = vunpack.c.0.s8 %v385
    %v387 = vlaneseq
    %v388 = vshrl.u32 %v387, 7
    %v389 = vsub.s32 %v386, %v388
    %v390 = vrot.slane %v376, %v389
    %v391 = vcombine.high %v383, %v383
    %v392 = vcombine.high %v390, %v390
    %v393 = vcombine.high %v371, %v371
    %v395 = vunpack.c.l.s4 1983009808
    %v396 = vunpack.c.0.s8 %v395
    %v397 = vlaneseq
    %v398 = vshrl.u32 %v397, 7
    %v399 = vsub.s32 %v396, %v398
    %v400 = vrot.slane %v371, %v399
    %v402 = vunpack.c.l.s4 1983009808
    %v403 = vunpack.c.0.s8 %v402
    %v404 = vlaneseq
    %v405 = vshrl.u32 %v404, 7
    %v406 = vsub.s32 %v403, %v405
    %v407 = vrot.slane %v393, %v406
    %v408 = vcombine.high %v400, %v400
    %v409 = vcombine.high %v407, %v407
    %418 = vst [vmem:[#allocation2] sm:$0x3] %v383
    %419 = vst [vmem:[#allocation2 + $0x2] sm:$0x3] %v391
    %420 = vst [vmem:[#allocation2 + $0x4] sm:$0x3] %v390
    %421 = vst [vmem:[#allocation2 + $0x6] sm:$0x3] %v392
    %422 = vst [vmem:[#allocation2 + $0x8] sm:$0x3] %v400
    %423 = vst [vmem:[#allocation2 + $0xa] sm:$0x3] %v408
    %424 = vst [vmem:[#allocation2 + $0xc] sm:$0x3] %v407
    %425 = vst [vmem:[#allocation2 + $0xe] sm:$0x3] %v409
    %v426 = vld [vmem:[%s2] sm:$0xff]
    %v427 = vld [vmem:[%s2 + $0x8] sm:$0xff]
    %v428 = vld [vmem:[%s2 + $0x10] sm:$0xff]
    %v429 = vld [vmem:[%s2 + $0x18] sm:$0xff]
    %v430 = vld [vmem:[#allocation2] sm:$0x3]
    %s431 = scalar_lea.vmem [#allocation2], 14
    %v432 = vld [vmem:[%s431] sm:$0x3]
    %vm433 = vcmask 261120
    %v435 = vsel %vm433, 0.0, 0
    %437 = vmatprep.subr.mxu0 0.0
    %438 = vmatpush1.msra.mxu0 %v426
    %439 = vmatprep.subr.mxu0 0.0
    %440 = vmatpush1.msra.mxu0 %v427
    %441 = vmatprep.subr.mxu0 0.0
    %442 = vmatpush1.msra.mxu0 %v428
    %443 = vmatprep.subr.mxu0 0.0
    %444 = vmatpush1.msra.mxu0 %v429
    %445 = vmatprep.subr.mxu0 0.0
    %446 = vmatpush1.msra.mxu0 0.0
    %447 = vmatprep.subr.mxu0 0.0
    %448 = vmatpush1.msra.mxu0 0.0
    %449 = vmatprep.subr.mxu0 0.0
    %450 = vmatpush1.msra.mxu0 0.0
    %451 = vmatprep.subr.mxu0 0.0
    %452 = vmatpush1.msra.mxu0 0.0
    %453 = vmatprep.subr.mxu0 0.0
    %454 = vmatpush1.msra.mxu0 0.0
    %455 = vmatprep.subr.mxu0 0.0
    %456 = vmatpush1.msra.mxu0 0.0
    %457 = vmatprep.subr.mxu0 0.0
    %458 = vmatpush1.msra.mxu0 0.0
    %459 = vmatprep.subr.mxu0 0.0
    %460 = vmatpush1.msra.mxu0 0.0
    %461 = vmatprep.subr.mxu0 0.0
    %462 = vmatpush1.msra.mxu0 0.0
    %463 = vmatprep.subr.mxu0 0.0
    %464 = vmatpush1.msra.mxu0 0.0
    %465 = vmatprep.subr.mxu0 0.0
    %466 = vmatpush1.msra.mxu0 0.0
    %467 = vmatprep.subr.mxu0 0.0
    %468 = vmatpush1.msra.mxu0 0.0
    %469 = vmatprep.subr.mxu0 0.0
    %470 = vmatpush1.msra.mxu0 0.0
    %471 = vmatprep.subr.mxu0 0.0
    %472 = vmatpush1.msra.mxu0 0.0
    %473 = vmatprep.subr.mxu0 0.0
    %474 = vmatpush1.msra.mxu0 0.0
    %475 = vmatprep.subr.mxu0 0.0
    %476 = vmatpush1.msra.mxu0 0.0
    %477 = vmatprep.subr.mxu0 0.0
    %478 = vmatpush1.msra.mxu0 0.0
    %479 = vmatprep.subr.mxu0 0.0
    %480 = vmatpush1.msra.mxu0 0.0
    %481 = vmatprep.subr.mxu0 0.0
    %482 = vmatpush1.msra.mxu0 0.0
    %483 = vmatprep.subr.mxu0 0.0
    %484 = vmatpush1.msra.mxu0 0.0
    %485 = vmatprep.subr.mxu0 0.0
    %486 = vmatpush1.msra.mxu0 0.0
    %487 = vmatprep.subr.mxu0 0.0
    %488 = vmatpush1.msra.mxu0 0.0
    %489 = vmatprep.subr.mxu0 0.0
    %490 = vmatpush1.msra.mxu0 0.0
    %491 = vmatprep.subr.mxu0 0.0
    %492 = vmatpush1.msra.mxu0 0.0
    %493 = vmatprep.subr.mxu0 0.0
    %494 = vmatpush1.msra.mxu0 0.0
    %495 = vmatprep.subr.mxu0 0.0
    %496 = vmatpush1.msra.mxu0 0.0
    %497 = vmatprep.subr.mxu0 0.0
    %498 = vmatpush1.msra.mxu0 0.0
    %499 = vmatprep.subr.mxu0 0.0
    %500 = vmatpush1.msra.mxu0 0.0
    %501 = vmatprep.mubr.f32.mxu0 0.0
    %502 = vmatmul.mubr.f32.gmra.mrb[0].mxu0 %v435
    %v503 = vpop.f32.mrb[0].mxu0
    %v504 = vadd.f32 0.0, %v503
    %v505 = vpop.f32.mrb[0].mxu0
    %506 = vdwg.mxu0
    %v507 = vadd.f32 %v430, %v504
    %v508 = vxor.u32 %v507, 2147483648
    %v509 = vmul.f32 %v508, 1.442695
    %v510 = vpow.pop %v509
    %v511 = vadd.f32 %v510, 1.0
    %v512 = vrcp.pop %v511
    %v513 = vmul.f32 1.0, %v512
    %v514 = vtanh.pop %v507
    %v515 = vmul.f32 %v513, 0.0
    %517 = vrot.lane.b32.xlu0 %v514, 80
    %v518 = vpop.permute.xlu0 %517
    %v520 = vmul.f32 %v513, %v518
    %522 = vrot.lane.b32.xlu0 %v520, 16
    %v523 = vpop.permute.xlu0 %522
    %v525 = vadd.f32 %v515, %v523
    %v526 = vtanh.pop %v525
    %528 = vrot.lane.b32.xlu0 %v526, 16
    %v529 = vpop.permute.xlu0 %528
    %v531 = vmul.f32 %v513, %v529
    %v532 = vadd.f32 %v432, %v504
    %v533 = vxor.u32 %v532, 2147483648
    %v534 = vmul.f32 %v533, 1.442695
    %v535 = vpow.pop %v534
    %v536 = vadd.f32 %v535, 1.0
    %v537 = vrcp.pop %v536
    %v538 = vmul.f32 1.0, %v537
    %v539 = vtanh.pop %v532
    %v540 = vmul.f32 %v538, 0.0
    %542 = vrot.lane.b32.xlu0 %v539, 80
    %v543 = vpop.permute.xlu0 %542
    %v545 = vmul.f32 %v538, %v543
    %547 = vrot.lane.b32.xlu0 %v545, 16
    %v548 = vpop.permute.xlu0 %547
    %v550 = vadd.f32 %v540, %v548
    %v551 = vtanh.pop %v550
    %553 = vrot.lane.b32.xlu0 %v551, 16
    %v554 = vpop.permute.xlu0 %553
    %v556 = vmul.f32 %v538, %v554
    %558 = vrot.lane.b32.xlu0 %v531, 96
    %v559 = vpop.permute.xlu0 %558
    %vm561 = vcmask 123904
    %562 = vst.msk [vmem:[#allocation3] sm:$0x3] %vm561, %v559
    %564 = vrot.lane.b32.xlu0 %v556, 32
    %v565 = vpop.permute.xlu0 %564
    %s567 = scalar_lea.vmem [#allocation4], 14
    %568 = vst.msk [vmem:[%s567] sm:$0x3] %vm561, %v565
    %s569 = scalar_lea.vmem [#allocation2], 2
    %v570 = vld [vmem:[%s569] sm:$0x3]
    %s571 = scalar_lea.vmem [#allocation2], 12
    %v572 = vld [vmem:[%s571] sm:$0x3]
    %573 = vrot.lane.b32.xlu0 %v556, 48
    %v574 = vpop.permute.xlu0 %573
    %vm576 = vcmask 130048
    %v577 = vsel %vm576, %v559, %v574
    %v579 = vsel %vm433, %v577, 0
    %581 = vmatprep.subr.mxu0 0.0
    %582 = vmatpush1.msra.mxu0 %v426
    %583 = vmatprep.subr.mxu0 0.0
    %584 = vmatpush1.msra.mxu0 %v427
    %585 = vmatprep.subr.mxu0 0.0
    %586 = vmatpush1.msra.mxu0 %v428
    %587 = vmatprep.subr.mxu0 0.0
    %588 = vmatpush1.msra.mxu0 %v429
    %589 = vmatprep.subr.mxu0 0.0
    %590 = vmatpush1.msra.mxu0 0.0
    %591 = vmatprep.subr.mxu0 0.0
    %592 = vmatpush1.msra.mxu0 0.0
    %593 = vmatprep.subr.mxu0 0.0
    %594 = vmatpush1.msra.mxu0 0.0
    %595 = vmatprep.subr.mxu0 0.0
    %596 = vmatpush1.msra.mxu0 0.0
    %597 = vmatprep.subr.mxu0 0.0
    %598 = vmatpush1.msra.mxu0 0.0
    %599 = vmatprep.subr.mxu0 0.0
    %600 = vmatpush1.msra.mxu0 0.0
    %601 = vmatprep.subr.mxu0 0.0
    %602 = vmatpush1.msra.mxu0 0.0
    %603 = vmatprep.subr.mxu0 0.0
    %604 = vmatpush1.msra.mxu0 0.0
    %605 = vmatprep.subr.mxu0 0.0
    %606 = vmatpush1.msra.mxu0 0.0
    %607 = vmatprep.subr.mxu0 0.0
    %608 = vmatpush1.msra.mxu0 0.0
    %609 = vmatprep.subr.mxu0 0.0
    %610 = vmatpush1.msra.mxu0 0.0
    %611 = vmatprep.subr.mxu0 0.0
    %612 = vmatpush1.msra.mxu0 0.0
    %613 = vmatprep.subr.mxu0 0.0
    %614 = vmatpush1.msra.mxu0 0.0
    %615 = vmatprep.subr.mxu0 0.0
    %616 = vmatpush1.msra.mxu0 0.0
    %617 = vmatprep.subr.mxu0 0.0
    %618 = vmatpush1.msra.mxu0 0.0
    %619 = vmatprep.subr.mxu0 0.0
    %620 = vmatpush1.msra.mxu0 0.0
    %621 = vmatprep.subr.mxu0 0.0
    %622 = vmatpush1.msra.mxu0 0.0
    %623 = vmatprep.subr.mxu0 0.0
    %624 = vmatpush1.msra.mxu0 0.0
    %625 = vmatprep.subr.mxu0 0.0
    %626 = vmatpush1.msra.mxu0 0.0
    %627 = vmatprep.subr.mxu0 0.0
    %628 = vmatpush1.msra.mxu0 0.0
    %629 = vmatprep.subr.mxu0 0.0
    %630 = vmatpush1.msra.mxu0 0.0
    %631 = vmatprep.subr.mxu0 0.0
    %632 = vmatpush1.msra.mxu0 0.0
    %633 = vmatprep.subr.mxu0 0.0
    %634 = vmatpush1.msra.mxu0 0.0
    %635 = vmatprep.subr.mxu0 0.0
    %636 = vmatpush1.msra.mxu0 0.0
    %637 = vmatprep.subr.mxu0 0.0
    %638 = vmatpush1.msra.mxu0 0.0
    %639 = vmatprep.subr.mxu0 0.0
    %640 = vmatpush1.msra.mxu0 0.0
    %641 = vmatprep.subr.mxu0 0.0
    %642 = vmatpush1.msra.mxu0 0.0
    %643 = vmatprep.subr.mxu0 0.0
    %644 = vmatpush1.msra.mxu0 0.0
    %645 = vmatprep.mubr.f32.mxu0 0.0
    %646 = vmatmul.mubr.f32.gmra.mrb[0].mxu0 %v579
    %v647 = vpop.f32.mrb[0].mxu0
    %v648 = vadd.f32 0.0, %v647
    %v649 = vpop.f32.mrb[0].mxu0
    %650 = vdwg.mxu0
    %v651 = vadd.f32 %v570, %v648
    %v652 = vxor.u32 %v651, 2147483648
    %v653 = vmul.f32 %v652, 1.442695
    %v654 = vpow.pop %v653
    %v655 = vadd.f32 %v654, 1.0
    %v656 = vrcp.pop %v655
    %v657 = vmul.f32 1.0, %v656
    %v658 = vtanh.pop %v651
    %v659 = vmul.f32 %v657, %v525
    %661 = vrot.lane.b32.xlu0 %v658, 80
    %v662 = vpop.permute.xlu0 %661
    %v664 = vmul.f32 %v657, %v662
    %666 = vrot.lane.b32.xlu0 %v664, 16
    %v667 = vpop.permute.xlu0 %666
    %v669 = vadd.f32 %v659, %v667
    %v670 = vtanh.pop %v669
    %672 = vrot.lane.b32.xlu0 %v670, 16
    %v673 = vpop.permute.xlu0 %672
    %v675 = vmul.f32 %v657, %v673
    %v676 = vadd.f32 %v572, %v648
    %v677 = vxor.u32 %v676, 2147483648
    %v678 = vmul.f32 %v677, 1.442695
    %v679 = vpow.pop %v678
    %v680 = vadd.f32 %v679, 1.0
    %v681 = vrcp.pop %v680
    %v682 = vmul.f32 1.0, %v681
    %v683 = vtanh.pop %v676
    %v684 = vmul.f32 %v682, %v550
    %686 = vrot.lane.b32.xlu0 %v683, 80
    %v687 = vpop.permute.xlu0 %686
    %v689 = vmul.f32 %v682, %v687
    %691 = vrot.lane.b32.xlu0 %v689, 16
    %v692 = vpop.permute.xlu0 %691
    %v694 = vadd.f32 %v684, %v692
    %v695 = vtanh.pop %v694
    %697 = vrot.lane.b32.xlu0 %v695, 16
    %v698 = vpop.permute.xlu0 %697
    %v700 = vmul.f32 %v682, %v698
    %702 = vrot.lane.b32.xlu0 %v675, 96
    %v703 = vpop.permute.xlu0 %702
    %s705 = scalar_lea.vmem [#allocation3], 2
    %706 = vst.msk [vmem:[%s705] sm:$0x3] %vm561, %v703
    %708 = vrot.lane.b32.xlu0 %v700, 32
    %v709 = vpop.permute.xlu0 %708
    %s711 = scalar_lea.vmem [#allocation4], 12
    %712 = vst.msk [vmem:[%s711] sm:$0x3] %vm561, %v709
    %s713 = scalar_lea.vmem [#allocation2], 4
    %v714 = vld [vmem:[%s713] sm:$0x3]
    %s715 = scalar_lea.vmem [#allocation2], 10
    %v716 = vld [vmem:[%s715] sm:$0x3]
    %717 = vrot.lane.b32.xlu0 %v700, 48
    %v718 = vpop.permute.xlu0 %717
    %v720 = vsel %vm576, %v703, %v718
    %v722 = vsel %vm433, %v720, 0
    %724 = vmatprep.subr.mxu0 0.0
    %725 = vmatpush1.msra.mxu0 %v426
    %726 = vmatprep.subr.mxu0 0.0
    %727 = vmatpush1.msra.mxu0 %v427
    %728 = vmatprep.subr.mxu0 0.0
    %729 = vmatpush1.msra.mxu0 %v428
    %730 = vmatprep.subr.mxu0 0.0
    %731 = vmatpush1.msra.mxu0 %v429
    %732 = vmatprep.subr.mxu0 0.0
    %733 = vmatpush1.msra.mxu0 0.0
    %734 = vmatprep.subr.mxu0 0.0
    %735 = vmatpush1.msra.mxu0 0.0
    %736 = vmatprep.subr.mxu0 0.0
    %737 = vmatpush1.msra.mxu0 0.0
    %738 = vmatprep.subr.mxu0 0.0
    %739 = vmatpush1.msra.mxu0 0.0
    %740 = vmatprep.subr.mxu0 0.0
    %741 = vmatpush1.msra.mxu0 0.0
    %742 = vmatprep.subr.mxu0 0.0
    %743 = vmatpush1.msra.mxu0 0.0
    %744 = vmatprep.subr.mxu0 0.0
    %745 = vmatpush1.msra.mxu0 0.0
    %746 = vmatprep.subr.mxu0 0.0
    %747 = vmatpush1.msra.mxu0 0.0
    %748 = vmatprep.subr.mxu0 0.0
    %749 = vmatpush1.msra.mxu0 0.0
    %750 = vmatprep.subr.mxu0 0.0
    %751 = vmatpush1.msra.mxu0 0.0
    %752 = vmatprep.subr.mxu0 0.0
    %753 = vmatpush1.msra.mxu0 0.0
    %754 = vmatprep.subr.mxu0 0.0
    %755 = vmatpush1.msra.mxu0 0.0
    %756 = vmatprep.subr.mxu0 0.0
    %757 = vmatpush1.msra.mxu0 0.0
    %758 = vmatprep.subr.mxu0 0.0
    %759 = vmatpush1.msra.mxu0 0.0
    %760 = vmatprep.subr.mxu0 0.0
    %761 = vmatpush1.msra.mxu0 0.0
    %762 = vmatprep.subr.mxu0 0.0
    %763 = vmatpush1.msra.mxu0 0.0
    %764 = vmatprep.subr.mxu0 0.0
    %765 = vmatpush1.msra.mxu0 0.0
    %766 = vmatprep.subr.mxu0 0.0
    %767 = vmatpush1.msra.mxu0 0.0
    %768 = vmatprep.subr.mxu0 0.0
    %769 = vmatpush1.msra.mxu0 0.0
    %770 = vmatprep.subr.mxu0 0.0
    %771 = vmatpush1.msra.mxu0 0.0
    %772 = vmatprep.subr.mxu0 0.0
    %773 = vmatpush1.msra.mxu0 0.0
    %774 = vmatprep.subr.mxu0 0.0
    %775 = vmatpush1.msra.mxu0 0.0
    %776 = vmatprep.subr.mxu0 0.0
    %777 = vmatpush1.msra.mxu0 0.0
    %778 = vmatprep.subr.mxu0 0.0
    %779 = vmatpush1.msra.mxu0 0.0
    %780 = vmatprep.subr.mxu0 0.0
    %781 = vmatpush1.msra.mxu0 0.0
    %782 = vmatprep.subr.mxu0 0.0
    %783 = vmatpush1.msra.mxu0 0.0
    %784 = vmatprep.subr.mxu0 0.0
    %785 = vmatpush1.msra.mxu0 0.0
    %786 = vmatprep.subr.mxu0 0.0
    %787 = vmatpush1.msra.mxu0 0.0
    %788 = vmatprep.mubr.f32.mxu0 0.0
    %789 = vmatmul.mubr.f32.gmra.mrb[0].mxu0 %v722
    %v790 = vpop.f32.mrb[0].mxu0
    %v791 = vadd.f32 0.0, %v790
    %v792 = vpop.f32.mrb[0].mxu0
    %793 = vdwg.mxu0
    %v794 = vadd.f32 %v714, %v791
    %v795 = vxor.u32 %v794, 2147483648
    %v796 = vmul.f32 %v795, 1.442695
    %v797 = vpow.pop %v796
    %v798 = vadd.f32 %v797, 1.0
    %v799 = vrcp.pop %v798
    %v800 = vmul.f32 1.0, %v799
    %v801 = vtanh.pop %v794
    %v802 = vmul.f32 %v800, %v669
    %804 = vrot.lane.b32.xlu0 %v801, 80
    %v805 = vpop.permute.xlu0 %804
    %v807 = vmul.f32 %v800, %v805
    %809 = vrot.lane.b32.xlu0 %v807, 16
    %v810 = vpop.permute.xlu0 %809
    %v812 = vadd.f32 %v802, %v810
    %v813 = vtanh.pop %v812
    %815 = vrot.lane.b32.xlu0 %v813, 16
    %v816 = vpop.permute.xlu0 %815
    %v818 = vmul.f32 %v800, %v816
    %v819 = vadd.f32 %v716, %v791
    %v820 = vxor.u32 %v819, 2147483648
    %v821 = vmul.f32 %v820, 1.442695
    %v822 = vpow.pop %v821
    %v823 = vadd.f32 %v822, 1.0
    %v824 = vrcp.pop %v823
    %v825 = vmul.f32 1.0, %v824
    %v826 = vtanh.pop %v819
    %v827 = vmul.f32 %v825, %v694
    %829 = vrot.lane.b32.xlu0 %v826, 80
    %v830 = vpop.permute.xlu0 %829
    %v832 = vmul.f32 %v825, %v830
    %834 = vrot.lane.b32.xlu0 %v832, 16
    %v835 = vpop.permute.xlu0 %834
    %v837 = vadd.f32 %v827, %v835
    %v838 = vtanh.pop %v837
    %840 = vrot.lane.b32.xlu0 %v838, 16
    %v841 = vpop.permute.xlu0 %840
    %v843 = vmul.f32 %v825, %v841
    %845 = vrot.lane.b32.xlu0 %v818, 96
    %v846 = vpop.permute.xlu0 %845
    %s848 = scalar_lea.vmem [#allocation3], 4
    %849 = vst.msk [vmem:[%s848] sm:$0x3] %vm561, %v846
    %851 = vrot.lane.b32.xlu0 %v843, 32
    %v852 = vpop.permute.xlu0 %851
    %s854 = scalar_lea.vmem [#allocation4], 10
    %855 = vst.msk [vmem:[%s854] sm:$0x3] %vm561, %v852
    %s856 = scalar_lea.vmem [#allocation2], 6
    %v857 = vld [vmem:[%s856] sm:$0x3]
    %s858 = scalar_lea.vmem [#allocation2], 8
    %v859 = vld [vmem:[%s858] sm:$0x3]
    %860 = vrot.lane.b32.xlu0 %v843, 48
    %v861 = vpop.permute.xlu0 %860
    %v863 = vsel %vm576, %v846, %v861
    %v865 = vsel %vm433, %v863, 0
    %867 = vmatprep.subr.mxu0 0.0
    %868 = vmatpush1.msra.mxu0 %v426
    %869 = vmatprep.subr.mxu0 0.0
    %870 = vmatpush1.msra.mxu0 %v427
    %871 = vmatprep.subr.mxu0 0.0
    %872 = vmatpush1.msra.mxu0 %v428
    %873 = vmatprep.subr.mxu0 0.0
    %874 = vmatpush1.msra.mxu0 %v429
    %875 = vmatprep.subr.mxu0 0.0
    %876 = vmatpush1.msra.mxu0 0.0
    %877 = vmatprep.subr.mxu0 0.0
    %878 = vmatpush1.msra.mxu0 0.0
    %879 = vmatprep.subr.mxu0 0.0
    %880 = vmatpush1.msra.mxu0 0.0
    %881 = vmatprep.subr.mxu0 0.0
    %882 = vmatpush1.msra.mxu0 0.0
    %883 = vmatprep.subr.mxu0 0.0
    %884 = vmatpush1.msra.mxu0 0.0
    %885 = vmatprep.subr.mxu0 0.0
    %886 = vmatpush1.msra.mxu0 0.0
    %887 = vmatprep.subr.mxu0 0.0
    %888 = vmatpush1.msra.mxu0 0.0
    %889 = vmatprep.subr.mxu0 0.0
    %890 = vmatpush1.msra.mxu0 0.0
    %891 = vmatprep.subr.mxu0 0.0
    %892 = vmatpush1.msra.mxu0 0.0
    %893 = vmatprep.subr.mxu0 0.0
    %894 = vmatpush1.msra.mxu0 0.0
    %895 = vmatprep.subr.mxu0 0.0
    %896 = vmatpush1.msra.mxu0 0.0
    %897 = vmatprep.subr.mxu0 0.0
    %898 = vmatpush1.msra.mxu0 0.0
    %899 = vmatprep.subr.mxu0 0.0
    %900 = vmatpush1.msra.mxu0 0.0
    %901 = vmatprep.subr.mxu0 0.0
    %902 = vmatpush1.msra.mxu0 0.0
    %903 = vmatprep.subr.mxu0 0.0
    %904 = vmatpush1.msra.mxu0 0.0
    %905 = vmatprep.subr.mxu0 0.0
    %906 = vmatpush1.msra.mxu0 0.0
    %907 = vmatprep.subr.mxu0 0.0
    %908 = vmatpush1.msra.mxu0 0.0
    %909 = vmatprep.subr.mxu0 0.0
    %910 = vmatpush1.msra.mxu0 0.0
    %911 = vmatprep.subr.mxu0 0.0
    %912 = vmatpush1.msra.mxu0 0.0
    %913 = vmatprep.subr.mxu0 0.0
    %914 = vmatpush1.msra.mxu0 0.0
    %915 = vmatprep.subr.mxu0 0.0
    %916 = vmatpush1.msra.mxu0 0.0
    %917 = vmatprep.subr.mxu0 0.0
    %918 = vmatpush1.msra.mxu0 0.0
    %919 = vmatprep.subr.mxu0 0.0
    %920 = vmatpush1.msra.mxu0 0.0
    %921 = vmatprep.subr.mxu0 0.0
    %922 = vmatpush1.msra.mxu0 0.0
    %923 = vmatprep.subr.mxu0 0.0
    %924 = vmatpush1.msra.mxu0 0.0
    %925 = vmatprep.subr.mxu0 0.0
    %926 = vmatpush1.msra.mxu0 0.0
    %927 = vmatprep.subr.mxu0 0.0
    %928 = vmatpush1.msra.mxu0 0.0
    %929 = vmatprep.subr.mxu0 0.0
    %930 = vmatpush1.msra.mxu0 0.0
    %931 = vmatprep.mubr.f32.mxu0 0.0
    %932 = vmatmul.mubr.f32.gmra.mrb[0].mxu0 %v865
    %v933 = vpop.f32.mrb[0].mxu0
    %v934 = vadd.f32 0.0, %v933
    %v935 = vpop.f32.mrb[0].mxu0
    %936 = vdwg.mxu0
    %v937 = vadd.f32 %v857, %v934
    %v938 = vxor.u32 %v937, 2147483648
    %v939 = vmul.f32 %v938, 1.442695
    %v940 = vpow.pop %v939
    %v941 = vadd.f32 %v940, 1.0
    %v942 = vrcp.pop %v941
    %v943 = vmul.f32 1.0, %v942
    %v944 = vtanh.pop %v937
    %v945 = vmul.f32 %v943, %v812
    %947 = vrot.lane.b32.xlu0 %v944, 80
    %v948 = vpop.permute.xlu0 %947
    %v950 = vmul.f32 %v943, %v948
    %952 = vrot.lane.b32.xlu0 %v950, 16
    %v953 = vpop.permute.xlu0 %952
    %v955 = vadd.f32 %v945, %v953
    %v956 = vtanh.pop %v955
    %958 = vrot.lane.b32.xlu0 %v956, 16
    %v959 = vpop.permute.xlu0 %958
    %v961 = vmul.f32 %v943, %v959
    %v962 = vadd.f32 %v859, %v934
    %v963 = vxor.u32 %v962, 2147483648
    %v964 = vmul.f32 %v963, 1.442695
    %v965 = vpow.pop %v964
    %v966 = vadd.f32 %v965, 1.0
    %v967 = vrcp.pop %v966
    %v968 = vmul.f32 1.0, %v967
    %v969 = vtanh.pop %v962
    %v970 = vmul.f32 %v968, %v837
    %972 = vrot.lane.b32.xlu0 %v969, 80
    %v973 = vpop.permute.xlu0 %972
    %v975 = vmul.f32 %v968, %v973
    %977 = vrot.lane.b32.xlu0 %v975, 16
    %v978 = vpop.permute.xlu0 %977
    %v980 = vadd.f32 %v970, %v978
    %v981 = vtanh.pop %v980
    %983 = vrot.lane.b32.xlu0 %v981, 16
    %v984 = vpop.permute.xlu0 %983
    %v986 = vmul.f32 %v968, %v984
    %988 = vrot.lane.b32.xlu0 %v961, 96
    %v989 = vpop.permute.xlu0 %988
    %s991 = scalar_lea.vmem [#allocation3], 6
    %992 = vst.msk [vmem:[%s991] sm:$0x3] %vm561, %v989
    %994 = vrot.lane.b32.xlu0 %v986, 32
    %v995 = vpop.permute.xlu0 %994
    %s997 = scalar_lea.vmem [#allocation4], 8
    %998 = vst.msk [vmem:[%s997] sm:$0x3] %vm561, %v995
    %v999 = vld [vmem:[%s858] sm:$0x3]
    %v1000 = vld [vmem:[%s856] sm:$0x3]
    %1001 = vrot.lane.b32.xlu0 %v986, 48
    %v1002 = vpop.permute.xlu0 %1001
    %v1004 = vsel %vm576, %v989, %v1002
    %v1006 = vsel %vm433, %v1004, 0
    %1008 = vmatprep.subr.mxu0 0.0
    %1009 = vmatpush1.msra.mxu0 %v426
    %1010 = vmatprep.subr.mxu0 0.0
    %1011 = vmatpush1.msra.mxu0 %v427
    %1012 = vmatprep.subr.mxu0 0.0
    %1013 = vmatpush1.msra.mxu0 %v428
    %1014 = vmatprep.subr.mxu0 0.0
    %1015 = vmatpush1.msra.mxu0 %v429
    %1016 = vmatprep.subr.mxu0 0.0
    %1017 = vmatpush1.msra.mxu0 0.0
    %1018 = vmatprep.subr.mxu0 0.0
    %1019 = vmatpush1.msra.mxu0 0.0
    %1020 = vmatprep.subr.mxu0 0.0
    %1021 = vmatpush1.msra.mxu0 0.0
    %1022 = vmatprep.subr.mxu0 0.0
    %1023 = vmatpush1.msra.mxu0 0.0
    %1024 = vmatprep.subr.mxu0 0.0
    %1025 = vmatpush1.msra.mxu0 0.0
    %1026 = vmatprep.subr.mxu0 0.0
    %1027 = vmatpush1.msra.mxu0 0.0
    %1028 = vmatprep.subr.mxu0 0.0
    %1029 = vmatpush1.msra.mxu0 0.0
    %1030 = vmatprep.subr.mxu0 0.0
    %1031 = vmatpush1.msra.mxu0 0.0
    %1032 = vmatprep.subr.mxu0 0.0
    %1033 = vmatpush1.msra.mxu0 0.0
    %1034 = vmatprep.subr.mxu0 0.0
    %1035 = vmatpush1.msra.mxu0 0.0
    %1036 = vmatprep.subr.mxu0 0.0
    %1037 = vmatpush1.msra.mxu0 0.0
    %1038 = vmatprep.subr.mxu0 0.0
    %1039 = vmatpush1.msra.mxu0 0.0
    %1040 = vmatprep.subr.mxu0 0.0
    %1041 = vmatpush1.msra.mxu0 0.0
    %1042 = vmatprep.subr.mxu0 0.0
    %1043 = vmatpush1.msra.mxu0 0.0
    %1044 = vmatprep.subr.mxu0 0.0
    %1045 = vmatpush1.msra.mxu0 0.0
    %1046 = vmatprep.subr.mxu0 0.0
    %1047 = vmatpush1.msra.mxu0 0.0
    %1048 = vmatprep.subr.mxu0 0.0
    %1049 = vmatpush1.msra.mxu0 0.0
    %1050 = vmatprep.subr.mxu0 0.0
    %1051 = vmatpush1.msra.mxu0 0.0
    %1052 = vmatprep.subr.mxu0 0.0
    %1053 = vmatpush1.msra.mxu0 0.0
    %1054 = vmatprep.subr.mxu0 0.0
    %1055 = vmatpush1.msra.mxu0 0.0
    %1056 = vmatprep.subr.mxu0 0.0
    %1057 = vmatpush1.msra.mxu0 0.0
    %1058 = vmatprep.subr.mxu0 0.0
    %1059 = vmatpush1.msra.mxu0 0.0
    %1060 = vmatprep.subr.mxu0 0.0
    %1061 = vmatpush1.msra.mxu0 0.0
    %1062 = vmatprep.subr.mxu0 0.0
    %1063 = vmatpush1.msra.mxu0 0.0
    %1064 = vmatprep.subr.mxu0 0.0
    %1065 = vmatpush1.msra.mxu0 0.0
    %1066 = vmatprep.subr.mxu0 0.0
    %1067 = vmatpush1.msra.mxu0 0.0
    %1068 = vmatprep.subr.mxu0 0.0
    %1069 = vmatpush1.msra.mxu0 0.0
    %1070 = vmatprep.subr.mxu0 0.0
    %1071 = vmatpush1.msra.mxu0 0.0
    %1072 = vmatprep.mubr.f32.mxu0 0.0
    %1073 = vmatmul.mubr.f32.gmra.mrb[0].mxu0 %v1006
    %v1074 = vpop.f32.mrb[0].mxu0
    %v1075 = vadd.f32 0.0, %v1074
    %v1076 = vpop.f32.mrb[0].mxu0
    %1077 = vdwg.mxu0
    %v1078 = vadd.f32 %v999, %v1075
    %v1079 = vxor.u32 %v1078, 2147483648
    %v1080 = vmul.f32 %v1079, 1.442695
    %v1081 = vpow.pop %v1080
    %v1082 = vadd.f32 %v1081, 1.0
    %v1083 = vrcp.pop %v1082
    %v1084 = vmul.f32 1.0, %v1083
    %v1085 = vtanh.pop %v1078
    %v1086 = vmul.f32 %v1084, %v955
    %1088 = vrot.lane.b32.xlu0 %v1085, 80
    %v1089 = vpop.permute.xlu0 %1088
    %v1091 = vmul.f32 %v1084, %v1089
    %1093 = vrot.lane.b32.xlu0 %v1091, 16
    %v1094 = vpop.permute.xlu0 %1093
    %v1096 = vadd.f32 %v1086, %v1094
    %v1097 = vtanh.pop %v1096
    %1099 = vrot.lane.b32.xlu0 %v1097, 16
    %v1100 = vpop.permute.xlu0 %1099
    %v1102 = vmul.f32 %v1084, %v1100
    %v1103 = vadd.f32 %v1000, %v1075
    %v1104 = vxor.u32 %v1103, 2147483648
    %v1105 = vmul.f32 %v1104, 1.442695
    %v1106 = vpow.pop %v1105
    %v1107 = vadd.f32 %v1106, 1.0
    %v1108 = vrcp.pop %v1107
    %v1109 = vmul.f32 1.0, %v1108
    %v1110 = vtanh.pop %v1103
    %v1111 = vmul.f32 %v1109, %v980
    %1113 = vrot.lane.b32.xlu0 %v1110, 80
    %v1114 = vpop.permute.xlu0 %1113
    %v1116 = vmul.f32 %v1109, %v1114
    %1118 = vrot.lane.b32.xlu0 %v1116, 16
    %v1119 = vpop.permute.xlu0 %1118
    %v1121 = vadd.f32 %v1111, %v1119
    %v1122 = vtanh.pop %v1121
    %1124 = vrot.lane.b32.xlu0 %v1122, 16
    %v1125 = vpop.permute.xlu0 %1124
    %v1127 = vmul.f32 %v1109, %v1125
    %1129 = vrot.lane.b32.xlu0 %v1102, 96
    %v1130 = vpop.permute.xlu0 %1129
    %s1132 = scalar_lea.vmem [#allocation3], 8
    %1133 = vst.msk [vmem:[%s1132] sm:$0x3] %vm561, %v1130
    %1135 = vrot.lane.b32.xlu0 %v1127, 32
    %v1136 = vpop.permute.xlu0 %1135
    %s1138 = scalar_lea.vmem [#allocation4], 6
    %1139 = vst.msk [vmem:[%s1138] sm:$0x3] %vm561, %v1136
    %v1140 = vld [vmem:[%s715] sm:$0x3]
    %v1141 = vld [vmem:[%s713] sm:$0x3]
    %1142 = vrot.lane.b32.xlu0 %v1127, 48
    %v1143 = vpop.permute.xlu0 %1142
    %v1145 = vsel %vm576, %v1130, %v1143
    %v1147 = vsel %vm433, %v1145, 0
    %1149 = vmatprep.subr.mxu0 0.0
    %1150 = vmatpush1.msra.mxu0 %v426
    %1151 = vmatprep.subr.mxu0 0.0
    %1152 = vmatpush1.msra.mxu0 %v427
    %1153 = vmatprep.subr.mxu0 0.0
    %1154 = vmatpush1.msra.mxu0 %v428
    %1155 = vmatprep.subr.mxu0 0.0
    %1156 = vmatpush1.msra.mxu0 %v429
    %1157 = vmatprep.subr.mxu0 0.0
    %1158 = vmatpush1.msra.mxu0 0.0
    %1159 = vmatprep.subr.mxu0 0.0
    %1160 = vmatpush1.msra.mxu0 0.0
    %1161 = vmatprep.subr.mxu0 0.0
    %1162 = vmatpush1.msra.mxu0 0.0
    %1163 = vmatprep.subr.mxu0 0.0
    %1164 = vmatpush1.msra.mxu0 0.0
    %1165 = vmatprep.subr.mxu0 0.0
    %1166 = vmatpush1.msra.mxu0 0.0
    %1167 = vmatprep.subr.mxu0 0.0
    %1168 = vmatpush1.msra.mxu0 0.0
    %1169 = vmatprep.subr.mxu0 0.0
    %1170 = vmatpush1.msra.mxu0 0.0
    %1171 = vmatprep.subr.mxu0 0.0
    %1172 = vmatpush1.msra.mxu0 0.0
    %1173 = vmatprep.subr.mxu0 0.0
    %1174 = vmatpush1.msra.mxu0 0.0
    %1175 = vmatprep.subr.mxu0 0.0
    %1176 = vmatpush1.msra.mxu0 0.0
    %1177 = vmatprep.subr.mxu0 0.0
    %1178 = vmatpush1.msra.mxu0 0.0
    %1179 = vmatprep.subr.mxu0 0.0
    %1180 = vmatpush1.msra.mxu0 0.0
    %1181 = vmatprep.subr.mxu0 0.0
    %1182 = vmatpush1.msra.mxu0 0.0
    %1183 = vmatprep.subr.mxu0 0.0
    %1184 = vmatpush1.msra.mxu0 0.0
    %1185 = vmatprep.subr.mxu0 0.0
    %1186 = vmatpush1.msra.mxu0 0.0
    %1187 = vmatprep.subr.mxu0 0.0
    %1188 = vmatpush1.msra.mxu0 0.0
    %1189 = vmatprep.subr.mxu0 0.0
    %1190 = vmatpush1.msra.mxu0 0.0
    %1191 = vmatprep.subr.mxu0 0.0
    %1192 = vmatpush1.msra.mxu0 0.0
    %1193 = vmatprep.subr.mxu0 0.0
    %1194 = vmatpush1.msra.mxu0 0.0
    %1195 = vmatprep.subr.mxu0 0.0
    %1196 = vmatpush1.msra.mxu0 0.0
    %1197 = vmatprep.subr.mxu0 0.0
    %1198 = vmatpush1.msra.mxu0 0.0
    %1199 = vmatprep.subr.mxu0 0.0
    %1200 = vmatpush1.msra.mxu0 0.0
    %1201 = vmatprep.subr.mxu0 0.0
    %1202 = vmatpush1.msra.mxu0 0.0
    %1203 = vmatprep.subr.mxu0 0.0
    %1204 = vmatpush1.msra.mxu0 0.0
    %1205 = vmatprep.subr.mxu0 0.0
    %1206 = vmatpush1.msra.mxu0 0.0
    %1207 = vmatprep.subr.mxu0 0.0
    %1208 = vmatpush1.msra.mxu0 0.0
    %1209 = vmatprep.subr.mxu0 0.0
    %1210 = vmatpush1.msra.mxu0 0.0
    %1211 = vmatprep.subr.mxu0 0.0
    %1212 = vmatpush1.msra.mxu0 0.0
    %1213 = vmatprep.mubr.f32.mxu0 0.0
    %1214 = vmatmul.mubr.f32.gmra.mrb[0].mxu0 %v1147
    %v1215 = vpop.f32.mrb[0].mxu0
    %v1216 = vadd.f32 0.0, %v1215
    %v1217 = vpop.f32.mrb[0].mxu0
    %1218 = vdwg.mxu0
    %v1219 = vadd.f32 %v1140, %v1216
    %v1220 = vxor.u32 %v1219, 2147483648
    %v1221 = vmul.f32 %v1220, 1.442695
    %v1222 = vpow.pop %v1221
    %v1223 = vadd.f32 %v1222, 1.0
    %v1224 = vrcp.pop %v1223
    %v1225 = vmul.f32 1.0, %v1224
    %v1226 = vtanh.pop %v1219
    %v1227 = vmul.f32 %v1225, %v1096
    %1229 = vrot.lane.b32.xlu0 %v1226, 80
    %v1230 = vpop.permute.xlu0 %1229
    %v1232 = vmul.f32 %v1225, %v1230
    %1234 = vrot.lane.b32.xlu0 %v1232, 16
    %v1235 = vpop.permute.xlu0 %1234
    %v1237 = vadd.f32 %v1227, %v1235
    %v1238 = vtanh.pop %v1237
    %1240 = vrot.lane.b32.xlu0 %v1238, 16
    %v1241 = vpop.permute.xlu0 %1240
    %v1243 = vmul.f32 %v1225, %v1241
    %v1244 = vadd.f32 %v1141, %v1216
    %v1245 = vxor.u32 %v1244, 2147483648
    %v1246 = vmul.f32 %v1245, 1.442695
    %v1247 = vpow.pop %v1246
    %v1248 = vadd.f32 %v1247, 1.0
    %v1249 = vrcp.pop %v1248
    %v1250 = vmul.f32 1.0, %v1249
    %v1251 = vtanh.pop %v1244
    %v1252 = vmul.f32 %v1250, %v1121
    %1254 = vrot.lane.b32.xlu0 %v1251, 80
    %v1255 = vpop.permute.xlu0 %1254
    %v1257 = vmul.f32 %v1250, %v1255
    %1259 = vrot.lane.b32.xlu0 %v1257, 16
    %v1260 = vpop.permute.xlu0 %1259
    %v1262 = vadd.f32 %v1252, %v1260
    %v1263 = vtanh.pop %v1262
    %1265 = vrot.lane.b32.xlu0 %v1263, 16
    %v1266 = vpop.permute.xlu0 %1265
    %v1268 = vmul.f32 %v1250, %v1266
    %1270 = vrot.lane.b32.xlu0 %v1243, 96
    %v1271 = vpop.permute.xlu0 %1270
    %s1273 = scalar_lea.vmem [#allocation3], 10
    %1274 = vst.msk [vmem:[%s1273] sm:$0x3] %vm561, %v1271
    %1276 = vrot.lane.b32.xlu0 %v1268, 32
    %v1277 = vpop.permute.xlu0 %1276
    %s1279 = scalar_lea.vmem [#allocation4], 4
    %1280 = vst.msk [vmem:[%s1279] sm:$0x3] %vm561, %v1277
    %v1281 = vld [vmem:[%s571] sm:$0x3]
    %v1282 = vld [vmem:[%s569] sm:$0x3]
    %1283 = vrot.lane.b32.xlu0 %v1268, 48
    %v1284 = vpop.permute.xlu0 %1283
    %v1286 = vsel %vm576, %v1271, %v1284
    %v1288 = vsel %vm433, %v1286, 0
    %1290 = vmatprep.subr.mxu0 0.0
    %1291 = vmatpush1.msra.mxu0 %v426
    %1292 = vmatprep.subr.mxu0 0.0
    %1293 = vmatpush1.msra.mxu0 %v427
    %1294 = vmatprep.subr.mxu0 0.0
    %1295 = vmatpush1.msra.mxu0 %v428
    %1296 = vmatprep.subr.mxu0 0.0
    %1297 = vmatpush1.msra.mxu0 %v429
    %1298 = vmatprep.subr.mxu0 0.0
    %1299 = vmatpush1.msra.mxu0 0.0
    %1300 = vmatprep.subr.mxu0 0.0
    %1301 = vmatpush1.msra.mxu0 0.0
    %1302 = vmatprep.subr.mxu0 0.0
    %1303 = vmatpush1.msra.mxu0 0.0
    %1304 = vmatprep.subr.mxu0 0.0
    %1305 = vmatpush1.msra.mxu0 0.0
    %1306 = vmatprep.subr.mxu0 0.0
    %1307 = vmatpush1.msra.mxu0 0.0
    %1308 = vmatprep.subr.mxu0 0.0
    %1309 = vmatpush1.msra.mxu0 0.0
    %1310 = vmatprep.subr.mxu0 0.0
    %1311 = vmatpush1.msra.mxu0 0.0
    %1312 = vmatprep.subr.mxu0 0.0
    %1313 = vmatpush1.msra.mxu0 0.0
    %1314 = vmatprep.subr.mxu0 0.0
    %1315 = vmatpush1.msra.mxu0 0.0
    %1316 = vmatprep.subr.mxu0 0.0
    %1317 = vmatpush1.msra.mxu0 0.0
    %1318 = vmatprep.subr.mxu0 0.0
    %1319 = vmatpush1.msra.mxu0 0.0
    %1320 = vmatprep.subr.mxu0 0.0
    %1321 = vmatpush1.msra.mxu0 0.0
    %1322 = vmatprep.subr.mxu0 0.0
    %1323 = vmatpush1.msra.mxu0 0.0
    %1324 = vmatprep.subr.mxu0 0.0
    %1325 = vmatpush1.msra.mxu0 0.0
    %1326 = vmatprep.subr.mxu0 0.0
    %1327 = vmatpush1.msra.mxu0 0.0
    %1328 = vmatprep.subr.mxu0 0.0
    %1329 = vmatpush1.msra.mxu0 0.0
    %1330 = vmatprep.subr.mxu0 0.0
    %1331 = vmatpush1.msra.mxu0 0.0
    %1332 = vmatprep.subr.mxu0 0.0
    %1333 = vmatpush1.msra.mxu0 0.0
    %1334 = vmatprep.subr.mxu0 0.0
    %1335 = vmatpush1.msra.mxu0 0.0
    %1336 = vmatprep.subr.mxu0 0.0
    %1337 = vmatpush1.msra.mxu0 0.0
    %1338 = vmatprep.subr.mxu0 0.0
    %1339 = vmatpush1.msra.mxu0 0.0
    %1340 = vmatprep.subr.mxu0 0.0
    %1341 = vmatpush1.msra.mxu0 0.0
    %1342 = vmatprep.subr.mxu0 0.0
    %1343 = vmatpush1.msra.mxu0 0.0
    %1344 = vmatprep.subr.mxu0 0.0
    %1345 = vmatpush1.msra.mxu0 0.0
    %1346 = vmatprep.subr.mxu0 0.0
    %1347 = vmatpush1.msra.mxu0 0.0
    %1348 = vmatprep.subr.mxu0 0.0
    %1349 = vmatpush1.msra.mxu0 0.0
    %1350 = vmatprep.subr.mxu0 0.0
    %1351 = vmatpush1.msra.mxu0 0.0
    %1352 = vmatprep.subr.mxu0 0.0
    %1353 = vmatpush1.msra.mxu0 0.0
    %1354 = vmatprep.mubr.f32.mxu0 0.0
    %1355 = vmatmul.mubr.f32.gmra.mrb[0].mxu0 %v1288
    %v1356 = vpop.f32.mrb[0].mxu0
    %v1357 = vadd.f32 0.0, %v1356
    %v1358 = vpop.f32.mrb[0].mxu0
    %1359 = vdwg.mxu0
    %v1360 = vadd.f32 %v1281, %v1357
    %v1361 = vxor.u32 %v1360, 2147483648
    %v1362 = vmul.f32 %v1361, 1.442695
    %v1363 = vpow.pop %v1362
    %v1364 = vadd.f32 %v1363, 1.0
    %v1365 = vrcp.pop %v1364
    %v1366 = vmul.f32 1.0, %v1365
    %v1367 = vtanh.pop %v1360
    %v1368 = vmul.f32 %v1366, %v1237
    %1370 = vrot.lane.b32.xlu0 %v1367, 80
    %v1371 = vpop.permute.xlu0 %1370
    %v1373 = vmul.f32 %v1366, %v1371
    %1375 = vrot.lane.b32.xlu0 %v1373, 16
    %v1376 = vpop.permute.xlu0 %1375
    %v1378 = vadd.f32 %v1368, %v1376
    %v1379 = vtanh.pop %v1378
    %1381 = vrot.lane.b32.xlu0 %v1379, 16
    %v1382 = vpop.permute.xlu0 %1381
    %v1384 = vmul.f32 %v1366, %v1382
    %v1385 = vadd.f32 %v1282, %v1357
    %v1386 = vxor.u32 %v1385, 2147483648
    %v1387 = vmul.f32 %v1386, 1.442695
    %v1388 = vpow.pop %v1387
    %v1389 = vadd.f32 %v1388, 1.0
    %v1390 = vrcp.pop %v1389
    %v1391 = vmul.f32 1.0, %v1390
    %v1392 = vtanh.pop %v1385
    %v1393 = vmul.f32 %v1391, %v1262
    %1395 = vrot.lane.b32.xlu0 %v1392, 80
    %v1396 = vpop.permute.xlu0 %1395
    %v1398 = vmul.f32 %v1391, %v1396
    %1400 = vrot.lane.b32.xlu0 %v1398, 16
    %v1401 = vpop.permute.xlu0 %1400
    %v1403 = vadd.f32 %v1393, %v1401
    %v1404 = vtanh.pop %v1403
    %1406 = vrot.lane.b32.xlu0 %v1404, 16
    %v1407 = vpop.permute.xlu0 %1406
    %v1409 = vmul.f32 %v1391, %v1407
    %1411 = vrot.lane.b32.xlu0 %v1384, 96
    %v1412 = vpop.permute.xlu0 %1411
    %s1414 = scalar_lea.vmem [#allocation3], 12
    %1415 = vst.msk [vmem:[%s1414] sm:$0x3] %vm561, %v1412
    %1417 = vrot.lane.b32.xlu0 %v1409, 32
    %v1418 = vpop.permute.xlu0 %1417
    %s1420 = scalar_lea.vmem [#allocation4], 2
    %1421 = vst.msk [vmem:[%s1420] sm:$0x3] %vm561, %v1418
    %v1422 = vld [vmem:[%s431] sm:$0x3]
    %v1423 = vld [vmem:[#allocation2] sm:$0x3]
    %1424 = vrot.lane.b32.xlu0 %v1409, 48
    %v1425 = vpop.permute.xlu0 %1424
    %v1427 = vsel %vm576, %v1412, %v1425
    %v1429 = vsel %vm433, %v1427, 0
    %1431 = vmatprep.subr.mxu0 0.0
    %1432 = vmatpush1.msra.mxu0 %v426
    %1433 = vmatprep.subr.mxu0 0.0
    %1434 = vmatpush1.msra.mxu0 %v427
    %1435 = vmatprep.subr.mxu0 0.0
    %1436 = vmatpush1.msra.mxu0 %v428
    %1437 = vmatprep.subr.mxu0 0.0
    %1438 = vmatpush1.msra.mxu0 %v429
    %1439 = vmatprep.subr.mxu0 0.0
    %1440 = vmatpush1.msra.mxu0 0.0
    %1441 = vmatprep.subr.mxu0 0.0
    %1442 = vmatpush1.msra.mxu0 0.0
    %1443 = vmatprep.subr.mxu0 0.0
    %1444 = vmatpush1.msra.mxu0 0.0
    %1445 = vmatprep.subr.mxu0 0.0
    %1446 = vmatpush1.msra.mxu0 0.0
    %1447 = vmatprep.subr.mxu0 0.0
    %1448 = vmatpush1.msra.mxu0 0.0
    %1449 = vmatprep.subr.mxu0 0.0
    %1450 = vmatpush1.msra.mxu0 0.0
    %1451 = vmatprep.subr.mxu0 0.0
    %1452 = vmatpush1.msra.mxu0 0.0
    %1453 = vmatprep.subr.mxu0 0.0
    %1454 = vmatpush1.msra.mxu0 0.0
    %1455 = vmatprep.subr.mxu0 0.0
    %1456 = vmatpush1.msra.mxu0 0.0
    %1457 = vmatprep.subr.mxu0 0.0
    %1458 = vmatpush1.msra.mxu0 0.0
    %1459 = vmatprep.subr.mxu0 0.0
    %1460 = vmatpush1.msra.mxu0 0.0
    %1461 = vmatprep.subr.mxu0 0.0
    %1462 = vmatpush1.msra.mxu0 0.0
    %1463 = vmatprep.subr.mxu0 0.0
    %1464 = vmatpush1.msra.mxu0 0.0
    %1465 = vmatprep.subr.mxu0 0.0
    %1466 = vmatpush1.msra.mxu0 0.0
    %1467 = vmatprep.subr.mxu0 0.0
    %1468 = vmatpush1.msra.mxu0 0.0
    %1469 = vmatprep.subr.mxu0 0.0
    %1470 = vmatpush1.msra.mxu0 0.0
    %1471 = vmatprep.subr.mxu0 0.0
    %1472 = vmatpush1.msra.mxu0 0.0
    %1473 = vmatprep.subr.mxu0 0.0
    %1474 = vmatpush1.msra.mxu0 0.0
    %1475 = vmatprep.subr.mxu0 0.0
    %1476 = vmatpush1.msra.mxu0 0.0
    %1477 = vmatprep.subr.mxu0 0.0
    %1478 = vmatpush1.msra.mxu0 0.0
    %1479 = vmatprep.subr.mxu0 0.0
    %1480 = vmatpush1.msra.mxu0 0.0
    %1481 = vmatprep.subr.mxu0 0.0
    %1482 = vmatpush1.msra.mxu0 0.0
    %1483 = vmatprep.subr.mxu0 0.0
    %1484 = vmatpush1.msra.mxu0 0.0
    %1485 = vmatprep.subr.mxu0 0.0
    %1486 = vmatpush1.msra.mxu0 0.0
    %1487 = vmatprep.subr.mxu0 0.0
    %1488 = vmatpush1.msra.mxu0 0.0
    %1489 = vmatprep.subr.mxu0 0.0
    %1490 = vmatpush1.msra.mxu0 0.0
    %1491 = vmatprep.subr.mxu0 0.0
    %1492 = vmatpush1.msra.mxu0 0.0
    %1493 = vmatprep.subr.mxu0 0.0
    %1494 = vmatpush1.msra.mxu0 0.0
    %1495 = vmatprep.mubr.f32.mxu0 0.0
    %1496 = vmatmul.mubr.f32.gmra.mrb[0].mxu0 %v1429
    %v1497 = vpop.f32.mrb[0].mxu0
    %v1498 = vadd.f32 0.0, %v1497
    %v1499 = vpop.f32.mrb[0].mxu0
    %1500 = vdwg.mxu0
    %v1501 = vadd.f32 %v1422, %v1498
    %v1502 = vxor.u32 %v1501, 2147483648
    %v1503 = vmul.f32 %v1502, 1.442695
    %v1504 = vpow.pop %v1503
    %v1505 = vadd.f32 %v1504, 1.0
    %v1506 = vrcp.pop %v1505
    %v1507 = vmul.f32 1.0, %v1506
    %v1508 = vtanh.pop %v1501
    %v1509 = vmul.f32 %v1507, %v1378
    %1511 = vrot.lane.b32.xlu0 %v1508, 80
    %v1512 = vpop.permute.xlu0 %1511
    %v1514 = vmul.f32 %v1507, %v1512
    %1516 = vrot.lane.b32.xlu0 %v1514, 16
    %v1517 = vpop.permute.xlu0 %1516
    %v1519 = vadd.f32 %v1509, %v1517
    %v1520 = vtanh.pop %v1519
    %1522 = vrot.lane.b32.xlu0 %v1520, 16
    %v1523 = vpop.permute.xlu0 %1522
    %v1525 = vmul.f32 %v1507, %v1523
    %v1526 = vadd.f32 %v1423, %v1498
    %v1527 = vxor.u32 %v1526, 2147483648
    %v1528 = vmul.f32 %v1527, 1.442695
    %v1529 = vpow.pop %v1528
    %v1530 = vadd.f32 %v1529, 1.0
    %v1531 = vrcp.pop %v1530
    %v1532 = vmul.f32 1.0, %v1531
    %v1533 = vtanh.pop %v1526
    %v1534 = vmul.f32 %v1532, %v1403
    %1536 = vrot.lane.b32.xlu0 %v1533, 80
    %v1537 = vpop.permute.xlu0 %1536
    %v1539 = vmul.f32 %v1532, %v1537
    %1541 = vrot.lane.b32.xlu0 %v1539, 16
    %v1542 = vpop.permute.xlu0 %1541
    %v1544 = vadd.f32 %v1534, %v1542
    %v1545 = vtanh.pop %v1544
    %1547 = vrot.lane.b32.xlu0 %v1545, 16
    %v1548 = vpop.permute.xlu0 %1547
    %v1550 = vmul.f32 %v1532, %v1548
    %1552 = vrot.lane.b32.xlu0 %v1525, 96
    %v1553 = vpop.permute.xlu0 %1552
    %s1555 = scalar_lea.vmem [#allocation3], 14
    %1556 = vst.msk [vmem:[%s1555] sm:$0x3] %vm561, %v1553
    %1558 = vrot.lane.b32.xlu0 %v1550, 32
    %v1559 = vpop.permute.xlu0 %1558
    %1561 = vst.msk [vmem:[#allocation4] sm:$0x3] %vm561, %v1559
    %v1562 = vld [vmem:[#allocation3] sm:$0x3]
    %v1563 = vld [vmem:[#allocation3 + $0x2] sm:$0x3]
    %v1564 = vld [vmem:[#allocation3 + $0x4] sm:$0x3]
    %v1565 = vld [vmem:[#allocation3 + $0x6] sm:$0x3]
    %v1566 = vld [vmem:[#allocation3 + $0x8] sm:$0x3]
    %v1567 = vld [vmem:[#allocation3 + $0xa] sm:$0x3]
    %v1568 = vld [vmem:[#allocation3 + $0xc] sm:$0x3]
    %v1569 = vld [vmem:[#allocation3 + $0xe] sm:$0x3]
    %v1570 = vld [vmem:[#allocation4] sm:$0x3]
    %v1571 = vld [vmem:[#allocation4 + $0x2] sm:$0x3]
    %v1572 = vld [vmem:[#allocation4 + $0x4] sm:$0x3]
    %v1573 = vld [vmem:[#allocation4 + $0x6] sm:$0x3]
    %v1574 = vld [vmem:[#allocation4 + $0x8] sm:$0x3]
    %v1575 = vld [vmem:[#allocation4 + $0xa] sm:$0x3]
    %v1576 = vld [vmem:[#allocation4 + $0xc] sm:$0x3]
    %v1577 = vld [vmem:[#allocation4 + $0xe] sm:$0x3]
    %v1578 = vld [vmem:[#allocation10] sm:$0xff]
    %v1579 = vld [vmem:[#allocation10 + $0x8] sm:$0xff]
    %v1580 = vld [vmem:[#allocation10 + $0x10] sm:$0xff]
    %v1581 = vld [vmem:[#allocation10 + $0x18] sm:$0xff]
    %v1590 = vcombine.low %v1570, %v1571
    %v1591 = vcombine.low %v1572, %v1573
    %v1593 = vunpack.c.l.s4 1983009808
    %v1594 = vunpack.c.0.s8 %v1593
    %v1595 = vlaneseq
    %v1596 = vshrl.u32 %v1595, 7
    %v1597 = vsub.s32 %v1594, %v1596
    %v1598 = vrot.slane %v1590, %v1597
    %v1600 = vunpack.c.l.s4 1983009808
    %v1601 = vunpack.c.0.s8 %v1600
    %v1602 = vlaneseq
    %v1603 = vshrl.u32 %v1602, 7
    %v1604 = vsub.s32 %v1601, %v1603
    %v1605 = vrot.slane %v1591, %v1604
    %v1606 = vcombine.low %v1598, %v1605
    %v1607 = vcombine.low %v1574, %v1575
    %v1608 = vcombine.low %v1576, %v1577
    %v1610 = vunpack.c.l.s4 1983009808
    %v1611 = vunpack.c.0.s8 %v1610
    %v1612 = vlaneseq
    %v1613 = vshrl.u32 %v1612, 7
    %v1614 = vsub.s32 %v1611, %v1613
    %v1615 = vrot.slane %v1607, %v1614
    %v1617 = vunpack.c.l.s4 1983009808
    %v1618 = vunpack.c.0.s8 %v1617
    %v1619 = vlaneseq
    %v1620 = vshrl.u32 %v1619, 7
    %v1621 = vsub.s32 %v1618, %v1620
    %v1622 = vrot.slane %v1608, %v1621
    %v1623 = vcombine.low %v1615, %v1622
    %v1624 = vsel %vm576, %v1606, 0
    %v1626 = vsel %vm576, %v1623, 0
    %1628 = vmatprep.subr.mxu0 0.0
    %1629 = vmatpush1.msra.mxu0 %v1580
    %1630 = vmatprep.subr.mxu0 0.0
    %1631 = vmatpush1.msra.mxu0 %v1581
    %1632 = vmatprep.subr.mxu0 0.0
    %1633 = vmatpush1.msra.mxu0 0.0
    %1634 = vmatprep.subr.mxu0 0.0
    %1635 = vmatpush1.msra.mxu0 0.0
    %1636 = vmatprep.subr.mxu0 0.0
    %1637 = vmatpush1.msra.mxu0 0.0
    %1638 = vmatprep.subr.mxu0 0.0
    %1639 = vmatpush1.msra.mxu0 0.0
    %1640 = vmatprep.subr.mxu0 0.0
    %1641 = vmatpush1.msra.mxu0 0.0
    %1642 = vmatprep.subr.mxu0 0.0
    %1643 = vmatpush1.msra.mxu0 0.0
    %1644 = vmatprep.subr.mxu0 0.0
    %1645 = vmatpush1.msra.mxu0 0.0
    %1646 = vmatprep.subr.mxu0 0.0
    %1647 = vmatpush1.msra.mxu0 0.0
    %1648 = vmatprep.subr.mxu0 0.0
    %1649 = vmatpush1.msra.mxu0 0.0
    %1650 = vmatprep.subr.mxu0 0.0
    %1651 = vmatpush1.msra.mxu0 0.0
    %1652 = vmatprep.subr.mxu0 0.0
    %1653 = vmatpush1.msra.mxu0 0.0
    %1654 = vmatprep.subr.mxu0 0.0
    %1655 = vmatpush1.msra.mxu0 0.0
    %1656 = vmatprep.subr.mxu0 0.0
    %1657 = vmatpush1.msra.mxu0 0.0
    %1658 = vmatprep.subr.mxu0 0.0
    %1659 = vmatpush1.msra.mxu0 0.0
    %1660 = vmatprep.subr.mxu0 0.0
    %1661 = vmatpush1.msra.mxu0 0.0
    %1662 = vmatprep.subr.mxu0 0.0
    %1663 = vmatpush1.msra.mxu0 0.0
    %1664 = vmatprep.subr.mxu0 0.0
    %1665 = vmatpush1.msra.mxu0 0.0
    %1666 = vmatprep.subr.mxu0 0.0
    %1667 = vmatpush1.msra.mxu0 0.0
    %1668 = vmatprep.subr.mxu0 0.0
    %1669 = vmatpush1.msra.mxu0 0.0
    %1670 = vmatprep.subr.mxu0 0.0
    %1671 = vmatpush1.msra.mxu0 0.0
    %1672 = vmatprep.subr.mxu0 0.0
    %1673 = vmatpush1.msra.mxu0 0.0
    %1674 = vmatprep.subr.mxu0 0.0
    %1675 = vmatpush1.msra.mxu0 0.0
    %1676 = vmatprep.subr.mxu0 0.0
    %1677 = vmatpush1.msra.mxu0 0.0
    %1678 = vmatprep.subr.mxu0 0.0
    %1679 = vmatpush1.msra.mxu0 0.0
    %1680 = vmatprep.subr.mxu0 0.0
    %1681 = vmatpush1.msra.mxu0 0.0
    %1682 = vmatprep.subr.mxu0 0.0
    %1683 = vmatpush1.msra.mxu0 0.0
    %1684 = vmatprep.subr.mxu0 0.0
    %1685 = vmatpush1.msra.mxu0 0.0
    %1686 = vmatprep.subr.mxu0 0.0
    %1687 = vmatpush1.msra.mxu0 0.0
    %1688 = vmatprep.subr.mxu0 0.0
    %1689 = vmatpush1.msra.mxu0 0.0
    %1690 = vmatprep.subr.mxu0 0.0
    %1691 = vmatpush1.msra.mxu0 0.0
    %1692 = vmatprep.mubr.f32.mxu0 0.0
    %1693 = vmatmul.mubr.f32.gmra.mrb[0].mxu0 %v1624
    %v1694 = vpop.f32.mrb[0].mxu0
    %v1695 = vadd.f32 0.0, %v1694
    %v1696 = vpop.f32.mrb[0].mxu0
    %1697 = vmatprep.mubr.f32.mxu0 0.0
    %1698 = vmatmul.mubr.f32.gmra.mrb[0].mxu0 %v1626
    %v1699 = vpop.f32.mrb[0].mxu0
    %v1700 = vadd.f32 0.0, %v1699
    %v1701 = vpop.f32.mrb[0].mxu0
    %1702 = vdwg.mxu0
    %v1711 = vcombine.low %v1562, %v1563
    %v1712 = vcombine.low %v1564, %v1565
    %v1714 = vunpack.c.l.s4 1983009808
    %v1715 = vunpack.c.0.s8 %v1714
    %v1716 = vlaneseq
    %v1717 = vshrl.u32 %v1716, 7
    %v1718 = vsub.s32 %v1715, %v1717
    %v1719 = vrot.slane %v1711, %v1718
    %v1721 = vunpack.c.l.s4 1983009808
    %v1722 = vunpack.c.0.s8 %v1721
    %v1723 = vlaneseq
    %v1724 = vshrl.u32 %v1723, 7
    %v1725 = vsub.s32 %v1722, %v1724
    %v1726 = vrot.slane %v1712, %v1725
    %v1727 = vcombine.low %v1719, %v1726
    %v1728 = vcombine.low %v1566, %v1567
    %v1729 = vcombine.low %v1568, %v1569
    %v1731 = vunpack.c.l.s4 1983009808
    %v1732 = vunpack.c.0.s8 %v1731
    %v1733 = vlaneseq
    %v1734 = vshrl.u32 %v1733, 7
    %v1735 = vsub.s32 %v1732, %v1734
    %v1736 = vrot.slane %v1728, %v1735
    %v1738 = vunpack.c.l.s4 1983009808
    %v1739 = vunpack.c.0.s8 %v1738
    %v1740 = vlaneseq
    %v1741 = vshrl.u32 %v1740, 7
    %v1742 = vsub.s32 %v1739, %v1741
    %v1743 = vrot.slane %v1729, %v1742
    %v1744 = vcombine.low %v1736, %v1743
    %v1745 = vsel %vm576, %v1727, 0
    %v1747 = vsel %vm576, %v1744, 0
    %1749 = vmatprep.subr.mxu0 0.0
    %1750 = vmatpush1.msra.mxu0 %v1578
    %1751 = vmatprep.subr.mxu0 0.0
    %1752 = vmatpush1.msra.mxu0 %v1579
    %1753 = vmatprep.subr.mxu0 0.0
    %1754 = vmatpush1.msra.mxu0 0.0
    %1755 = vmatprep.subr.mxu0 0.0
    %1756 = vmatpush1.msra.mxu0 0.0
    %1757 = vmatprep.subr.mxu0 0.0
    %1758 = vmatpush1.msra.mxu0 0.0
    %1759 = vmatprep.subr.mxu0 0.0
    %1760 = vmatpush1.msra.mxu0 0.0
    %1761 = vmatprep.subr.mxu0 0.0
    %1762 = vmatpush1.msra.mxu0 0.0
    %1763 = vmatprep.subr.mxu0 0.0
    %1764 = vmatpush1.msra.mxu0 0.0
    %1765 = vmatprep.subr.mxu0 0.0
    %1766 = vmatpush1.msra.mxu0 0.0
    %1767 = vmatprep.subr.mxu0 0.0
    %1768 = vmatpush1.msra.mxu0 0.0
    %1769 = vmatprep.subr.mxu0 0.0
    %1770 = vmatpush1.msra.mxu0 0.0
    %1771 = vmatprep.subr.mxu0 0.0
    %1772 = vmatpush1.msra.mxu0 0.0
    %1773 = vmatprep.subr.mxu0 0.0
    %1774 = vmatpush1.msra.mxu0 0.0
    %1775 = vmatprep.subr.mxu0 0.0
    %1776 = vmatpush1.msra.mxu0 0.0
    %1777 = vmatprep.subr.mxu0 0.0
    %1778 = vmatpush1.msra.mxu0 0.0
    %1779 = vmatprep.subr.mxu0 0.0
    %1780 = vmatpush1.msra.mxu0 0.0
    %1781 = vmatprep.subr.mxu0 0.0
    %1782 = vmatpush1.msra.mxu0 0.0
    %1783 = vmatprep.subr.mxu0 0.0
    %1784 = vmatpush1.msra.mxu0 0.0
    %1785 = vmatprep.subr.mxu0 0.0
    %1786 = vmatpush1.msra.mxu0 0.0
    %1787 = vmatprep.subr.mxu0 0.0
    %1788 = vmatpush1.msra.mxu0 0.0
    %1789 = vmatprep.subr.mxu0 0.0
    %1790 = vmatpush1.msra.mxu0 0.0
    %1791 = vmatprep.subr.mxu0 0.0
    %1792 = vmatpush1.msra.mxu0 0.0
    %1793 = vmatprep.subr.mxu0 0.0
    %1794 = vmatpush1.msra.mxu0 0.0
    %1795 = vmatprep.subr.mxu0 0.0
    %1796 = vmatpush1.msra.mxu0 0.0
    %1797 = vmatprep.subr.mxu0 0.0
    %1798 = vmatpush1.msra.mxu0 0.0
    %1799 = vmatprep.subr.mxu0 0.0
    %1800 = vmatpush1.msra.mxu0 0.0
    %1801 = vmatprep.subr.mxu0 0.0
    %1802 = vmatpush1.msra.mxu0 0.0
    %1803 = vmatprep.subr.mxu0 0.0
    %1804 = vmatpush1.msra.mxu0 0.0
    %1805 = vmatprep.subr.mxu0 0.0
    %1806 = vmatpush1.msra.mxu0 0.0
    %1807 = vmatprep.subr.mxu0 0.0
    %1808 = vmatpush1.msra.mxu0 0.0
    %1809 = vmatprep.subr.mxu0 0.0
    %1810 = vmatpush1.msra.mxu0 0.0
    %1811 = vmatprep.subr.mxu0 0.0
    %1812 = vmatpush1.msra.mxu0 0.0
    %1813 = vmatprep.mubr.f32.mxu0 0.0
    %1814 = vmatmul.mubr.f32.gmra.mrb[0].mxu0 %v1745
    %v1815 = vpop.f32.mrb[0].mxu0
    %v1816 = vadd.f32 %v1695, %v1815
    %v1817 = vpop.f32.mrb[0].mxu0
    %1818 = vmatprep.mubr.f32.mxu0 0.0
    %1819 = vmatmul.mubr.f32.gmra.mrb[0].mxu0 %v1747
    %v1820 = vpop.f32.mrb[0].mxu0
    %v1821 = vadd.f32 %v1700, %v1820
    %v1822 = vpop.f32.mrb[0].mxu0
    %1823 = vdwg.mxu0
    %v1824 = vld [vmem:[%s6] sm:$0x1]
    %v1826 = vlaneseq
    %v1827 = vshrl.u32 %v1826, 7
    %v1828 = vsub.s32 0, %v1827
    %v1829 = vrot.slane %v1824, %v1828
    %v1831 = vadd.f32 %v1816, %v1829
    %v1832 = vadd.f32 %v1821, %v1829
    %v1835 = vcombine.high %v1831, %v1831
    %v1837 = vunpack.c.l.s4 1983009808
    %v1838 = vunpack.c.0.s8 %v1837
    %v1839 = vlaneseq
    %v1840 = vshrl.u32 %v1839, 7
    %v1841 = vsub.s32 %v1838, %v1840
    %v1842 = vrot.slane %v1831, %v1841
    %v1844 = vunpack.c.l.s4 1983009808
    %v1845 = vunpack.c.0.s8 %v1844
    %v1846 = vlaneseq
    %v1847 = vshrl.u32 %v1846, 7
    %v1848 = vsub.s32 %v1845, %v1847
    %v1849 = vrot.slane %v1835, %v1848
    %v1850 = vcombine.high %v1842, %v1842
    %v1851 = vcombine.high %v1849, %v1849
    %v1852 = vcombine.high %v1832, %v1832
    %v1854 = vunpack.c.l.s4 1983009808
    %v1855 = vunpack.c.0.s8 %v1854
    %v1856 = vlaneseq
    %v1857 = vshrl.u32 %v1856, 7
    %v1858 = vsub.s32 %v1855, %v1857
    %v1859 = vrot.slane %v1832, %v1858
    %v1861 = vunpack.c.l.s4 1983009808
    %v1862 = vunpack.c.0.s8 %v1861
    %v1863 = vlaneseq
    %v1864 = vshrl.u32 %v1863, 7
    %v1865 = vsub.s32 %v1862, %v1864
    %v1866 = vrot.slane %v1852, %v1865
    %v1867 = vcombine.high %v1859, %v1859
    %v1868 = vcombine.high %v1866, %v1866
    %1877 = vst [vmem:[#allocation2] sm:$0x3] %v1842
    %1878 = vst [vmem:[#allocation2 + $0x2] sm:$0x3] %v1850
    %1879 = vst [vmem:[#allocation2 + $0x4] sm:$0x3] %v1849
    %1880 = vst [vmem:[#allocation2 + $0x6] sm:$0x3] %v1851
    %1881 = vst [vmem:[#allocation2 + $0x8] sm:$0x3] %v1859
    %1882 = vst [vmem:[#allocation2 + $0xa] sm:$0x3] %v1867
    %1883 = vst [vmem:[#allocation2 + $0xc] sm:$0x3] %v1866
    %1884 = vst [vmem:[#allocation2 + $0xe] sm:$0x3] %v1868
    %v1885 = vld [vmem:[%s5] sm:$0xff]
    %v1886 = vld [vmem:[%s5 + $0x8] sm:$0xff]
    %v1887 = vld [vmem:[#allocation2] sm:$0x3]
    %v1888 = vsel %vm576, 0.0, 0
    %1890 = vmatprep.subr.mxu0 0.0
    %1891 = vmatpush1.msra.mxu0 %v1885
    %1892 = vmatprep.subr.mxu0 0.0
    %1893 = vmatpush1.msra.mxu0 %v1886
    %1894 = vmatprep.subr.mxu0 0.0
    %1895 = vmatpush1.msra.mxu0 0.0
    %1896 = vmatprep.subr.mxu0 0.0
    %1897 = vmatpush1.msra.mxu0 0.0
    %1898 = vmatprep.subr.mxu0 0.0
    %1899 = vmatpush1.msra.mxu0 0.0
    %1900 = vmatprep.subr.mxu0 0.0
    %1901 = vmatpush1.msra.mxu0 0.0
    %1902 = vmatprep.subr.mxu0 0.0
    %1903 = vmatpush1.msra.mxu0 0.0
    %1904 = vmatprep.subr.mxu0 0.0
    %1905 = vmatpush1.msra.mxu0 0.0
    %1906 = vmatprep.subr.mxu0 0.0
    %1907 = vmatpush1.msra.mxu0 0.0
    %1908 = vmatprep.subr.mxu0 0.0
    %1909 = vmatpush1.msra.mxu0 0.0
    %1910 = vmatprep.subr.mxu0 0.0
    %1911 = vmatpush1.msra.mxu0 0.0
    %1912 = vmatprep.subr.mxu0 0.0
    %1913 = vmatpush1.msra.mxu0 0.0
    %1914 = vmatprep.subr.mxu0 0.0
    %1915 = vmatpush1.msra.mxu0 0.0
    %1916 = vmatprep.subr.mxu0 0.0
    %1917 = vmatpush1.msra.mxu0 0.0
    %1918 = vmatprep.subr.mxu0 0.0
    %1919 = vmatpush1.msra.mxu0 0.0
    %1920 = vmatprep.subr.mxu0 0.0
    %1921 = vmatpush1.msra.mxu0 0.0
    %1922 = vmatprep.subr.mxu0 0.0
    %1923 = vmatpush1.msra.mxu0 0.0
    %1924 = vmatprep.subr.mxu0 0.0
    %1925 = vmatpush1.msra.mxu0 0.0
    %1926 = vmatprep.subr.mxu0 0.0
    %1927 = vmatpush1.msra.mxu0 0.0
    %1928 = vmatprep.subr.mxu0 0.0
    %1929 = vmatpush1.msra.mxu0 0.0
    %1930 = vmatprep.subr.mxu0 0.0
    %1931 = vmatpush1.msra.mxu0 0.0
    %1932 = vmatprep.subr.mxu0 0.0
    %1933 = vmatpush1.msra.mxu0 0.0
    %1934 = vmatprep.subr.mxu0 0.0
    %1935 = vmatpush1.msra.mxu0 0.0
    %1936 = vmatprep.subr.mxu0 0.0
    %1937 = vmatpush1.msra.mxu0 0.0
    %1938 = vmatprep.subr.mxu0 0.0
    %1939 = vmatpush1.msra.mxu0 0.0
    %1940 = vmatprep.subr.mxu0 0.0
    %1941 = vmatpush1.msra.mxu0 0.0
    %1942 = vmatprep.subr.mxu0 0.0
    %1943 = vmatpush1.msra.mxu0 0.0
    %1944 = vmatprep.subr.mxu0 0.0
    %1945 = vmatpush1.msra.mxu0 0.0
    %1946 = vmatprep.subr.mxu0 0.0
    %1947 = vmatpush1.msra.mxu0 0.0
    %1948 = vmatprep.subr.mxu0 0.0
    %1949 = vmatpush1.msra.mxu0 0.0
    %1950 = vmatprep.subr.mxu0 0.0
    %1951 = vmatpush1.msra.mxu0 0.0
    %1952 = vmatprep.subr.mxu0 0.0
    %1953 = vmatpush1.msra.mxu0 0.0
    %1954 = vmatprep.mubr.f32.mxu0 0.0
    %1955 = vmatmul.mubr.f32.gmra.mrb[0].mxu0 %v1888
    %v1956 = vpop.f32.mrb[0].mxu0
    %v1957 = vadd.f32 0.0, %v1956
    %v1958 = vpop.f32.mrb[0].mxu0
    %1959 = vdwg.mxu0
    %v1960 = vadd.f32 %v1887, %v1957
    %v1961 = vxor.u32 %v1960, 2147483648
    %v1962 = vmul.f32 %v1961, 1.442695
    %v1963 = vpow.pop %v1962
    %v1964 = vadd.f32 %v1963, 1.0
    %v1965 = vrcp.pop %v1964
    %v1966 = vmul.f32 1.0, %v1965
    %v1967 = vtanh.pop %v1960
    %v1968 = vmul.f32 %v1966, 0.0
    %1970 = vrot.lane.b32.xlu0 %v1967, 80
    %v1971 = vpop.permute.xlu0 %1970
    %v1973 = vmul.f32 %v1966, %v1971
    %1975 = vrot.lane.b32.xlu0 %v1973, 16
    %v1976 = vpop.permute.xlu0 %1975
    %v1978 = vadd.f32 %v1968, %v1976
    %v1979 = vtanh.pop %v1978
    %1981 = vrot.lane.b32.xlu0 %v1979, 16
    %v1982 = vpop.permute.xlu0 %1981
    %v1984 = vmul.f32 %v1966, %v1982
    %v1985 = vld [vmem:[%s569] sm:$0x3]
    %1987 = vrot.lane.b32.xlu0 %v1984, 96
    %v1988 = vpop.permute.xlu0 %1987
    %v1989 = vsel %vm576, %v1988, 0
    %1991 = vmatprep.subr.mxu0 0.0
    %1992 = vmatpush1.msra.mxu0 %v1885
    %1993 = vmatprep.subr.mxu0 0.0
    %1994 = vmatpush1.msra.mxu0 %v1886
    %1995 = vmatprep.subr.mxu0 0.0
    %1996 = vmatpush1.msra.mxu0 0.0
    %1997 = vmatprep.subr.mxu0 0.0
    %1998 = vmatpush1.msra.mxu0 0.0
    %1999 = vmatprep.subr.mxu0 0.0
    %2000 = vmatpush1.msra.mxu0 0.0
    %2001 = vmatprep.subr.mxu0 0.0
    %2002 = vmatpush1.msra.mxu0 0.0
    %2003 = vmatprep.subr.mxu0 0.0
    %2004 = vmatpush1.msra.mxu0 0.0
    %2005 = vmatprep.subr.mxu0 0.0
    %2006 = vmatpush1.msra.mxu0 0.0
    %2007 = vmatprep.subr.mxu0 0.0
    %2008 = vmatpush1.msra.mxu0 0.0
    %2009 = vmatprep.subr.mxu0 0.0
    %2010 = vmatpush1.msra.mxu0 0.0
    %2011 = vmatprep.subr.mxu0 0.0
    %2012 = vmatpush1.msra.mxu0 0.0
    %2013 = vmatprep.subr.mxu0 0.0
    %2014 = vmatpush1.msra.mxu0 0.0
    %2015 = vmatprep.subr.mxu0 0.0
    %2016 = vmatpush1.msra.mxu0 0.0
    %2017 = vmatprep.subr.mxu0 0.0
    %2018 = vmatpush1.msra.mxu0 0.0
    %2019 = vmatprep.subr.mxu0 0.0
    %2020 = vmatpush1.msra.mxu0 0.0
    %2021 = vmatprep.subr.mxu0 0.0
    %2022 = vmatpush1.msra.mxu0 0.0
    %2023 = vmatprep.subr.mxu0 0.0
    %2024 = vmatpush1.msra.mxu0 0.0
    %2025 = vmatprep.subr.mxu0 0.0
    %2026 = vmatpush1.msra.mxu0 0.0
    %2027 = vmatprep.subr.mxu0 0.0
    %2028 = vmatpush1.msra.mxu0 0.0
    %2029 = vmatprep.subr.mxu0 0.0
    %2030 = vmatpush1.msra.mxu0 0.0
    %2031 = vmatprep.subr.mxu0 0.0
    %2032 = vmatpush1.msra.mxu0 0.0
    %2033 = vmatprep.subr.mxu0 0.0
    %2034 = vmatpush1.msra.mxu0 0.0
    %2035 = vmatprep.subr.mxu0 0.0
    %2036 = vmatpush1.msra.mxu0 0.0
    %2037 = vmatprep.subr.mxu0 0.0
    %2038 = vmatpush1.msra.mxu0 0.0
    %2039 = vmatprep.subr.mxu0 0.0
    %2040 = vmatpush1.msra.mxu0 0.0
    %2041 = vmatprep.subr.mxu0 0.0
    %2042 = vmatpush1.msra.mxu0 0.0
    %2043 = vmatprep.subr.mxu0 0.0
    %2044 = vmatpush1.msra.mxu0 0.0
    %2045 = vmatprep.subr.mxu0 0.0
    %2046 = vmatpush1.msra.mxu0 0.0
    %2047 = vmatprep.subr.mxu0 0.0
    %2048 = vmatpush1.msra.mxu0 0.0
    %2049 = vmatprep.subr.mxu0 0.0
    %2050 = vmatpush1.msra.mxu0 0.0
    %2051 = vmatprep.subr.mxu0 0.0
    %2052 = vmatpush1.msra.mxu0 0.0
    %2053 = vmatprep.subr.mxu0 0.0
    %2054 = vmatpush1.msra.mxu0 0.0
    %2055 = vmatprep.mubr.f32.mxu0 0.0
    %2056 = vmatmul.mubr.f32.gmra.mrb[0].mxu0 %v1989
    %v2057 = vpop.f32.mrb[0].mxu0
    %v2058 = vadd.f32 0.0, %v2057
    %v2059 = vpop.f32.mrb[0].mxu0
    %2060 = vdwg.mxu0
    %v2061 = vadd.f32 %v1985, %v2058
    %v2062 = vxor.u32 %v2061, 2147483648
    %v2063 = vmul.f32 %v2062, 1.442695
    %v2064 = vpow.pop %v2063
    %v2065 = vadd.f32 %v2064, 1.0
    %v2066 = vrcp.pop %v2065
    %v2067 = vmul.f32 1.0, %v2066
    %v2068 = vtanh.pop %v2061
    %v2069 = vmul.f32 %v2067, %v1978
    %2071 = vrot.lane.b32.xlu0 %v2068, 80
    %v2072 = vpop.permute.xlu0 %2071
    %v2074 = vmul.f32 %v2067, %v2072
    %2076 = vrot.lane.b32.xlu0 %v2074, 16
    %v2077 = vpop.permute.xlu0 %2076
    %v2079 = vadd.f32 %v2069, %v2077
    %v2080 = vtanh.pop %v2079
    %2082 = vrot.lane.b32.xlu0 %v2080, 16
    %v2083 = vpop.permute.xlu0 %2082
    %v2085 = vmul.f32 %v2067, %v2083
    %v2086 = vld [vmem:[%s713] sm:$0x3]
    %2088 = vrot.lane.b32.xlu0 %v2085, 96
    %v2089 = vpop.permute.xlu0 %2088
    %v2090 = vsel %vm576, %v2089, 0
    %2092 = vmatprep.subr.mxu0 0.0
    %2093 = vmatpush1.msra.mxu0 %v1885
    %2094 = vmatprep.subr.mxu0 0.0
    %2095 = vmatpush1.msra.mxu0 %v1886
    %2096 = vmatprep.subr.mxu0 0.0
    %2097 = vmatpush1.msra.mxu0 0.0
    %2098 = vmatprep.subr.mxu0 0.0
    %2099 = vmatpush1.msra.mxu0 0.0
    %2100 = vmatprep.subr.mxu0 0.0
    %2101 = vmatpush1.msra.mxu0 0.0
    %2102 = vmatprep.subr.mxu0 0.0
    %2103 = vmatpush1.msra.mxu0 0.0
    %2104 = vmatprep.subr.mxu0 0.0
    %2105 = vmatpush1.msra.mxu0 0.0
    %2106 = vmatprep.subr.mxu0 0.0
    %2107 = vmatpush1.msra.mxu0 0.0
    %2108 = vmatprep.subr.mxu0 0.0
    %2109 = vmatpush1.msra.mxu0 0.0
    %2110 = vmatprep.subr.mxu0 0.0
    %2111 = vmatpush1.msra.mxu0 0.0
    %2112 = vmatprep.subr.mxu0 0.0
    %2113 = vmatpush1.msra.mxu0 0.0
    %2114 = vmatprep.subr.mxu0 0.0
    %2115 = vmatpush1.msra.mxu0 0.0
    %2116 = vmatprep.subr.mxu0 0.0
    %2117 = vmatpush1.msra.mxu0 0.0
    %2118 = vmatprep.subr.mxu0 0.0
    %2119 = vmatpush1.msra.mxu0 0.0
    %2120 = vmatprep.subr.mxu0 0.0
    %2121 = vmatpush1.msra.mxu0 0.0
    %2122 = vmatprep.subr.mxu0 0.0
    %2123 = vmatpush1.msra.mxu0 0.0
    %2124 = vmatprep.subr.mxu0 0.0
    %2125 = vmatpush1.msra.mxu0 0.0
    %2126 = vmatprep.subr.mxu0 0.0
    %2127 = vmatpush1.msra.mxu0 0.0
    %2128 = vmatprep.subr.mxu0 0.0
    %2129 = vmatpush1.msra.mxu0 0.0
    %2130 = vmatprep.subr.mxu0 0.0
    %2131 = vmatpush1.msra.mxu0 0.0
    %2132 = vmatprep.subr.mxu0 0.0
    %2133 = vmatpush1.msra.mxu0 0.0
    %2134 = vmatprep.subr.mxu0 0.0
    %2135 = vmatpush1.msra.mxu0 0.0
    %2136 = vmatprep.subr.mxu0 0.0
    %2137 = vmatpush1.msra.mxu0 0.0
    %2138 = vmatprep.subr.mxu0 0.0
    %2139 = vmatpush1.msra.mxu0 0.0
    %2140 = vmatprep.subr.mxu0 0.0
    %2141 = vmatpush1.msra.mxu0 0.0
    %2142 = vmatprep.subr.mxu0 0.0
    %2143 = vmatpush1.msra.mxu0 0.0
    %2144 = vmatprep.subr.mxu0 0.0
    %2145 = vmatpush1.msra.mxu0 0.0
    %2146 = vmatprep.subr.mxu0 0.0
    %2147 = vmatpush1.msra.mxu0 0.0
    %2148 = vmatprep.subr.mxu0 0.0
    %2149 = vmatpush1.msra.mxu0 0.0
    %2150 = vmatprep.subr.mxu0 0.0
    %2151 = vmatpush1.msra.mxu0 0.0
    %2152 = vmatprep.subr.mxu0 0.0
    %2153 = vmatpush1.msra.mxu0 0.0
    %2154 = vmatprep.subr.mxu0 0.0
    %2155 = vmatpush1.msra.mxu0 0.0
    %2156 = vmatprep.mubr.f32.mxu0 0.0
    %2157 = vmatmul.mubr.f32.gmra.mrb[0].mxu0 %v2090
    %v2158 = vpop.f32.mrb[0].mxu0
    %v2159 = vadd.f32 0.0, %v2158
    %v2160 = vpop.f32.mrb[0].mxu0
    %2161 = vdwg.mxu0
    %v2162 = vadd.f32 %v2086, %v2159
    %v2163 = vxor.u32 %v2162, 2147483648
    %v2164 = vmul.f32 %v2163, 1.442695
    %v2165 = vpow.pop %v2164
    %v2166 = vadd.f32 %v2165, 1.0
    %v2167 = vrcp.pop %v2166
    %v2168 = vmul.f32 1.0, %v2167
    %v2169 = vtanh.pop %v2162
    %v2170 = vmul.f32 %v2168, %v2079
    %2172 = vrot.lane.b32.xlu0 %v2169, 80
    %v2173 = vpop.permute.xlu0 %2172
    %v2175 = vmul.f32 %v2168, %v2173
    %2177 = vrot.lane.b32.xlu0 %v2175, 16
    %v2178 = vpop.permute.xlu0 %2177
    %v2180 = vadd.f32 %v2170, %v2178
    %v2181 = vtanh.pop %v2180
    %2183 = vrot.lane.b32.xlu0 %v2181, 16
    %v2184 = vpop.permute.xlu0 %2183
    %v2186 = vmul.f32 %v2168, %v2184
    %v2187 = vld [vmem:[%s856] sm:$0x3]
    %2189 = vrot.lane.b32.xlu0 %v2186, 96
    %v2190 = vpop.permute.xlu0 %2189
    %v2191 = vsel %vm576, %v2190, 0
    %2193 = vmatprep.subr.mxu0 0.0
    %2194 = vmatpush1.msra.mxu0 %v1885
    %2195 = vmatprep.subr.mxu0 0.0
    %2196 = vmatpush1.msra.mxu0 %v1886
    %2197 = vmatprep.subr.mxu0 0.0
    %2198 = vmatpush1.msra.mxu0 0.0
    %2199 = vmatprep.subr.mxu0 0.0
    %2200 = vmatpush1.msra.mxu0 0.0
    %2201 = vmatprep.subr.mxu0 0.0
    %2202 = vmatpush1.msra.mxu0 0.0
    %2203 = vmatprep.subr.mxu0 0.0
    %2204 = vmatpush1.msra.mxu0 0.0
    %2205 = vmatprep.subr.mxu0 0.0
    %2206 = vmatpush1.msra.mxu0 0.0
    %2207 = vmatprep.subr.mxu0 0.0
    %2208 = vmatpush1.msra.mxu0 0.0
    %2209 = vmatprep.subr.mxu0 0.0
    %2210 = vmatpush1.msra.mxu0 0.0
    %2211 = vmatprep.subr.mxu0 0.0
    %2212 = vmatpush1.msra.mxu0 0.0
    %2213 = vmatprep.subr.mxu0 0.0
    %2214 = vmatpush1.msra.mxu0 0.0
    %2215 = vmatprep.subr.mxu0 0.0
    %2216 = vmatpush1.msra.mxu0 0.0
    %2217 = vmatprep.subr.mxu0 0.0
    %2218 = vmatpush1.msra.mxu0 0.0
    %2219 = vmatprep.subr.mxu0 0.0
    %2220 = vmatpush1.msra.mxu0 0.0
    %2221 = vmatprep.subr.mxu0 0.0
    %2222 = vmatpush1.msra.mxu0 0.0
    %2223 = vmatprep.subr.mxu0 0.0
    %2224 = vmatpush1.msra.mxu0 0.0
    %2225 = vmatprep.subr.mxu0 0.0
    %2226 = vmatpush1.msra.mxu0 0.0
    %2227 = vmatprep.subr.mxu0 0.0
    %2228 = vmatpush1.msra.mxu0 0.0
    %2229 = vmatprep.subr.mxu0 0.0
    %2230 = vmatpush1.msra.mxu0 0.0
    %2231 = vmatprep.subr.mxu0 0.0
    %2232 = vmatpush1.msra.mxu0 0.0
    %2233 = vmatprep.subr.mxu0 0.0
    %2234 = vmatpush1.msra.mxu0 0.0
    %2235 = vmatprep.subr.mxu0 0.0
    %2236 = vmatpush1.msra.mxu0 0.0
    %2237 = vmatprep.subr.mxu0 0.0
    %2238 = vmatpush1.msra.mxu0 0.0
    %2239 = vmatprep.subr.mxu0 0.0
    %2240 = vmatpush1.msra.mxu0 0.0
    %2241 = vmatprep.subr.mxu0 0.0
    %2242 = vmatpush1.msra.mxu0 0.0
    %2243 = vmatprep.subr.mxu0 0.0
    %2244 = vmatpush1.msra.mxu0 0.0
    %2245 = vmatprep.subr.mxu0 0.0
    %2246 = vmatpush1.msra.mxu0 0.0
    %2247 = vmatprep.subr.mxu0 0.0
    %2248 = vmatpush1.msra.mxu0 0.0
    %2249 = vmatprep.subr.mxu0 0.0
    %2250 = vmatpush1.msra.mxu0 0.0
    %2251 = vmatprep.subr.mxu0 0.0
    %2252 = vmatpush1.msra.mxu0 0.0
    %2253 = vmatprep.subr.mxu0 0.0
    %2254 = vmatpush1.msra.mxu0 0.0
    %2255 = vmatprep.subr.mxu0 0.0
    %2256 = vmatpush1.msra.mxu0 0.0
    %2257 = vmatprep.mubr.f32.mxu0 0.0
    %2258 = vmatmul.mubr.f32.gmra.mrb[0].mxu0 %v2191
    %v2259 = vpop.f32.mrb[0].mxu0
    %v2260 = vadd.f32 0.0, %v2259
    %v2261 = vpop.f32.mrb[0].mxu0
    %2262 = vdwg.mxu0
    %v2263 = vadd.f32 %v2187, %v2260
    %v2264 = vxor.u32 %v2263, 2147483648
    %v2265 = vmul.f32 %v2264, 1.442695
    %v2266 = vpow.pop %v2265
    %v2267 = vadd.f32 %v2266, 1.0
    %v2268 = vrcp.pop %v2267
    %v2269 = vmul.f32 1.0, %v2268
    %v2270 = vtanh.pop %v2263
    %v2271 = vmul.f32 %v2269, %v2180
    %2273 = vrot.lane.b32.xlu0 %v2270, 80
    %v2274 = vpop.permute.xlu0 %2273
    %v2276 = vmul.f32 %v2269, %v2274
    %2278 = vrot.lane.b32.xlu0 %v2276, 16
    %v2279 = vpop.permute.xlu0 %2278
    %v2281 = vadd.f32 %v2271, %v2279
    %v2282 = vtanh.pop %v2281
    %2284 = vrot.lane.b32.xlu0 %v2282, 16
    %v2285 = vpop.permute.xlu0 %2284
    %v2287 = vmul.f32 %v2269, %v2285
    %v2288 = vld [vmem:[%s858] sm:$0x3]
    %2290 = vrot.lane.b32.xlu0 %v2287, 96
    %v2291 = vpop.permute.xlu0 %2290
    %v2292 = vsel %vm576, %v2291, 0
    %2294 = vmatprep.subr.mxu0 0.0
    %2295 = vmatpush1.msra.mxu0 %v1885
    %2296 = vmatprep.subr.mxu0 0.0
    %2297 = vmatpush1.msra.mxu0 %v1886
    %2298 = vmatprep.subr.mxu0 0.0
    %2299 = vmatpush1.msra.mxu0 0.0
    %2300 = vmatprep.subr.mxu0 0.0
    %2301 = vmatpush1.msra.mxu0 0.0
    %2302 = vmatprep.subr.mxu0 0.0
    %2303 = vmatpush1.msra.mxu0 0.0
    %2304 = vmatprep.subr.mxu0 0.0
    %2305 = vmatpush1.msra.mxu0 0.0
    %2306 = vmatprep.subr.mxu0 0.0
    %2307 = vmatpush1.msra.mxu0 0.0
    %2308 = vmatprep.subr.mxu0 0.0
    %2309 = vmatpush1.msra.mxu0 0.0
    %2310 = vmatprep.subr.mxu0 0.0
    %2311 = vmatpush1.msra.mxu0 0.0
    %2312 = vmatprep.subr.mxu0 0.0
    %2313 = vmatpush1.msra.mxu0 0.0
    %2314 = vmatprep.subr.mxu0 0.0
    %2315 = vmatpush1.msra.mxu0 0.0
    %2316 = vmatprep.subr.mxu0 0.0
    %2317 = vmatpush1.msra.mxu0 0.0
    %2318 = vmatprep.subr.mxu0 0.0
    %2319 = vmatpush1.msra.mxu0 0.0
    %2320 = vmatprep.subr.mxu0 0.0
    %2321 = vmatpush1.msra.mxu0 0.0
    %2322 = vmatprep.subr.mxu0 0.0
    %2323 = vmatpush1.msra.mxu0 0.0
    %2324 = vmatprep.subr.mxu0 0.0
    %2325 = vmatpush1.msra.mxu0 0.0
    %2326 = vmatprep.subr.mxu0 0.0
    %2327 = vmatpush1.msra.mxu0 0.0
    %2328 = vmatprep.subr.mxu0 0.0
    %2329 = vmatpush1.msra.mxu0 0.0
    %2330 = vmatprep.subr.mxu0 0.0
    %2331 = vmatpush1.msra.mxu0 0.0
    %2332 = vmatprep.subr.mxu0 0.0
    %2333 = vmatpush1.msra.mxu0 0.0
    %2334 = vmatprep.subr.mxu0 0.0
    %2335 = vmatpush1.msra.mxu0 0.0
    %2336 = vmatprep.subr.mxu0 0.0
    %2337 = vmatpush1.msra.mxu0 0.0
    %2338 = vmatprep.subr.mxu0 0.0
    %2339 = vmatpush1.msra.mxu0 0.0
    %2340 = vmatprep.subr.mxu0 0.0
    %2341 = vmatpush1.msra.mxu0 0.0
    %2342 = vmatprep.subr.mxu0 0.0
    %2343 = vmatpush1.msra.mxu0 0.0
    %2344 = vmatprep.subr.mxu0 0.0
    %2345 = vmatpush1.msra.mxu0 0.0
    %2346 = vmatprep.subr.mxu0 0.0
    %2347 = vmatpush1.msra.mxu0 0.0
    %2348 = vmatprep.subr.mxu0 0.0
    %2349 = vmatpush1.msra.mxu0 0.0
    %2350 = vmatprep.subr.mxu0 0.0
    %2351 = vmatpush1.msra.mxu0 0.0
    %2352 = vmatprep.subr.mxu0 0.0
    %2353 = vmatpush1.msra.mxu0 0.0
    %2354 = vmatprep.subr.mxu0 0.0
    %2355 = vmatpush1.msra.mxu0 0.0
    %2356 = vmatprep.subr.mxu0 0.0
    %2357 = vmatpush1.msra.mxu0 0.0
    %2358 = vmatprep.mubr.f32.mxu0 0.0
    %2359 = vmatmul.mubr.f32.gmra.mrb[0].mxu0 %v2292
    %v2360 = vpop.f32.mrb[0].mxu0
    %v2361 = vadd.f32 0.0, %v2360
    %v2362 = vpop.f32.mrb[0].mxu0
    %2363 = vdwg.mxu0
    %v2364 = vadd.f32 %v2288, %v2361
    %v2365 = vxor.u32 %v2364, 2147483648
    %v2366 = vmul.f32 %v2365, 1.442695
    %v2367 = vpow.pop %v2366
    %v2368 = vadd.f32 %v2367, 1.0
    %v2369 = vrcp.pop %v2368
    %v2370 = vmul.f32 1.0, %v2369
    %v2371 = vtanh.pop %v2364
    %v2372 = vmul.f32 %v2370, %v2281
    %2374 = vrot.lane.b32.xlu0 %v2371, 80
    %v2375 = vpop.permute.xlu0 %2374
    %v2377 = vmul.f32 %v2370, %v2375
    %2379 = vrot.lane.b32.xlu0 %v2377, 16
    %v2380 = vpop.permute.xlu0 %2379
    %v2382 = vadd.f32 %v2372, %v2380
    %v2383 = vtanh.pop %v2382
    %2385 = vrot.lane.b32.xlu0 %v2383, 16
    %v2386 = vpop.permute.xlu0 %2385
    %v2388 = vmul.f32 %v2370, %v2386
    %v2389 = vld [vmem:[%s715] sm:$0x3]
    %2391 = vrot.lane.b32.xlu0 %v2388, 96
    %v2392 = vpop.permute.xlu0 %2391
    %v2393 = vsel %vm576, %v2392, 0
    %2395 = vmatprep.subr.mxu0 0.0
    %2396 = vmatpush1.msra.mxu0 %v1885
    %2397 = vmatprep.subr.mxu0 0.0
    %2398 = vmatpush1.msra.mxu0 %v1886
    %2399 = vmatprep.subr.mxu0 0.0
    %2400 = vmatpush1.msra.mxu0 0.0
    %2401 = vmatprep.subr.mxu0 0.0
    %2402 = vmatpush1.msra.mxu0 0.0
    %2403 = vmatprep.subr.mxu0 0.0
    %2404 = vmatpush1.msra.mxu0 0.0
    %2405 = vmatprep.subr.mxu0 0.0
    %2406 = vmatpush1.msra.mxu0 0.0
    %2407 = vmatprep.subr.mxu0 0.0
    %2408 = vmatpush1.msra.mxu0 0.0
    %2409 = vmatprep.subr.mxu0 0.0
    %2410 = vmatpush1.msra.mxu0 0.0
    %2411 = vmatprep.subr.mxu0 0.0
    %2412 = vmatpush1.msra.mxu0 0.0
    %2413 = vmatprep.subr.mxu0 0.0
    %2414 = vmatpush1.msra.mxu0 0.0
    %2415 = vmatprep.subr.mxu0 0.0
    %2416 = vmatpush1.msra.mxu0 0.0
    %2417 = vmatprep.subr.mxu0 0.0
    %2418 = vmatpush1.msra.mxu0 0.0
    %2419 = vmatprep.subr.mxu0 0.0
    %2420 = vmatpush1.msra.mxu0 0.0
    %2421 = vmatprep.subr.mxu0 0.0
    %2422 = vmatpush1.msra.mxu0 0.0
    %2423 = vmatprep.subr.mxu0 0.0
    %2424 = vmatpush1.msra.mxu0 0.0
    %2425 = vmatprep.subr.mxu0 0.0
    %2426 = vmatpush1.msra.mxu0 0.0
    %2427 = vmatprep.subr.mxu0 0.0
    %2428 = vmatpush1.msra.mxu0 0.0
    %2429 = vmatprep.subr.mxu0 0.0
    %2430 = vmatpush1.msra.mxu0 0.0
    %2431 = vmatprep.subr.mxu0 0.0
    %2432 = vmatpush1.msra.mxu0 0.0
    %2433 = vmatprep.subr.mxu0 0.0
    %2434 = vmatpush1.msra.mxu0 0.0
    %2435 = vmatprep.subr.mxu0 0.0
    %2436 = vmatpush1.msra.mxu0 0.0
    %2437 = vmatprep.subr.mxu0 0.0
    %2438 = vmatpush1.msra.mxu0 0.0
    %2439 = vmatprep.subr.mxu0 0.0
    %2440 = vmatpush1.msra.mxu0 0.0
    %2441 = vmatprep.subr.mxu0 0.0
    %2442 = vmatpush1.msra.mxu0 0.0
    %2443 = vmatprep.subr.mxu0 0.0
    %2444 = vmatpush1.msra.mxu0 0.0
    %2445 = vmatprep.subr.mxu0 0.0
    %2446 = vmatpush1.msra.mxu0 0.0
    %2447 = vmatprep.subr.mxu0 0.0
    %2448 = vmatpush1.msra.mxu0 0.0
    %2449 = vmatprep.subr.mxu0 0.0
    %2450 = vmatpush1.msra.mxu0 0.0
    %2451 = vmatprep.subr.mxu0 0.0
    %2452 = vmatpush1.msra.mxu0 0.0
    %2453 = vmatprep.subr.mxu0 0.0
    %2454 = vmatpush1.msra.mxu0 0.0
    %2455 = vmatprep.subr.mxu0 0.0
    %2456 = vmatpush1.msra.mxu0 0.0
    %2457 = vmatprep.subr.mxu0 0.0
    %2458 = vmatpush1.msra.mxu0 0.0
    %2459 = vmatprep.mubr.f32.mxu0 0.0
    %2460 = vmatmul.mubr.f32.gmra.mrb[0].mxu0 %v2393
    %v2461 = vpop.f32.mrb[0].mxu0
    %v2462 = vadd.f32 0.0, %v2461
    %v2463 = vpop.f32.mrb[0].mxu0
    %2464 = vdwg.mxu0
    %v2465 = vadd.f32 %v2389, %v2462
    %v2466 = vxor.u32 %v2465, 2147483648
    %v2467 = vmul.f32 %v2466, 1.442695
    %v2468 = vpow.pop %v2467
    %v2469 = vadd.f32 %v2468, 1.0
    %v2470 = vrcp.pop %v2469
    %v2471 = vmul.f32 1.0, %v2470
    %v2472 = vtanh.pop %v2465
    %v2473 = vmul.f32 %v2471, %v2382
    %2475 = vrot.lane.b32.xlu0 %v2472, 80
    %v2476 = vpop.permute.xlu0 %2475
    %v2478 = vmul.f32 %v2471, %v2476
    %2480 = vrot.lane.b32.xlu0 %v2478, 16
    %v2481 = vpop.permute.xlu0 %2480
    %v2483 = vadd.f32 %v2473, %v2481
    %v2484 = vtanh.pop %v2483
    %2486 = vrot.lane.b32.xlu0 %v2484, 16
    %v2487 = vpop.permute.xlu0 %2486
    %v2489 = vmul.f32 %v2471, %v2487
    %v2490 = vld [vmem:[%s571] sm:$0x3]
    %2492 = vrot.lane.b32.xlu0 %v2489, 96
    %v2493 = vpop.permute.xlu0 %2492
    %v2494 = vsel %vm576, %v2493, 0
    %2496 = vmatprep.subr.mxu0 0.0
    %2497 = vmatpush1.msra.mxu0 %v1885
    %2498 = vmatprep.subr.mxu0 0.0
    %2499 = vmatpush1.msra.mxu0 %v1886
    %2500 = vmatprep.subr.mxu0 0.0
    %2501 = vmatpush1.msra.mxu0 0.0
    %2502 = vmatprep.subr.mxu0 0.0
    %2503 = vmatpush1.msra.mxu0 0.0
    %2504 = vmatprep.subr.mxu0 0.0
    %2505 = vmatpush1.msra.mxu0 0.0
    %2506 = vmatprep.subr.mxu0 0.0
    %2507 = vmatpush1.msra.mxu0 0.0
    %2508 = vmatprep.subr.mxu0 0.0
    %2509 = vmatpush1.msra.mxu0 0.0
    %2510 = vmatprep.subr.mxu0 0.0
    %2511 = vmatpush1.msra.mxu0 0.0
    %2512 = vmatprep.subr.mxu0 0.0
    %2513 = vmatpush1.msra.mxu0 0.0
    %2514 = vmatprep.subr.mxu0 0.0
    %2515 = vmatpush1.msra.mxu0 0.0
    %2516 = vmatprep.subr.mxu0 0.0
    %2517 = vmatpush1.msra.mxu0 0.0
    %2518 = vmatprep.subr.mxu0 0.0
    %2519 = vmatpush1.msra.mxu0 0.0
    %2520 = vmatprep.subr.mxu0 0.0
    %2521 = vmatpush1.msra.mxu0 0.0
    %2522 = vmatprep.subr.mxu0 0.0
    %2523 = vmatpush1.msra.mxu0 0.0
    %2524 = vmatprep.subr.mxu0 0.0
    %2525 = vmatpush1.msra.mxu0 0.0
    %2526 = vmatprep.subr.mxu0 0.0
    %2527 = vmatpush1.msra.mxu0 0.0
    %2528 = vmatprep.subr.mxu0 0.0
    %2529 = vmatpush1.msra.mxu0 0.0
    %2530 = vmatprep.subr.mxu0 0.0
    %2531 = vmatpush1.msra.mxu0 0.0
    %2532 = vmatprep.subr.mxu0 0.0
    %2533 = vmatpush1.msra.mxu0 0.0
    %2534 = vmatprep.subr.mxu0 0.0
    %2535 = vmatpush1.msra.mxu0 0.0
    %2536 = vmatprep.subr.mxu0 0.0
    %2537 = vmatpush1.msra.mxu0 0.0
    %2538 = vmatprep.subr.mxu0 0.0
    %2539 = vmatpush1.msra.mxu0 0.0
    %2540 = vmatprep.subr.mxu0 0.0
    %2541 = vmatpush1.msra.mxu0 0.0
    %2542 = vmatprep.subr.mxu0 0.0
    %2543 = vmatpush1.msra.mxu0 0.0
    %2544 = vmatprep.subr.mxu0 0.0
    %2545 = vmatpush1.msra.mxu0 0.0
    %2546 = vmatprep.subr.mxu0 0.0
    %2547 = vmatpush1.msra.mxu0 0.0
    %2548 = vmatprep.subr.mxu0 0.0
    %2549 = vmatpush1.msra.mxu0 0.0
    %2550 = vmatprep.subr.mxu0 0.0
    %2551 = vmatpush1.msra.mxu0 0.0
    %2552 = vmatprep.subr.mxu0 0.0
    %2553 = vmatpush1.msra.mxu0 0.0
    %2554 = vmatprep.subr.mxu0 0.0
    %2555 = vmatpush1.msra.mxu0 0.0
    %2556 = vmatprep.subr.mxu0 0.0
    %2557 = vmatpush1.msra.mxu0 0.0
    %2558 = vmatprep.subr.mxu0 0.0
    %2559 = vmatpush1.msra.mxu0 0.0
    %2560 = vmatprep.mubr.f32.mxu0 0.0
    %2561 = vmatmul.mubr.f32.gmra.mrb[0].mxu0 %v2494
    %v2562 = vpop.f32.mrb[0].mxu0
    %v2563 = vadd.f32 0.0, %v2562
    %v2564 = vpop.f32.mrb[0].mxu0
    %2565 = vdwg.mxu0
    %v2566 = vadd.f32 %v2490, %v2563
    %v2567 = vxor.u32 %v2566, 2147483648
    %v2568 = vmul.f32 %v2567, 1.442695
    %v2569 = vpow.pop %v2568
    %v2570 = vadd.f32 %v2569, 1.0
    %v2571 = vrcp.pop %v2570
    %v2572 = vmul.f32 1.0, %v2571
    %v2573 = vtanh.pop %v2566
    %v2574 = vmul.f32 %v2572, %v2483
    %2576 = vrot.lane.b32.xlu0 %v2573, 80
    %v2577 = vpop.permute.xlu0 %2576
    %v2579 = vmul.f32 %v2572, %v2577
    %2581 = vrot.lane.b32.xlu0 %v2579, 16
    %v2582 = vpop.permute.xlu0 %2581
    %v2584 = vadd.f32 %v2574, %v2582
    %v2585 = vtanh.pop %v2584
    %2587 = vrot.lane.b32.xlu0 %v2585, 16
    %v2588 = vpop.permute.xlu0 %2587
    %v2590 = vmul.f32 %v2572, %v2588
    %v2591 = vld [vmem:[%s431] sm:$0x3]
    %2593 = vrot.lane.b32.xlu0 %v2590, 96
    %v2594 = vpop.permute.xlu0 %2593
    %v2595 = vsel %vm576, %v2594, 0
    %2597 = vmatprep.subr.mxu0 0.0
    %2598 = vmatpush1.msra.mxu0 %v1885
    %2599 = vmatprep.subr.mxu0 0.0
    %2600 = vmatpush1.msra.mxu0 %v1886
    %2601 = vmatprep.subr.mxu0 0.0
    %2602 = vmatpush1.msra.mxu0 0.0
    %2603 = vmatprep.subr.mxu0 0.0
    %2604 = vmatpush1.msra.mxu0 0.0
    %2605 = vmatprep.subr.mxu0 0.0
    %2606 = vmatpush1.msra.mxu0 0.0
    %2607 = vmatprep.subr.mxu0 0.0
    %2608 = vmatpush1.msra.mxu0 0.0
    %2609 = vmatprep.subr.mxu0 0.0
    %2610 = vmatpush1.msra.mxu0 0.0
    %2611 = vmatprep.subr.mxu0 0.0
    %2612 = vmatpush1.msra.mxu0 0.0
    %2613 = vmatprep.subr.mxu0 0.0
    %2614 = vmatpush1.msra.mxu0 0.0
    %2615 = vmatprep.subr.mxu0 0.0
    %2616 = vmatpush1.msra.mxu0 0.0
    %2617 = vmatprep.subr.mxu0 0.0
    %2618 = vmatpush1.msra.mxu0 0.0
    %2619 = vmatprep.subr.mxu0 0.0
    %2620 = vmatpush1.msra.mxu0 0.0
    %2621 = vmatprep.subr.mxu0 0.0
    %2622 = vmatpush1.msra.mxu0 0.0
    %2623 = vmatprep.subr.mxu0 0.0
    %2624 = vmatpush1.msra.mxu0 0.0
    %2625 = vmatprep.subr.mxu0 0.0
    %2626 = vmatpush1.msra.mxu0 0.0
    %2627 = vmatprep.subr.mxu0 0.0
    %2628 = vmatpush1.msra.mxu0 0.0
    %2629 = vmatprep.subr.mxu0 0.0
    %2630 = vmatpush1.msra.mxu0 0.0
    %2631 = vmatprep.subr.mxu0 0.0
    %2632 = vmatpush1.msra.mxu0 0.0
    %2633 = vmatprep.subr.mxu0 0.0
    %2634 = vmatpush1.msra.mxu0 0.0
    %2635 = vmatprep.subr.mxu0 0.0
    %2636 = vmatpush1.msra.mxu0 0.0
    %2637 = vmatprep.subr.mxu0 0.0
    %2638 = vmatpush1.msra.mxu0 0.0
    %2639 = vmatprep.subr.mxu0 0.0
    %2640 = vmatpush1.msra.mxu0 0.0
    %2641 = vmatprep.subr.mxu0 0.0
    %2642 = vmatpush1.msra.mxu0 0.0
    %2643 = vmatprep.subr.mxu0 0.0
    %2644 = vmatpush1.msra.mxu0 0.0
    %2645 = vmatprep.subr.mxu0 0.0
    %2646 = vmatpush1.msra.mxu0 0.0
    %2647 = vmatprep.subr.mxu0 0.0
    %2648 = vmatpush1.msra.mxu0 0.0
    %2649 = vmatprep.subr.mxu0 0.0
    %2650 = vmatpush1.msra.mxu0 0.0
    %2651 = vmatprep.subr.mxu0 0.0
    %2652 = vmatpush1.msra.mxu0 0.0
    %2653 = vmatprep.subr.mxu0 0.0
    %2654 = vmatpush1.msra.mxu0 0.0
    %2655 = vmatprep.subr.mxu0 0.0
    %2656 = vmatpush1.msra.mxu0 0.0
    %2657 = vmatprep.subr.mxu0 0.0
    %2658 = vmatpush1.msra.mxu0 0.0
    %2659 = vmatprep.subr.mxu0 0.0
    %2660 = vmatpush1.msra.mxu0 0.0
    %2661 = vmatprep.mubr.f32.mxu0 0.0
    %2662 = vmatmul.mubr.f32.gmra.mrb[0].mxu0 %v2595
    %v2663 = vpop.f32.mrb[0].mxu0
    %v2664 = vadd.f32 0.0, %v2663
    %v2665 = vpop.f32.mrb[0].mxu0
    %2666 = vdwg.mxu0
    %v2667 = vadd.f32 %v2591, %v2664
    %v2668 = vxor.u32 %v2667, 2147483648
    %v2669 = vmul.f32 %v2668, 1.442695
    %v2670 = vpow.pop %v2669
    %v2671 = vadd.f32 %v2670, 1.0
    %v2672 = vrcp.pop %v2671
    %v2673 = vmul.f32 1.0, %v2672
    %v2674 = vtanh.pop %v2667
    %v2675 = vmul.f32 %v2673, %v2584
    %2677 = vrot.lane.b32.xlu0 %v2674, 80
    %v2678 = vpop.permute.xlu0 %2677
    %v2680 = vmul.f32 %v2673, %v2678
    %2682 = vrot.lane.b32.xlu0 %v2680, 16
    %v2683 = vpop.permute.xlu0 %2682
    %v2685 = vadd.f32 %v2675, %v2683
    %v2686 = vtanh.pop %v2685
    %2688 = vrot.lane.b32.xlu0 %v2686, 16
    %v2689 = vpop.permute.xlu0 %2688
    %v2691 = vmul.f32 %v2673, %v2689
    %v2692 = vxor.u32 %v2591, 2147483648
    %v2693 = vmul.f32 %v2692, 1.442695
    %v2694 = vpow.pop %v2693
    %v2695 = vadd.f32 %v2694, 1.0
    %v2696 = vrcp.pop %v2695
    %v2697 = vmul.f32 1.0, %v2696
    %v2698 = vtanh.pop %v2591
    %v2699 = vmul.f32 %v2697, 0.0
    %2701 = vrot.lane.b32.xlu0 %v2698, 80
    %v2702 = vpop.permute.xlu0 %2701
    %v2704 = vmul.f32 %v2697, %v2702
    %2706 = vrot.lane.b32.xlu0 %v2704, 16
    %v2707 = vpop.permute.xlu0 %2706
    %v2709 = vadd.f32 %v2699, %v2707
    %v2710 = vtanh.pop %v2709
    %2712 = vrot.lane.b32.xlu0 %v2710, 16
    %v2713 = vpop.permute.xlu0 %2712
    %v2715 = vmul.f32 %v2697, %v2713
    %2717 = vrot.lane.b32.xlu0 %v2691, 96
    %v2718 = vpop.permute.xlu0 %2717
    %2721 = vrot.lane.b32.xlu0 %v2715, 48
    %v2722 = vpop.permute.xlu0 %2721
    %v2724 = vsel %vm576, %v2718, %v2722
    %v2725 = vld [vmem:[%s7] sm:$0xff]
    %v2726 = vld [vmem:[%s7 + $0x8] sm:$0xff]
    %v2727 = vld [vmem:[%s7 + $0x10] sm:$0xff]
    %v2728 = vld [vmem:[%s7 + $0x18] sm:$0xff]
    %v2729 = vld [vmem:[%s8] sm:$0x1]
    %v2731 = vlaneseq
    %v2732 = vshrl.u32 %v2731, 7
    %v2733 = vsub.s32 0, %v2732
    %v2734 = vrot.slane %v2729, %v2733
    %v2737 = vsel %vm433, %v2724, 0
    %2739 = vmatprep.subr.mxu0 0.0
    %2740 = vmatpush1.msra.mxu0 %v2725
    %2741 = vmatprep.subr.mxu0 0.0
    %2742 = vmatpush1.msra.mxu0 %v2726
    %2743 = vmatprep.subr.mxu0 0.0
    %2744 = vmatpush1.msra.mxu0 %v2727
    %2745 = vmatprep.subr.mxu0 0.0
    %2746 = vmatpush1.msra.mxu0 %v2728
    %2747 = vmatprep.subr.mxu0 0.0
    %2748 = vmatpush1.msra.mxu0 0.0
    %2749 = vmatprep.subr.mxu0 0.0
    %2750 = vmatpush1.msra.mxu0 0.0
    %2751 = vmatprep.subr.mxu0 0.0
    %2752 = vmatpush1.msra.mxu0 0.0
    %2753 = vmatprep.subr.mxu0 0.0
    %2754 = vmatpush1.msra.mxu0 0.0
    %2755 = vmatprep.subr.mxu0 0.0
    %2756 = vmatpush1.msra.mxu0 0.0
    %2757 = vmatprep.subr.mxu0 0.0
    %2758 = vmatpush1.msra.mxu0 0.0
    %2759 = vmatprep.subr.mxu0 0.0
    %2760 = vmatpush1.msra.mxu0 0.0
    %2761 = vmatprep.subr.mxu0 0.0
    %2762 = vmatpush1.msra.mxu0 0.0
    %2763 = vmatprep.subr.mxu0 0.0
    %2764 = vmatpush1.msra.mxu0 0.0
    %2765 = vmatprep.subr.mxu0 0.0
    %2766 = vmatpush1.msra.mxu0 0.0
    %2767 = vmatprep.subr.mxu0 0.0
    %2768 = vmatpush1.msra.mxu0 0.0
    %2769 = vmatprep.subr.mxu0 0.0
    %2770 = vmatpush1.msra.mxu0 0.0
    %2771 = vmatprep.subr.mxu0 0.0
    %2772 = vmatpush1.msra.mxu0 0.0
    %2773 = vmatprep.subr.mxu0 0.0
    %2774 = vmatpush1.msra.mxu0 0.0
    %2775 = vmatprep.subr.mxu0 0.0
    %2776 = vmatpush1.msra.mxu0 0.0
    %2777 = vmatprep.subr.mxu0 0.0
    %2778 = vmatpush1.msra.mxu0 0.0
    %2779 = vmatprep.subr.mxu0 0.0
    %2780 = vmatpush1.msra.mxu0 0.0
    %2781 = vmatprep.subr.mxu0 0.0
    %2782 = vmatpush1.msra.mxu0 0.0
    %2783 = vmatprep.subr.mxu0 0.0
    %2784 = vmatpush1.msra.mxu0 0.0
    %2785 = vmatprep.subr.mxu0 0.0
    %2786 = vmatpush1.msra.mxu0 0.0
    %2787 = vmatprep.subr.mxu0 0.0
    %2788 = vmatpush1.msra.mxu0 0.0
    %2789 = vmatprep.subr.mxu0 0.0
    %2790 = vmatpush1.msra.mxu0 0.0
    %2791 = vmatprep.subr.mxu0 0.0
    %2792 = vmatpush1.msra.mxu0 0.0
    %2793 = vmatprep.subr.mxu0 0.0
    %2794 = vmatpush1.msra.mxu0 0.0
    %2795 = vmatprep.subr.mxu0 0.0
    %2796 = vmatpush1.msra.mxu0 0.0
    %2797 = vmatprep.subr.mxu0 0.0
    %2798 = vmatpush1.msra.mxu0 0.0
    %2799 = vmatprep.subr.mxu0 0.0
    %2800 = vmatpush1.msra.mxu0 0.0
    %2801 = vmatprep.subr.mxu0 0.0
    %2802 = vmatpush1.msra.mxu0 0.0
    %2803 = vmatprep.mubr.f32.mxu0 0.0
    %2804 = vmatmul.mubr.f32.gmra.mrb[0].mxu0 %v2737
    %v2805 = vpop.f32.mrb[0].mxu0
    %v2806 = vadd.f32 %v2734, %v2805
    %v2807 = vpop.f32.mrb[0].mxu0
    %2808 = vdwg.mxu0
    %vm2809 = vcmask 25600
    %2810 = vst.msk [vmem:[#allocation11] sm:$0x3] %vm2809, %v2806
    %v2811 = vsel %vm2809, %v2806, -inf
    %2812 = vmax.xlane.f32.xlu0 %v2811
    %v2813 = vpop.xlane.xlu0 %2812
    %v2814 = vsub.f32 %v2806, %v2813
    %v2815 = vmul.f32 %v2814, 1.442695
    %v2816 = vpow.pop %v2815
    %v2817 = vsel %vm2809, %v2816, 0.0
    %2818 = vadd.xlane.f32.xlu0 %v2817
    %v2819 = vpop.xlane.xlu0 %2818
    %v2820 = vlog2.pop %v2819
    %v2821 = vmul.f32 %v2820, 0.6931472
    %v2822 = vadd.f32 %v2813, %v2821
    %v2823 = vld [vmem:[%s9] sm:$0x3]
    %v2824 = vlaneseq
    %v2825 = vand.u32 %v2824, 127
    %2826 = vset.pattern.permute.xlu0 0
    %2827 = vperm.xlu0 %2826, %v2823
    %v2828 = vpop.permute.xlu0 %2827
    %vm2829 = vcmp.eq.s32.totalorder %v2825, %v2828
    %v2830 = vsel %vm2829, %v2806, 0.0
    %v2831 = vsel %vm2809, %v2830, 0.0
    %2832 = vadd.xlane.f32.xlu0 %v2831
    %v2833 = vpop.xlane.xlu0 %2832
    %v2834 = vsub.f32 %v2822, %v2833
    %vm2835 = vcmask 1041408
    %v2836 = vsel %vm2835, %v2834, 0.0
    %v2837 = vrot.slane %v2836, 4
    %v2838 = vadd.f32 %v2836, %v2837
    %v2839 = vrot.slane %v2838, 2
    %v2840 = vadd.f32 %v2838, %v2839
    %v2841 = vrot.slane %v2840, 1
    %v2842 = vadd.f32 %v2840, %v2841
    %v2843 = vrcp.pop 2.0
    %v2844 = vmul.f32 %v2842, %v2843
    %vm2845 = vcmask 0
    %2846 = vst.msk [vmem:[#allocation12] sm:$0x1] %vm2845, %v2844
    // Predicated region
    $region54: #{tpu_custom_call.1} parent=1 // pred_check
      _
    $region55: #{tpu_custom_call.1} parent=1 // pred_check_branch
      %2848 = sbr.rel (0) target = $region57
    $region56: #{tpu_custom_call.1} parent=1 // pred_region
      %s2850 = ssub.s32 32, 32
      %2851 = vsyncadd [#allocation7], %s2850
      %s2853 = sshll.u32 [#allocation11], 4
      %s2854 = int_to_ptr.vmem [resolvable:$true] %s2853
      %2856 = dma.vmem_to_hbm [thread:$0]  %s2854, 32, %s10, [#allocation7]
    $region57: #{tpu_custom_call.1} parent=1 // pred_fallthru
      _
    // Predicated region
    $region58: #{tpu_custom_call.1} parent=1 // pred_check
      _
    $region59: #{tpu_custom_call.1} parent=1 // pred_check_branch
      %2858 = sbr.rel (0) target = $region61
    $region60: #{tpu_custom_call.1} parent=1 // pred_region
      %s2860 = ssub.s32 16, 16
      %2861 = vsyncadd [#allocation13], %s2860
      %s2863 = sshll.u32 [#allocation12], 4
      %s2864 = int_to_ptr.vmem [resolvable:$true] %s2863
      %2866 = dma.vmem_to_hbm [thread:$0]  %s2864, 16, %s11, [#allocation13]
    $region61: #{tpu_custom_call.1} parent=1 // pred_fallthru
      _
    // Predicated region
    $region62: #{tpu_custom_call.1} parent=1 // pred_check
      _
    $region63: #{tpu_custom_call.1} parent=1 // pred_check_branch
      %2868 = sbr.rel (0) target = $region65
    $region64: #{tpu_custom_call.1} parent=1 // pred_region
      %2869 = dma.done [#allocation7], 32
    $region65: #{tpu_custom_call.1} parent=1 // pred_fallthru
      _
    // Predicated region
    $region66: #{tpu_custom_call.1} parent=1 // pred_check
      _
    $region67: #{tpu_custom_call.1} parent=1 // pred_check_branch
      %2871 = sbr.rel (0) target = $region69
    $region68: #{tpu_custom_call.1} parent=1 // pred_region
      %2872 = dma.done [#allocation13], 16
    $region69: #{tpu_custom_call.1} parent=1 // pred_fallthru
      _
    %2873 = vsyncpa [#allocation6], 1
    %2874 = vsyncpa [#allocation9], 1
    %2875 = vsyncpa [#allocation7], 1
    %2876 = vsyncpa [#allocation13], 1

</llo_original>
